<compile_context>
chip_gen: v6e
topology: v6e:2x2x1
jax: 0.10.0
libtpu: 0.0.40
codegen_flags: <defaults>
</compile_context>

<pallas_src>
import functools

import numpy as np
import jax
import jax.numpy as jnp
from jax.experimental import pallas as pl
from jax.experimental.pallas import tpu as pltpu

_LANES = 128


# --------------------------------------------------------------------------
# Fused whole-network kernel
# --------------------------------------------------------------------------
def _tiny_pcc_kernel(x_ref, mask_ref, w1_ref, w2_ref, wout_ref, vec_ref,
                     o_ref, pad_ref, *, m_valid, cf, cout, halo, shifts,
                     eps=1e-5):
    # x_ref    : (Mp, cf)          f32   flattened NHWC activations (rows=N*H*W)
    # mask_ref : (9, Mp, cf)       f32   per-tap 0/1 validity masks
    # w1_ref   : (9, cf, cf)       bf16  conv1 weights, tap-major
    # w2_ref   : (9, cf, cout)     bf16  conv2 weights, tap-major
    # wout_ref : (cf+cout, 128)    bf16  1x1 output conv, lanes padded to 128
    # vec_ref  : (16, 128)         f32   packed gammas/betas/biases/dw-weights
    # o_ref    : (Mp, 128)         f32   lane-dense output slab
    # pad_ref  : (Mp+2*halo, cf)   f32   zero-halo scratch for tap extraction
    f32, bf16 = jnp.float32, jnp.bfloat16
    mp = x_ref.shape[0]
    inv_m = 1.0 / float(m_valid)
    vec = vec_ref[...]

    # Zero the halo rows once; the centre is overwritten per stage.
    zero_halo = jnp.zeros((halo, cf), f32)
    pad_ref[pl.ds(0, halo), :] = zero_halo
    pad_ref[pl.ds(halo + mp, halo), :] = zero_halo
    pad_ref[pl.ds(halo, mp), :] = x_ref[...]

    def tap(t):
        # In-kernel im2col: statically-offset sublane slice of the halo
        # buffer, masked by per-tap validity (image borders + row padding).
        return pad_ref[pl.ds(halo + shifts[t], mp), :] * mask_ref[t]

    # ---- conv1 (3x3, cf->cf) + depthwise (3x3, groups=cf): share taps ----
    acc1 = jnp.zeros((mp, cf), f32)
    accd = jnp.zeros((mp, cf), f32)
    for t in range(9):
        xt = tap(t)
        acc1 = acc1 + jnp.dot(xt.astype(bf16), w1_ref[t],
                              preferred_element_type=f32)
        accd = accd + xt * vec[6 + t:7 + t, 0:cf]            # depthwise (VPU)

    def bn_relu(y, gamma, beta):
        # Train-mode BatchNorm2d (biased variance) via one-pass moments.
        # Invalid/padded rows carry exactly-zero taps, so plain column sums
        # divided by m_valid give the correct batch statistics.
        s1 = jnp.sum(y, axis=0, keepdims=True) * inv_m
        s2 = jnp.sum(y * y, axis=0, keepdims=True) * inv_m
        var = s2 - s1 * s1
        scale = gamma * jax.lax.rsqrt(var + eps)
        shift = beta - s1 * scale
        return jnp.maximum(y * scale + shift, 0.0)

    h1 = bn_relu(acc1, vec[0:1, 0:cf], vec[1:2, 0:cf])       # conv_layers BN+ReLU
    coh = bn_relu(accd, vec[2:3, 0:cf], vec[3:4, 0:cf])      # local_coherence

    # ---- conv2 (3x3, cf->cout), bias kept (no BN follows) ----
    pad_ref[pl.ds(halo, mp), :] = h1                         # reuse halo buffer
    acc2 = jnp.zeros((mp, cout), f32)
    for t in range(9):
        acc2 = acc2 + jnp.dot(tap(t).astype(bf16), w2_ref[t],
                              preferred_element_type=f32)
    proc = acc2 + vec[4:5, 0:cout]

    # ---- fused concat + 1x1 output conv as two partial matmuls ----
    out = jnp.dot(proc.astype(bf16), wout_ref[0:cout, :],
                  preferred_element_type=f32)
    out = out + jnp.dot(coh.astype(bf16), wout_ref[cout:cout + cf, :],
                        preferred_element_type=f32)
    out = out + vec[5:6, :]                                  # padded output bias
    o_ref[...] = out.astype(o_ref.dtype)


# --------------------------------------------------------------------------
# Wrapper-side prep
# --------------------------------------------------------------------------
def _build_tap_masks(n, h, w, m, mp, cf):
    """(9, Mp, cf) 0/1 masks: tap t valid at flattened row i (zero on padding)."""
    idx = np.arange(m)
    hh = (idx // w) % h
    ww = idx % w
    masks = np.zeros((9, mp, cf), np.float32)
    t = 0
    for di in (-1, 0, 1):          # tap order matches torch kernel (ki*3 + kj)
        for dj in (-1, 0, 1):
            valid = ((hh + di >= 0) & (hh + di < h)
                     & (ww + dj >= 0) & (ww + dj < w)).astype(np.float32)
            masks[t, :m, :] = valid[:, None]
            t += 1
    return jnp.asarray(masks)


def tiny_phase_correlation_tensor_computation(x_nchw, params):
    """Forward pass of TinyPhaseCorrelationTensorComputation. NCHW in/out."""
    n, cf, h, w = x_nchw.shape
    cout = params["conv2"][0].shape[0]
    assert cf <= _LANES and cout <= _LANES and cf + cout <= _LANES

    m = n * h * w
    mp = max(8, ((m + 7) // 8) * 8)              # sublane-align rows
    halo = ((w + 1 + 7) // 8) * 8                # covers max |shift| = w + 1

    # NCHW -> flat rows = (n, h, w), lanes = channels
    x2d = jnp.transpose(x_nchw, (0, 2, 3, 1)).astype(jnp.float32).reshape(m, cf)
    x2d = jnp.pad(x2d, ((0, mp - m), (0, 0)))

    masks = _build_tap_masks(n, h, w, m, mp, cf)
    shifts = tuple(di * w + dj for di in (-1, 0, 1) for dj in (-1, 0, 1))

    w1, _b1 = params["conv1"]      # bias dropped: exactly cancelled by BN mean
    w2, b2 = params["conv2"]
    wdw, _bdw = params["dw"]       # bias dropped: exactly cancelled by BN mean
    wout, bout = params["out"]
    g1, be1 = params["bn1"]
    gdw, bedw = params["bn_dw"]

    # torch (Cout, Cin, 3, 3) -> tap-major (9, Cin, Cout), bf16 for the MXU
    w1_t = jnp.transpose(w1, (2, 3, 1, 0)).reshape(9, cf, cf).astype(jnp.bfloat16)
    w2_t = jnp.transpose(w2, (2, 3, 1, 0)).reshape(9, cf, cout).astype(jnp.bfloat16)
    wdw_t = jnp.transpose(wdw[:, 0], (1, 2, 0)).reshape(9, cf)          # (9, cf) f32
    wout_mat = jnp.transpose(wout[:, :, 0, 0], (1, 0))                  # (cf+cout, cout)
    wout_p = jnp.zeros((cf + cout, _LANES), jnp.float32).at[:, :cout].set(wout_mat)
    wout_p = wout_p.astype(jnp.bfloat16)                                # lane-dense (pad to 128)

    # one packed vector slab: gammas / betas / biases / depthwise weights
    vec = jnp.zeros((16, _LANES), jnp.float32)
    vec = vec.at[0, :cf].set(g1).at[1, :cf].set(be1)
    vec = vec.at[2, :cf].set(gdw).at[3, :cf].set(bedw)
    vec = vec.at[4, :cout].set(b2).at[5, :cout].set(bout)
    vec = vec.at[6:15, :cf].set(wdw_t)

    kernel = functools.partial(_tiny_pcc_kernel, m_valid=m, cf=cf, cout=cout,
                               halo=halo, shifts=shifts)
    out_slab = pl.pallas_call(
        kernel,
        grid=(1,),
        in_specs=[
            pl.BlockSpec((mp, cf), lambda i: (0, 0)),
            pl.BlockSpec((9, mp, cf), lambda i: (0, 0, 0)),
            pl.BlockSpec((9, cf, cf), lambda i: (0, 0, 0)),
            pl.BlockSpec((9, cf, cout), lambda i: (0, 0, 0)),
            pl.BlockSpec((cf + cout, _LANES), lambda i: (0, 0)),
            pl.BlockSpec((16, _LANES), lambda i: (0, 0)),
        ],
        out_specs=pl.BlockSpec((mp, _LANES), lambda i: (0, 0)),
        out_shape=jax.ShapeDtypeStruct((mp, _LANES), jnp.float32),
        scratch_shapes=[pltpu.VMEM((mp + 2 * halo, cf), jnp.float32)],
        compiler_params=pltpu.CompilerParams(
            dimension_semantics=("arbitrary",)),
    )(x2d, masks, w1_t, w2_t, wout_p, vec)

    out = out_slab[:m, :cout].reshape(n, h, w, cout)
    return jnp.transpose(out, (0, 3, 1, 2))                  # back to NCHW


# --------------------------------------------------------------------------
# Deterministic parameters (torch layer shapes)
# --------------------------------------------------------------------------
def make_params(key, feature_dim=32, output_dim=64):
    ks = jax.random.split(key, 12)

    def conv_p(kw, kb, shape):
        return (jax.random.normal(kw, shape, jnp.float32) * 0.1,
                jax.random.normal(kb, (shape[0],), jnp.float32) * 0.1)

    def bn_p(kg, kb, c):
        return (1.0 + 0.1 * jax.random.normal(kg, (c,), jnp.float32),
                0.1 * jax.random.normal(kb, (c,), jnp.float32))

    return {
        "conv1": conv_p(ks[0], ks[1], (feature_dim, feature_dim, 3, 3)),
        "bn1": bn_p(ks[2], ks[3], feature_dim),
        "conv2": conv_p(ks[4], ks[5], (output_dim, feature_dim, 3, 3)),
        "dw": conv_p(ks[6], ks[7], (feature_dim, 1, 3, 3)),
        "bn_dw": bn_p(ks[8], ks[9], feature_dim),
        "out": conv_p(ks[10], ks[11], (output_dim, feature_dim + output_dim, 1, 1)),
    }


# --------------------------------------------------------------------------
# Pure-JAX reference (torch semantics) for a correctness spot-check
# --------------------------------------------------------------------------
def _ref_forward(x, params):
    def conv(t, wgt, b, groups=1):
        pad = (wgt.shape[-1] - 1) // 2
        y = jax.lax.conv_general_dilated(
            t, wgt, window_strides=(1, 1), padding=((pad, pad), (pad, pad)),
            dimension_numbers=("NCHW", "OIHW", "NCHW"),
            feature_group_count=groups)
        return y + b[None, :, None, None]

    def bn_relu(y, g, be, eps=1e-5):
        mean = jnp.mean(y, axis=(0, 2, 3), keepdims=True)
        var = jnp.mean((y - mean) ** 2, axis=(0, 2, 3), keepdims=True)
        yn = (y - mean) * jax.lax.rsqrt(var + eps)
        return jnp.maximum(yn * g[None, :, None, None] + be[None, :, None, None], 0.0)

    w1, b1 = params["conv1"]; g1, be1 = params["bn1"]
    w2, b2 = params["conv2"]
    wdw, bdw = params["dw"]; gdw, bedw = params["bn_dw"]
    wout, bout = params["out"]

    h = bn_relu(conv(x, w1, b1), g1, be1)
    proc = conv(h, w2, b2)
    coh = bn_relu(conv(x, wdw, bdw, groups=x.shape[1]), gdw, bedw)
    comb = jnp.concatenate([proc, coh], axis=1)
    return conv(comb, wout, bout)


# --------------------------------------------------------------------------
if __name__ == "__main__":
    key = jax.random.PRNGKey(0)
    k_in, k_par = jax.random.split(key)

    feature_dim, output_dim = 32, 64
    n, h, w = 2, 8, 8

    x = jax.random.normal(k_in, (n, feature_dim, h, w), jnp.float32)   # NCHW
    params = make_params(k_par, feature_dim, output_dim)

    fwd = jax.jit(tiny_phase_correlation_tensor_computation)
    out = fwd(x, params)
    jax.block_until_ready(out)
    assert out.shape == (n, output_dim, h, w), out.shape

    # Loose tolerance: kernel feeds the MXU bf16 operands (f32 accumulate).
    ref = _ref_forward(x, params)
    np.testing.assert_allclose(np.asarray(out), np.asarray(ref),
                               rtol=0.1, atol=0.1)

    print("KERNEL_OK")
</pallas_src>

<mosaic_0001>
module attributes {stable_mosaic.version = 11 : i64} {
  func.func @_tiny_pcc_kernel(%arg0: i32, %arg1: memref<128x32xf32, #tpu.memory_space<vmem>>, %arg2: memref<9x128x32xf32, #tpu.memory_space<vmem>>, %arg3: memref<9x32x32xbf16, #tpu.memory_space<vmem>>, %arg4: memref<9x32x64xbf16, #tpu.memory_space<vmem>>, %arg5: memref<96x128xbf16, #tpu.memory_space<vmem>>, %arg6: memref<16x128xf32, #tpu.memory_space<vmem>>, %arg7: memref<128x128xf32, #tpu.memory_space<vmem>>, %arg8: memref<160x32xf32, #tpu.memory_space<vmem>>) attributes {dimension_semantics = [#tpu.dimension_semantics<arbitrary>], iteration_bounds = array<i64: 1>, scalar_prefetch = 0 : i64, scratch_operands = 1 : i64, tpu.core_type = #tpu.core_type<tc>, window_params = [{pipeline_mode = #tpu.pipeline_mode<synchronous>, transform_indices = @transform_0, window_bounds = array<i64: 128, 32>}, {pipeline_mode = #tpu.pipeline_mode<synchronous>, transform_indices = @transform_1, window_bounds = array<i64: 9, 128, 32>}, {pipeline_mode = #tpu.pipeline_mode<synchronous>, transform_indices = @transform_2, window_bounds = array<i64: 9, 32, 32>}, {pipeline_mode = #tpu.pipeline_mode<synchronous>, transform_indices = @transform_3, window_bounds = array<i64: 9, 32, 64>}, {pipeline_mode = #tpu.pipeline_mode<synchronous>, transform_indices = @transform_4, window_bounds = array<i64: 96, 128>}, {pipeline_mode = #tpu.pipeline_mode<synchronous>, transform_indices = @transform_5, window_bounds = array<i64: 16, 128>}, {pipeline_mode = #tpu.pipeline_mode<synchronous>, transform_indices = @transform_6, window_bounds = array<i64: 128, 128>}]} {
    %c0 = arith.constant 0 : index
    %c0_0 = arith.constant 0 : index
    %0 = vector.load %arg6[%c0, %c0_0] : memref<16x128xf32, #tpu.memory_space<vmem>>, vector<16x128xf32>
    %cst = arith.constant 0.000000e+00 : f32
    %1 = vector.broadcast %cst : f32 to vector<16x32xf32>
    %c0_1 = arith.constant 0 : index
    %c0_2 = arith.constant 0 : index
    %2 = vector.load %arg8[%c0_1, %c0_2] : memref<160x32xf32, #tpu.memory_space<vmem>>, vector<16x32xf32>
    tpu.vector_store %arg8[%c0_1, %c0_2], %1 {strides = array<i32>} : memref<160x32xf32, #tpu.memory_space<vmem>>, vector<16x32xf32>,
    %c144 = arith.constant 144 : index
    %c0_3 = arith.constant 0 : index
    %3 = vector.load %arg8[%c144, %c0_3] : memref<160x32xf32, #tpu.memory_space<vmem>>, vector<16x32xf32>
    tpu.vector_store %arg8[%c144, %c0_3], %1 {strides = array<i32>} : memref<160x32xf32, #tpu.memory_space<vmem>>, vector<16x32xf32>,
    %c0_4 = arith.constant 0 : index
    %c0_5 = arith.constant 0 : index
    %4 = vector.load %arg1[%c0_4, %c0_5] : memref<128x32xf32, #tpu.memory_space<vmem>>, vector<128x32xf32>
    %c16 = arith.constant 16 : index
    %c0_6 = arith.constant 0 : index
    %5 = vector.load %arg8[%c16, %c0_6] : memref<160x32xf32, #tpu.memory_space<vmem>>, vector<128x32xf32>
    tpu.vector_store %arg8[%c16, %c0_6], %4 {strides = array<i32>} : memref<160x32xf32, #tpu.memory_space<vmem>>, vector<128x32xf32>,
    %cst_7 = arith.constant 0.000000e+00 : f32
    %6 = vector.broadcast %cst_7 : f32 to vector<128x32xf32>
    %cst_8 = arith.constant 0.000000e+00 : f32
    %7 = vector.broadcast %cst_8 : f32 to vector<128x32xf32>
    %c7 = arith.constant 7 : index
    %c0_9 = arith.constant 0 : index
    %8 = vector.load %arg8[%c7, %c0_9] : memref<160x32xf32, #tpu.memory_space<vmem>>, vector<128x32xf32>
    %c0_10 = arith.constant 0 : index
    %c0_11 = arith.constant 0 : index
    %c0_12 = arith.constant 0 : index
    %9 = vector.load %arg2[%c0_10, %c0_11, %c0_12] : memref<9x128x32xf32, #tpu.memory_space<vmem>>, vector<1x128x32xf32>
    %10 = vector.shape_cast %9 : vector<1x128x32xf32> to vector<128x32xf32>
    %11 = arith.mulf %8, %10 : vector<128x32xf32>
    %12 = arith.truncf %11 : vector<128x32xf32> to vector<128x32xbf16>
    %c0_13 = arith.constant 0 : index
    %c0_14 = arith.constant 0 : index
    %c0_15 = arith.constant 0 : index
    %13 = vector.load %arg3[%c0_13, %c0_14, %c0_15] : memref<9x32x32xbf16, #tpu.memory_space<vmem>>, vector<1x32x32xbf16>
    %14 = vector.shape_cast %13 : vector<1x32x32xbf16> to vector<32x32xbf16>
    %cst_16 = arith.constant dense<0.000000e+00> : vector<128x32xf32>
    %15 = tpu.matmul %12, %14, %cst_16 {dimension_numbers = #tpu.dot_dimension_numbers<[1], [0], [0], [1], [0, 0, 1, 1], [], []>} : vector<128x32xbf16>, vector<32x32xbf16>, vector<128x32xf32> -> vector<128x32xf32>
    %16 = arith.addf %6, %15 : vector<128x32xf32>
    %17 = vector.extract_strided_slice %0 {offsets = [6, 0], sizes = [1, 32], strides = [1, 1]} : vector<16x128xf32> to vector<1x32xf32>
    %18 = vector.broadcast %17 : vector<1x32xf32> to vector<128x32xf32>
    %19 = arith.mulf %11, %18 : vector<128x32xf32>
    %20 = arith.addf %7, %19 : vector<128x32xf32>
    %c8 = arith.constant 8 : index
    %c0_17 = arith.constant 0 : index
    %21 = vector.load %arg8[%c8, %c0_17] : memref<160x32xf32, #tpu.memory_space<vmem>>, vector<128x32xf32>
    %c1 = arith.constant 1 : index
    %c0_18 = arith.constant 0 : index
    %c0_19 = arith.constant 0 : index
    %22 = vector.load %arg2[%c1, %c0_18, %c0_19] : memref<9x128x32xf32, #tpu.memory_space<vmem>>, vector<1x128x32xf32>
    %23 = vector.shape_cast %22 : vector<1x128x32xf32> to vector<128x32xf32>
    %24 = arith.mulf %21, %23 : vector<128x32xf32>
    %25 = arith.truncf %24 : vector<128x32xf32> to vector<128x32xbf16>
    %c1_20 = arith.constant 1 : index
    %c0_21 = arith.constant 0 : index
    %c0_22 = arith.constant 0 : index
    %26 = vector.load %arg3[%c1_20, %c0_21, %c0_22] : memref<9x32x32xbf16, #tpu.memory_space<vmem>>, vector<1x32x32xbf16>
    %27 = vector.shape_cast %26 : vector<1x32x32xbf16> to vector<32x32xbf16>
    %cst_23 = arith.constant dense<0.000000e+00> : vector<128x32xf32>
    %28 = tpu.matmul %25, %27, %cst_23 {dimension_numbers = #tpu.dot_dimension_numbers<[1], [0], [0], [1], [0, 0, 1, 1], [], []>} : vector<128x32xbf16>, vector<32x32xbf16>, vector<128x32xf32> -> vector<128x32xf32>
    %29 = arith.addf %16, %28 : vector<128x32xf32>
    %30 = vector.extract_strided_slice %0 {offsets = [7, 0], sizes = [1, 32], strides = [1, 1]} : vector<16x128xf32> to vector<1x32xf32>
    %31 = vector.broadcast %30 : vector<1x32xf32> to vector<128x32xf32>
    %32 = arith.mulf %24, %31 : vector<128x32xf32>
    %33 = arith.addf %20, %32 : vector<128x32xf32>
    %c9 = arith.constant 9 : index
    %c0_24 = arith.constant 0 : index
    %34 = vector.load %arg8[%c9, %c0_24] : memref<160x32xf32, #tpu.memory_space<vmem>>, vector<128x32xf32>
    %c2 = arith.constant 2 : index
    %c0_25 = arith.constant 0 : index
    %c0_26 = arith.constant 0 : index
    %35 = vector.load %arg2[%c2, %c0_25, %c0_26] : memref<9x128x32xf32, #tpu.memory_space<vmem>>, vector<1x128x32xf32>
    %36 = vector.shape_cast %35 : vector<1x128x32xf32> to vector<128x32xf32>
    %37 = arith.mulf %34, %36 : vector<128x32xf32>
    %38 = arith.truncf %37 : vector<128x32xf32> to vector<128x32xbf16>
    %c2_27 = arith.constant 2 : index
    %c0_28 = arith.constant 0 : index
    %c0_29 = arith.constant 0 : index
    %39 = vector.load %arg3[%c2_27, %c0_28, %c0_29] : memref<9x32x32xbf16, #tpu.memory_space<vmem>>, vector<1x32x32xbf16>
    %40 = vector.shape_cast %39 : vector<1x32x32xbf16> to vector<32x32xbf16>
    %cst_30 = arith.constant dense<0.000000e+00> : vector<128x32xf32>
    %41 = tpu.matmul %38, %40, %cst_30 {dimension_numbers = #tpu.dot_dimension_numbers<[1], [0], [0], [1], [0, 0, 1, 1], [], []>} : vector<128x32xbf16>, vector<32x32xbf16>, vector<128x32xf32> -> vector<128x32xf32>
    %42 = arith.addf %29, %41 : vector<128x32xf32>
    %43 = vector.extract_strided_slice %0 {offsets = [8, 0], sizes = [1, 32], strides = [1, 1]} : vector<16x128xf32> to vector<1x32xf32>
    %44 = vector.broadcast %43 : vector<1x32xf32> to vector<128x32xf32>
    %45 = arith.mulf %37, %44 : vector<128x32xf32>
    %46 = arith.addf %33, %45 : vector<128x32xf32>
    %c15 = arith.constant 15 : index
    %c0_31 = arith.constant 0 : index
    %47 = vector.load %arg8[%c15, %c0_31] : memref<160x32xf32, #tpu.memory_space<vmem>>, vector<128x32xf32>
    %c3 = arith.constant 3 : index
    %c0_32 = arith.constant 0 : index
    %c0_33 = arith.constant 0 : index
    %48 = vector.load %arg2[%c3, %c0_32, %c0_33] : memref<9x128x32xf32, #tpu.memory_space<vmem>>, vector<1x128x32xf32>
    %49 = vector.shape_cast %48 : vector<1x128x32xf32> to vector<128x32xf32>
    %50 = arith.mulf %47, %49 : vector<128x32xf32>
    %51 = arith.truncf %50 : vector<128x32xf32> to vector<128x32xbf16>
    %c3_34 = arith.constant 3 : index
    %c0_35 = arith.constant 0 : index
    %c0_36 = arith.constant 0 : index
    %52 = vector.load %arg3[%c3_34, %c0_35, %c0_36] : memref<9x32x32xbf16, #tpu.memory_space<vmem>>, vector<1x32x32xbf16>
    %53 = vector.shape_cast %52 : vector<1x32x32xbf16> to vector<32x32xbf16>
    %cst_37 = arith.constant dense<0.000000e+00> : vector<128x32xf32>
    %54 = tpu.matmul %51, %53, %cst_37 {dimension_numbers = #tpu.dot_dimension_numbers<[1], [0], [0], [1], [0, 0, 1, 1], [], []>} : vector<128x32xbf16>, vector<32x32xbf16>, vector<128x32xf32> -> vector<128x32xf32>
    %55 = arith.addf %42, %54 : vector<128x32xf32>
    %56 = vector.extract_strided_slice %0 {offsets = [9, 0], sizes = [1, 32], strides = [1, 1]} : vector<16x128xf32> to vector<1x32xf32>
    %57 = vector.broadcast %56 : vector<1x32xf32> to vector<128x32xf32>
    %58 = arith.mulf %50, %57 : vector<128x32xf32>
    %59 = arith.addf %46, %58 : vector<128x32xf32>
    %c16_38 = arith.constant 16 : index
    %c0_39 = arith.constant 0 : index
    %60 = vector.load %arg8[%c16_38, %c0_39] : memref<160x32xf32, #tpu.memory_space<vmem>>, vector<128x32xf32>
    %c4 = arith.constant 4 : index
    %c0_40 = arith.constant 0 : index
    %c0_41 = arith.constant 0 : index
    %61 = vector.load %arg2[%c4, %c0_40, %c0_41] : memref<9x128x32xf32, #tpu.memory_space<vmem>>, vector<1x128x32xf32>
    %62 = vector.shape_cast %61 : vector<1x128x32xf32> to vector<128x32xf32>
    %63 = arith.mulf %60, %62 : vector<128x32xf32>
    %64 = arith.truncf %63 : vector<128x32xf32> to vector<128x32xbf16>
    %c4_42 = arith.constant 4 : index
    %c0_43 = arith.constant 0 : index
    %c0_44 = arith.constant 0 : index
    %65 = vector.load %arg3[%c4_42, %c0_43, %c0_44] : memref<9x32x32xbf16, #tpu.memory_space<vmem>>, vector<1x32x32xbf16>
    %66 = vector.shape_cast %65 : vector<1x32x32xbf16> to vector<32x32xbf16>
    %cst_45 = arith.constant dense<0.000000e+00> : vector<128x32xf32>
    %67 = tpu.matmul %64, %66, %cst_45 {dimension_numbers = #tpu.dot_dimension_numbers<[1], [0], [0], [1], [0, 0, 1, 1], [], []>} : vector<128x32xbf16>, vector<32x32xbf16>, vector<128x32xf32> -> vector<128x32xf32>
    %68 = arith.addf %55, %67 : vector<128x32xf32>
    %69 = vector.extract_strided_slice %0 {offsets = [10, 0], sizes = [1, 32], strides = [1, 1]} : vector<16x128xf32> to vector<1x32xf32>
    %70 = vector.broadcast %69 : vector<1x32xf32> to vector<128x32xf32>
    %71 = arith.mulf %63, %70 : vector<128x32xf32>
    %72 = arith.addf %59, %71 : vector<128x32xf32>
    %c17 = arith.constant 17 : index
    %c0_46 = arith.constant 0 : index
    %73 = vector.load %arg8[%c17, %c0_46] : memref<160x32xf32, #tpu.memory_space<vmem>>, vector<128x32xf32>
    %c5 = arith.constant 5 : index
    %c0_47 = arith.constant 0 : index
    %c0_48 = arith.constant 0 : index
    %74 = vector.load %arg2[%c5, %c0_47, %c0_48] : memref<9x128x32xf32, #tpu.memory_space<vmem>>, vector<1x128x32xf32>
    %75 = vector.shape_cast %74 : vector<1x128x32xf32> to vector<128x32xf32>
    %76 = arith.mulf %73, %75 : vector<128x32xf32>
    %77 = arith.truncf %76 : vector<128x32xf32> to vector<128x32xbf16>
    %c5_49 = arith.constant 5 : index
    %c0_50 = arith.constant 0 : index
    %c0_51 = arith.constant 0 : index
    %78 = vector.load %arg3[%c5_49, %c0_50, %c0_51] : memref<9x32x32xbf16, #tpu.memory_space<vmem>>, vector<1x32x32xbf16>
    %79 = vector.shape_cast %78 : vector<1x32x32xbf16> to vector<32x32xbf16>
    %cst_52 = arith.constant dense<0.000000e+00> : vector<128x32xf32>
    %80 = tpu.matmul %77, %79, %cst_52 {dimension_numbers = #tpu.dot_dimension_numbers<[1], [0], [0], [1], [0, 0, 1, 1], [], []>} : vector<128x32xbf16>, vector<32x32xbf16>, vector<128x32xf32> -> vector<128x32xf32>
    %81 = arith.addf %68, %80 : vector<128x32xf32>
    %82 = vector.extract_strided_slice %0 {offsets = [11, 0], sizes = [1, 32], strides = [1, 1]} : vector<16x128xf32> to vector<1x32xf32>
    %83 = vector.broadcast %82 : vector<1x32xf32> to vector<128x32xf32>
    %84 = arith.mulf %76, %83 : vector<128x32xf32>
    %85 = arith.addf %72, %84 : vector<128x32xf32>
    %c23 = arith.constant 23 : index
    %c0_53 = arith.constant 0 : index
    %86 = vector.load %arg8[%c23, %c0_53] : memref<160x32xf32, #tpu.memory_space<vmem>>, vector<128x32xf32>
    %c6 = arith.constant 6 : index
    %c0_54 = arith.constant 0 : index
    %c0_55 = arith.constant 0 : index
    %87 = vector.load %arg2[%c6, %c0_54, %c0_55] : memref<9x128x32xf32, #tpu.memory_space<vmem>>, vector<1x128x32xf32>
    %88 = vector.shape_cast %87 : vector<1x128x32xf32> to vector<128x32xf32>
    %89 = arith.mulf %86, %88 : vector<128x32xf32>
    %90 = arith.truncf %89 : vector<128x32xf32> to vector<128x32xbf16>
    %c6_56 = arith.constant 6 : index
    %c0_57 = arith.constant 0 : index
    %c0_58 = arith.constant 0 : index
    %91 = vector.load %arg3[%c6_56, %c0_57, %c0_58] : memref<9x32x32xbf16, #tpu.memory_space<vmem>>, vector<1x32x32xbf16>
    %92 = vector.shape_cast %91 : vector<1x32x32xbf16> to vector<32x32xbf16>
    %cst_59 = arith.constant dense<0.000000e+00> : vector<128x32xf32>
    %93 = tpu.matmul %90, %92, %cst_59 {dimension_numbers = #tpu.dot_dimension_numbers<[1], [0], [0], [1], [0, 0, 1, 1], [], []>} : vector<128x32xbf16>, vector<32x32xbf16>, vector<128x32xf32> -> vector<128x32xf32>
    %94 = arith.addf %81, %93 : vector<128x32xf32>
    %95 = vector.extract_strided_slice %0 {offsets = [12, 0], sizes = [1, 32], strides = [1, 1]} : vector<16x128xf32> to vector<1x32xf32>
    %96 = vector.broadcast %95 : vector<1x32xf32> to vector<128x32xf32>
    %97 = arith.mulf %89, %96 : vector<128x32xf32>
    %98 = arith.addf %85, %97 : vector<128x32xf32>
    %c24 = arith.constant 24 : index
    %c0_60 = arith.constant 0 : index
    %99 = vector.load %arg8[%c24, %c0_60] : memref<160x32xf32, #tpu.memory_space<vmem>>, vector<128x32xf32>
    %c7_61 = arith.constant 7 : index
    %c0_62 = arith.constant 0 : index
    %c0_63 = arith.constant 0 : index
    %100 = vector.load %arg2[%c7_61, %c0_62, %c0_63] : memref<9x128x32xf32, #tpu.memory_space<vmem>>, vector<1x128x32xf32>
    %101 = vector.shape_cast %100 : vector<1x128x32xf32> to vector<128x32xf32>
    %102 = arith.mulf %99, %101 : vector<128x32xf32>
    %103 = arith.truncf %102 : vector<128x32xf32> to vector<128x32xbf16>
    %c7_64 = arith.constant 7 : index
    %c0_65 = arith.constant 0 : index
    %c0_66 = arith.constant 0 : index
    %104 = vector.load %arg3[%c7_64, %c0_65, %c0_66] : memref<9x32x32xbf16, #tpu.memory_space<vmem>>, vector<1x32x32xbf16>
    %105 = vector.shape_cast %104 : vector<1x32x32xbf16> to vector<32x32xbf16>
    %cst_67 = arith.constant dense<0.000000e+00> : vector<128x32xf32>
    %106 = tpu.matmul %103, %105, %cst_67 {dimension_numbers = #tpu.dot_dimension_numbers<[1], [0], [0], [1], [0, 0, 1, 1], [], []>} : vector<128x32xbf16>, vector<32x32xbf16>, vector<128x32xf32> -> vector<128x32xf32>
    %107 = arith.addf %94, %106 : vector<128x32xf32>
    %108 = vector.extract_strided_slice %0 {offsets = [13, 0], sizes = [1, 32], strides = [1, 1]} : vector<16x128xf32> to vector<1x32xf32>
    %109 = vector.broadcast %108 : vector<1x32xf32> to vector<128x32xf32>
    %110 = arith.mulf %102, %109 : vector<128x32xf32>
    %111 = arith.addf %98, %110 : vector<128x32xf32>
    %c25 = arith.constant 25 : index
    %c0_68 = arith.constant 0 : index
    %112 = vector.load %arg8[%c25, %c0_68] : memref<160x32xf32, #tpu.memory_space<vmem>>, vector<128x32xf32>
    %c8_69 = arith.constant 8 : index
    %c0_70 = arith.constant 0 : index
    %c0_71 = arith.constant 0 : index
    %113 = vector.load %arg2[%c8_69, %c0_70, %c0_71] : memref<9x128x32xf32, #tpu.memory_space<vmem>>, vector<1x128x32xf32>
    %114 = vector.shape_cast %113 : vector<1x128x32xf32> to vector<128x32xf32>
    %115 = arith.mulf %112, %114 : vector<128x32xf32>
    %116 = arith.truncf %115 : vector<128x32xf32> to vector<128x32xbf16>
    %c8_72 = arith.constant 8 : index
    %c0_73 = arith.constant 0 : index
    %c0_74 = arith.constant 0 : index
    %117 = vector.load %arg3[%c8_72, %c0_73, %c0_74] : memref<9x32x32xbf16, #tpu.memory_space<vmem>>, vector<1x32x32xbf16>
    %118 = vector.shape_cast %117 : vector<1x32x32xbf16> to vector<32x32xbf16>
    %cst_75 = arith.constant dense<0.000000e+00> : vector<128x32xf32>
    %119 = tpu.matmul %116, %118, %cst_75 {dimension_numbers = #tpu.dot_dimension_numbers<[1], [0], [0], [1], [0, 0, 1, 1], [], []>} : vector<128x32xbf16>, vector<32x32xbf16>, vector<128x32xf32> -> vector<128x32xf32>
    %120 = arith.addf %107, %119 : vector<128x32xf32>
    %121 = vector.extract_strided_slice %0 {offsets = [14, 0], sizes = [1, 32], strides = [1, 1]} : vector<16x128xf32> to vector<1x32xf32>
    %122 = vector.broadcast %121 : vector<1x32xf32> to vector<128x32xf32>
    %123 = arith.mulf %115, %122 : vector<128x32xf32>
    %124 = arith.addf %111, %123 : vector<128x32xf32>
    %125 = vector.extract_strided_slice %0 {offsets = [0, 0], sizes = [1, 32], strides = [1, 1]} : vector<16x128xf32> to vector<1x32xf32>
    %126 = vector.extract_strided_slice %0 {offsets = [1, 0], sizes = [1, 32], strides = [1, 1]} : vector<16x128xf32> to vector<1x32xf32>
    %cst_76 = arith.constant dense<0.000000e+00> : vector<32xf32>
    %127 = vector.multi_reduction <add>, %120, %cst_76 [0] : vector<128x32xf32> to vector<32xf32>
    %128 = vector.shape_cast %127 : vector<32xf32> to vector<1x32xf32>
    %cst_77 = arith.constant 7.812500e-03 : f32
    %129 = vector.broadcast %cst_77 : f32 to vector<1x32xf32>
    %130 = arith.mulf %128, %129 : vector<1x32xf32>
    %131 = arith.mulf %120, %120 : vector<128x32xf32>
    %cst_78 = arith.constant dense<0.000000e+00> : vector<32xf32>
    %132 = vector.multi_reduction <add>, %131, %cst_78 [0] : vector<128x32xf32> to vector<32xf32>
    %133 = vector.shape_cast %132 : vector<32xf32> to vector<1x32xf32>
    %cst_79 = arith.constant 7.812500e-03 : f32
    %134 = vector.broadcast %cst_79 : f32 to vector<1x32xf32>
    %135 = arith.mulf %133, %134 : vector<1x32xf32>
    %136 = arith.mulf %130, %130 : vector<1x32xf32>
    %137 = arith.subf %135, %136 : vector<1x32xf32>
    %cst_80 = arith.constant 9.99999974E-6 : f32
    %138 = vector.broadcast %cst_80 : f32 to vector<1x32xf32>
    %139 = arith.addf %137, %138 : vector<1x32xf32>
    %140 = math.rsqrt %139 : vector<1x32xf32>
    %141 = arith.mulf %125, %140 : vector<1x32xf32>
    %142 = arith.mulf %130, %141 : vector<1x32xf32>
    %143 = arith.subf %126, %142 : vector<1x32xf32>
    %144 = vector.broadcast %141 : vector<1x32xf32> to vector<128x32xf32>
    %145 = arith.mulf %120, %144 : vector<128x32xf32>
    %146 = vector.broadcast %143 : vector<1x32xf32> to vector<128x32xf32>
    %147 = arith.addf %145, %146 : vector<128x32xf32>
    %cst_81 = arith.constant 0.000000e+00 : f32
    %148 = vector.broadcast %cst_81 : f32 to vector<128x32xf32>
    %149 = arith.maximumf %147, %148 : vector<128x32xf32>
    %150 = vector.extract_strided_slice %0 {offsets = [2, 0], sizes = [1, 32], strides = [1, 1]} : vector<16x128xf32> to vector<1x32xf32>
    %151 = vector.extract_strided_slice %0 {offsets = [3, 0], sizes = [1, 32], strides = [1, 1]} : vector<16x128xf32> to vector<1x32xf32>
    %cst_82 = arith.constant dense<0.000000e+00> : vector<32xf32>
    %152 = vector.multi_reduction <add>, %124, %cst_82 [0] : vector<128x32xf32> to vector<32xf32>
    %153 = vector.shape_cast %152 : vector<32xf32> to vector<1x32xf32>
    %cst_83 = arith.constant 7.812500e-03 : f32
    %154 = vector.broadcast %cst_83 : f32 to vector<1x32xf32>
    %155 = arith.mulf %153, %154 : vector<1x32xf32>
    %156 = arith.mulf %124, %124 : vector<128x32xf32>
    %cst_84 = arith.constant dense<0.000000e+00> : vector<32xf32>
    %157 = vector.multi_reduction <add>, %156, %cst_84 [0] : vector<128x32xf32> to vector<32xf32>
    %158 = vector.shape_cast %157 : vector<32xf32> to vector<1x32xf32>
    %cst_85 = arith.constant 7.812500e-03 : f32
    %159 = vector.broadcast %cst_85 : f32 to vector<1x32xf32>
    %160 = arith.mulf %158, %159 : vector<1x32xf32>
    %161 = arith.mulf %155, %155 : vector<1x32xf32>
    %162 = arith.subf %160, %161 : vector<1x32xf32>
    %cst_86 = arith.constant 9.99999974E-6 : f32
    %163 = vector.broadcast %cst_86 : f32 to vector<1x32xf32>
    %164 = arith.addf %162, %163 : vector<1x32xf32>
    %165 = math.rsqrt %164 : vector<1x32xf32>
    %166 = arith.mulf %150, %165 : vector<1x32xf32>
    %167 = arith.mulf %155, %166 : vector<1x32xf32>
    %168 = arith.subf %151, %167 : vector<1x32xf32>
    %169 = vector.broadcast %166 : vector<1x32xf32> to vector<128x32xf32>
    %170 = arith.mulf %124, %169 : vector<128x32xf32>
    %171 = vector.broadcast %168 : vector<1x32xf32> to vector<128x32xf32>
    %172 = arith.addf %170, %171 : vector<128x32xf32>
    %cst_87 = arith.constant 0.000000e+00 : f32
    %173 = vector.broadcast %cst_87 : f32 to vector<128x32xf32>
    %174 = arith.maximumf %172, %173 : vector<128x32xf32>
    %c16_88 = arith.constant 16 : index
    %c0_89 = arith.constant 0 : index
    %175 = vector.load %arg8[%c16_88, %c0_89] : memref<160x32xf32, #tpu.memory_space<vmem>>, vector<128x32xf32>
    tpu.vector_store %arg8[%c16_88, %c0_89], %149 {strides = array<i32>} : memref<160x32xf32, #tpu.memory_space<vmem>>, vector<128x32xf32>,
    %cst_90 = arith.constant 0.000000e+00 : f32
    %176 = vector.broadcast %cst_90 : f32 to vector<128x64xf32>
    %c7_91 = arith.constant 7 : index
    %c0_92 = arith.constant 0 : index
    %177 = vector.load %arg8[%c7_91, %c0_92] : memref<160x32xf32, #tpu.memory_space<vmem>>, vector<128x32xf32>
    %c0_93 = arith.constant 0 : index
    %c0_94 = arith.constant 0 : index
    %c0_95 = arith.constant 0 : index
    %178 = vector.load %arg2[%c0_93, %c0_94, %c0_95] : memref<9x128x32xf32, #tpu.memory_space<vmem>>, vector<1x128x32xf32>
    %179 = vector.shape_cast %178 : vector<1x128x32xf32> to vector<128x32xf32>
    %180 = arith.mulf %177, %179 : vector<128x32xf32>
    %181 = arith.truncf %180 : vector<128x32xf32> to vector<128x32xbf16>
    %c0_96 = arith.constant 0 : index
    %c0_97 = arith.constant 0 : index
    %c0_98 = arith.constant 0 : index
    %182 = vector.load %arg4[%c0_96, %c0_97, %c0_98] : memref<9x32x64xbf16, #tpu.memory_space<vmem>>, vector<1x32x64xbf16>
    %183 = vector.shape_cast %182 : vector<1x32x64xbf16> to vector<32x64xbf16>
    %cst_99 = arith.constant dense<0.000000e+00> : vector<128x64xf32>
    %184 = tpu.matmul %181, %183, %cst_99 {dimension_numbers = #tpu.dot_dimension_numbers<[1], [0], [0], [1], [0, 0, 1, 1], [], []>} : vector<128x32xbf16>, vector<32x64xbf16>, vector<128x64xf32> -> vector<128x64xf32>
    %185 = arith.addf %176, %184 : vector<128x64xf32>
    %c8_100 = arith.constant 8 : index
    %c0_101 = arith.constant 0 : index
    %186 = vector.load %arg8[%c8_100, %c0_101] : memref<160x32xf32, #tpu.memory_space<vmem>>, vector<128x32xf32>
    %c1_102 = arith.constant 1 : index
    %c0_103 = arith.constant 0 : index
    %c0_104 = arith.constant 0 : index
    %187 = vector.load %arg2[%c1_102, %c0_103, %c0_104] : memref<9x128x32xf32, #tpu.memory_space<vmem>>, vector<1x128x32xf32>
    %188 = vector.shape_cast %187 : vector<1x128x32xf32> to vector<128x32xf32>
    %189 = arith.mulf %186, %188 : vector<128x32xf32>
    %190 = arith.truncf %189 : vector<128x32xf32> to vector<128x32xbf16>
    %c1_105 = arith.constant 1 : index
    %c0_106 = arith.constant 0 : index
    %c0_107 = arith.constant 0 : index
    %191 = vector.load %arg4[%c1_105, %c0_106, %c0_107] : memref<9x32x64xbf16, #tpu.memory_space<vmem>>, vector<1x32x64xbf16>
    %192 = vector.shape_cast %191 : vector<1x32x64xbf16> to vector<32x64xbf16>
    %cst_108 = arith.constant dense<0.000000e+00> : vector<128x64xf32>
    %193 = tpu.matmul %190, %192, %cst_108 {dimension_numbers = #tpu.dot_dimension_numbers<[1], [0], [0], [1], [0, 0, 1, 1], [], []>} : vector<128x32xbf16>, vector<32x64xbf16>, vector<128x64xf32> -> vector<128x64xf32>
    %194 = arith.addf %185, %193 : vector<128x64xf32>
    %c9_109 = arith.constant 9 : index
    %c0_110 = arith.constant 0 : index
    %195 = vector.load %arg8[%c9_109, %c0_110] : memref<160x32xf32, #tpu.memory_space<vmem>>, vector<128x32xf32>
    %c2_111 = arith.constant 2 : index
    %c0_112 = arith.constant 0 : index
    %c0_113 = arith.constant 0 : index
    %196 = vector.load %arg2[%c2_111, %c0_112, %c0_113] : memref<9x128x32xf32, #tpu.memory_space<vmem>>, vector<1x128x32xf32>
    %197 = vector.shape_cast %196 : vector<1x128x32xf32> to vector<128x32xf32>
    %198 = arith.mulf %195, %197 : vector<128x32xf32>
    %199 = arith.truncf %198 : vector<128x32xf32> to vector<128x32xbf16>
    %c2_114 = arith.constant 2 : index
    %c0_115 = arith.constant 0 : index
    %c0_116 = arith.constant 0 : index
    %200 = vector.load %arg4[%c2_114, %c0_115, %c0_116] : memref<9x32x64xbf16, #tpu.memory_space<vmem>>, vector<1x32x64xbf16>
    %201 = vector.shape_cast %200 : vector<1x32x64xbf16> to vector<32x64xbf16>
    %cst_117 = arith.constant dense<0.000000e+00> : vector<128x64xf32>
    %202 = tpu.matmul %199, %201, %cst_117 {dimension_numbers = #tpu.dot_dimension_numbers<[1], [0], [0], [1], [0, 0, 1, 1], [], []>} : vector<128x32xbf16>, vector<32x64xbf16>, vector<128x64xf32> -> vector<128x64xf32>
    %203 = arith.addf %194, %202 : vector<128x64xf32>
    %c15_118 = arith.constant 15 : index
    %c0_119 = arith.constant 0 : index
    %204 = vector.load %arg8[%c15_118, %c0_119] : memref<160x32xf32, #tpu.memory_space<vmem>>, vector<128x32xf32>
    %c3_120 = arith.constant 3 : index
    %c0_121 = arith.constant 0 : index
    %c0_122 = arith.constant 0 : index
    %205 = vector.load %arg2[%c3_120, %c0_121, %c0_122] : memref<9x128x32xf32, #tpu.memory_space<vmem>>, vector<1x128x32xf32>
    %206 = vector.shape_cast %205 : vector<1x128x32xf32> to vector<128x32xf32>
    %207 = arith.mulf %204, %206 : vector<128x32xf32>
    %208 = arith.truncf %207 : vector<128x32xf32> to vector<128x32xbf16>
    %c3_123 = arith.constant 3 : index
    %c0_124 = arith.constant 0 : index
    %c0_125 = arith.constant 0 : index
    %209 = vector.load %arg4[%c3_123, %c0_124, %c0_125] : memref<9x32x64xbf16, #tpu.memory_space<vmem>>, vector<1x32x64xbf16>
    %210 = vector.shape_cast %209 : vector<1x32x64xbf16> to vector<32x64xbf16>
    %cst_126 = arith.constant dense<0.000000e+00> : vector<128x64xf32>
    %211 = tpu.matmul %208, %210, %cst_126 {dimension_numbers = #tpu.dot_dimension_numbers<[1], [0], [0], [1], [0, 0, 1, 1], [], []>} : vector<128x32xbf16>, vector<32x64xbf16>, vector<128x64xf32> -> vector<128x64xf32>
    %212 = arith.addf %203, %211 : vector<128x64xf32>
    %c16_127 = arith.constant 16 : index
    %c0_128 = arith.constant 0 : index
    %213 = vector.load %arg8[%c16_127, %c0_128] : memref<160x32xf32, #tpu.memory_space<vmem>>, vector<128x32xf32>
    %c4_129 = arith.constant 4 : index
    %c0_130 = arith.constant 0 : index
    %c0_131 = arith.constant 0 : index
    %214 = vector.load %arg2[%c4_129, %c0_130, %c0_131] : memref<9x128x32xf32, #tpu.memory_space<vmem>>, vector<1x128x32xf32>
    %215 = vector.shape_cast %214 : vector<1x128x32xf32> to vector<128x32xf32>
    %216 = arith.mulf %213, %215 : vector<128x32xf32>
    %217 = arith.truncf %216 : vector<128x32xf32> to vector<128x32xbf16>
    %c4_132 = arith.constant 4 : index
    %c0_133 = arith.constant 0 : index
    %c0_134 = arith.constant 0 : index
    %218 = vector.load %arg4[%c4_132, %c0_133, %c0_134] : memref<9x32x64xbf16, #tpu.memory_space<vmem>>, vector<1x32x64xbf16>
    %219 = vector.shape_cast %218 : vector<1x32x64xbf16> to vector<32x64xbf16>
    %cst_135 = arith.constant dense<0.000000e+00> : vector<128x64xf32>
    %220 = tpu.matmul %217, %219, %cst_135 {dimension_numbers = #tpu.dot_dimension_numbers<[1], [0], [0], [1], [0, 0, 1, 1], [], []>} : vector<128x32xbf16>, vector<32x64xbf16>, vector<128x64xf32> -> vector<128x64xf32>
    %221 = arith.addf %212, %220 : vector<128x64xf32>
    %c17_136 = arith.constant 17 : index
    %c0_137 = arith.constant 0 : index
    %222 = vector.load %arg8[%c17_136, %c0_137] : memref<160x32xf32, #tpu.memory_space<vmem>>, vector<128x32xf32>
    %c5_138 = arith.constant 5 : index
    %c0_139 = arith.constant 0 : index
    %c0_140 = arith.constant 0 : index
    %223 = vector.load %arg2[%c5_138, %c0_139, %c0_140] : memref<9x128x32xf32, #tpu.memory_space<vmem>>, vector<1x128x32xf32>
    %224 = vector.shape_cast %223 : vector<1x128x32xf32> to vector<128x32xf32>
    %225 = arith.mulf %222, %224 : vector<128x32xf32>
    %226 = arith.truncf %225 : vector<128x32xf32> to vector<128x32xbf16>
    %c5_141 = arith.constant 5 : index
    %c0_142 = arith.constant 0 : index
    %c0_143 = arith.constant 0 : index
    %227 = vector.load %arg4[%c5_141, %c0_142, %c0_143] : memref<9x32x64xbf16, #tpu.memory_space<vmem>>, vector<1x32x64xbf16>
    %228 = vector.shape_cast %227 : vector<1x32x64xbf16> to vector<32x64xbf16>
    %cst_144 = arith.constant dense<0.000000e+00> : vector<128x64xf32>
    %229 = tpu.matmul %226, %228, %cst_144 {dimension_numbers = #tpu.dot_dimension_numbers<[1], [0], [0], [1], [0, 0, 1, 1], [], []>} : vector<128x32xbf16>, vector<32x64xbf16>, vector<128x64xf32> -> vector<128x64xf32>
    %230 = arith.addf %221, %229 : vector<128x64xf32>
    %c23_145 = arith.constant 23 : index
    %c0_146 = arith.constant 0 : index
    %231 = vector.load %arg8[%c23_145, %c0_146] : memref<160x32xf32, #tpu.memory_space<vmem>>, vector<128x32xf32>
    %c6_147 = arith.constant 6 : index
    %c0_148 = arith.constant 0 : index
    %c0_149 = arith.constant 0 : index
    %232 = vector.load %arg2[%c6_147, %c0_148, %c0_149] : memref<9x128x32xf32, #tpu.memory_space<vmem>>, vector<1x128x32xf32>
    %233 = vector.shape_cast %232 : vector<1x128x32xf32> to vector<128x32xf32>
    %234 = arith.mulf %231, %233 : vector<128x32xf32>
    %235 = arith.truncf %234 : vector<128x32xf32> to vector<128x32xbf16>
    %c6_150 = arith.constant 6 : index
    %c0_151 = arith.constant 0 : index
    %c0_152 = arith.constant 0 : index
    %236 = vector.load %arg4[%c6_150, %c0_151, %c0_152] : memref<9x32x64xbf16, #tpu.memory_space<vmem>>, vector<1x32x64xbf16>
    %237 = vector.shape_cast %236 : vector<1x32x64xbf16> to vector<32x64xbf16>
    %cst_153 = arith.constant dense<0.000000e+00> : vector<128x64xf32>
    %238 = tpu.matmul %235, %237, %cst_153 {dimension_numbers = #tpu.dot_dimension_numbers<[1], [0], [0], [1], [0, 0, 1, 1], [], []>} : vector<128x32xbf16>, vector<32x64xbf16>, vector<128x64xf32> -> vector<128x64xf32>
    %239 = arith.addf %230, %238 : vector<128x64xf32>
    %c24_154 = arith.constant 24 : index
    %c0_155 = arith.constant 0 : index
    %240 = vector.load %arg8[%c24_154, %c0_155] : memref<160x32xf32, #tpu.memory_space<vmem>>, vector<128x32xf32>
    %c7_156 = arith.constant 7 : index
    %c0_157 = arith.constant 0 : index
    %c0_158 = arith.constant 0 : index
    %241 = vector.load %arg2[%c7_156, %c0_157, %c0_158] : memref<9x128x32xf32, #tpu.memory_space<vmem>>, vector<1x128x32xf32>
    %242 = vector.shape_cast %241 : vector<1x128x32xf32> to vector<128x32xf32>
    %243 = arith.mulf %240, %242 : vector<128x32xf32>
    %244 = arith.truncf %243 : vector<128x32xf32> to vector<128x32xbf16>
    %c7_159 = arith.constant 7 : index
    %c0_160 = arith.constant 0 : index
    %c0_161 = arith.constant 0 : index
    %245 = vector.load %arg4[%c7_159, %c0_160, %c0_161] : memref<9x32x64xbf16, #tpu.memory_space<vmem>>, vector<1x32x64xbf16>
    %246 = vector.shape_cast %245 : vector<1x32x64xbf16> to vector<32x64xbf16>
    %cst_162 = arith.constant dense<0.000000e+00> : vector<128x64xf32>
    %247 = tpu.matmul %244, %246, %cst_162 {dimension_numbers = #tpu.dot_dimension_numbers<[1], [0], [0], [1], [0, 0, 1, 1], [], []>} : vector<128x32xbf16>, vector<32x64xbf16>, vector<128x64xf32> -> vector<128x64xf32>
    %248 = arith.addf %239, %247 : vector<128x64xf32>
    %c25_163 = arith.constant 25 : index
    %c0_164 = arith.constant 0 : index
    %249 = vector.load %arg8[%c25_163, %c0_164] : memref<160x32xf32, #tpu.memory_space<vmem>>, vector<128x32xf32>
    %c8_165 = arith.constant 8 : index
    %c0_166 = arith.constant 0 : index
    %c0_167 = arith.constant 0 : index
    %250 = vector.load %arg2[%c8_165, %c0_166, %c0_167] : memref<9x128x32xf32, #tpu.memory_space<vmem>>, vector<1x128x32xf32>
    %251 = vector.shape_cast %250 : vector<1x128x32xf32> to vector<128x32xf32>
    %252 = arith.mulf %249, %251 : vector<128x32xf32>
    %253 = arith.truncf %252 : vector<128x32xf32> to vector<128x32xbf16>
    %c8_168 = arith.constant 8 : index
    %c0_169 = arith.constant 0 : index
    %c0_170 = arith.constant 0 : index
    %254 = vector.load %arg4[%c8_168, %c0_169, %c0_170] : memref<9x32x64xbf16, #tpu.memory_space<vmem>>, vector<1x32x64xbf16>
    %255 = vector.shape_cast %254 : vector<1x32x64xbf16> to vector<32x64xbf16>
    %cst_171 = arith.constant dense<0.000000e+00> : vector<128x64xf32>
    %256 = tpu.matmul %253, %255, %cst_171 {dimension_numbers = #tpu.dot_dimension_numbers<[1], [0], [0], [1], [0, 0, 1, 1], [], []>} : vector<128x32xbf16>, vector<32x64xbf16>, vector<128x64xf32> -> vector<128x64xf32>
    %257 = arith.addf %248, %256 : vector<128x64xf32>
    %258 = vector.extract_strided_slice %0 {offsets = [4, 0], sizes = [1, 64], strides = [1, 1]} : vector<16x128xf32> to vector<1x64xf32>
    %259 = vector.broadcast %258 : vector<1x64xf32> to vector<128x64xf32>
    %260 = arith.addf %257, %259 : vector<128x64xf32>
    %261 = arith.truncf %260 : vector<128x64xf32> to vector<128x64xbf16>
    %c0_172 = arith.constant 0 : index
    %c0_173 = arith.constant 0 : index
    %262 = vector.load %arg5[%c0_172, %c0_173] : memref<96x128xbf16, #tpu.memory_space<vmem>>, vector<64x128xbf16>
    %cst_174 = arith.constant dense<0.000000e+00> : vector<128x128xf32>
    %263 = tpu.matmul %261, %262, %cst_174 {dimension_numbers = #tpu.dot_dimension_numbers<[1], [0], [0], [1], [0, 0, 1, 1], [], []>} : vector<128x64xbf16>, vector<64x128xbf16>, vector<128x128xf32> -> vector<128x128xf32>
    %264 = arith.truncf %174 : vector<128x32xf32> to vector<128x32xbf16>
    %c64 = arith.constant 64 : index
    %c0_175 = arith.constant 0 : index
    %265 = vector.load %arg5[%c64, %c0_175] : memref<96x128xbf16, #tpu.memory_space<vmem>>, vector<32x128xbf16>
    %cst_176 = arith.constant dense<0.000000e+00> : vector<128x128xf32>
    %266 = tpu.matmul %264, %265, %cst_176 {dimension_numbers = #tpu.dot_dimension_numbers<[1], [0], [0], [1], [0, 0, 1, 1], [], []>} : vector<128x32xbf16>, vector<32x128xbf16>, vector<128x128xf32> -> vector<128x128xf32>
    %267 = arith.addf %263, %266 : vector<128x128xf32>
    %268 = vector.extract_strided_slice %0 {offsets = [5, 0], sizes = [1, 128], strides = [1, 1]} : vector<16x128xf32> to vector<1x128xf32>
    %269 = vector.broadcast %268 : vector<1x128xf32> to vector<128x128xf32>
    %270 = arith.addf %267, %269 : vector<128x128xf32>
    %c0_177 = arith.constant 0 : index
    %c0_178 = arith.constant 0 : index
    %271 = vector.load %arg7[%c0_177, %c0_178] : memref<128x128xf32, #tpu.memory_space<vmem>>, vector<128x128xf32>
    tpu.vector_store %arg7[%c0_177, %c0_178], %270 {strides = array<i32>} : memref<128x128xf32, #tpu.memory_space<vmem>>, vector<128x128xf32>,
    return
  }
  func.func @transform_0(%arg0: i32) -> (i32, i32) {
    %c0_i32 = arith.constant 0 : i32
    %c0_i32_0 = arith.constant 0 : i32
    %c0_i32_1 = arith.constant 0 : i32
    return %c0_i32, %c0_i32_0 : i32, i32
  }
  func.func @transform_1(%arg0: i32) -> (i32, i32, i32) {
    %c0_i32 = arith.constant 0 : i32
    %c0_i32_0 = arith.constant 0 : i32
    %c0_i32_1 = arith.constant 0 : i32
    %c0_i32_2 = arith.constant 0 : i32
    return %c0_i32, %c0_i32_0, %c0_i32_1 : i32, i32, i32
  }
  func.func @transform_2(%arg0: i32) -> (i32, i32, i32) {
    %c0_i32 = arith.constant 0 : i32
    %c0_i32_0 = arith.constant 0 : i32
    %c0_i32_1 = arith.constant 0 : i32
    %c0_i32_2 = arith.constant 0 : i32
    return %c0_i32, %c0_i32_0, %c0_i32_1 : i32, i32, i32
  }
  func.func @transform_3(%arg0: i32) -> (i32, i32, i32) {
    %c0_i32 = arith.constant 0 : i32
    %c0_i32_0 = arith.constant 0 : i32
    %c0_i32_1 = arith.constant 0 : i32
    %c0_i32_2 = arith.constant 0 : i32
    return %c0_i32, %c0_i32_0, %c0_i32_1 : i32, i32, i32
  }
  func.func @transform_4(%arg0: i32) -> (i32, i32) {
    %c0_i32 = arith.constant 0 : i32
    %c0_i32_0 = arith.constant 0 : i32
    %c0_i32_1 = arith.constant 0 : i32
    return %c0_i32, %c0_i32_0 : i32, i32
  }
  func.func @transform_5(%arg0: i32) -> (i32, i32) {
    %c0_i32 = arith.constant 0 : i32
    %c0_i32_0 = arith.constant 0 : i32
    %c0_i32_1 = arith.constant 0 : i32
    return %c0_i32, %c0_i32_0 : i32, i32
  }
  func.func @transform_6(%arg0: i32) -> (i32, i32) {
    %c0_i32 = arith.constant 0 : i32
    %c0_i32_0 = arith.constant 0 : i32
    %c0_i32_1 = arith.constant 0 : i32
    return %c0_i32, %c0_i32_0 : i32, i32
  }
}

</mosaic_0001>

<llo_original>
// kernel: tiny_phase_correlation_tensor_computation.1
$region0: #{tiny_phase_correlation_tensor_computation.1}
  #allocation0 [shape = 'u32[]', space=smem, size = 0x4, offset = 0x4, fixed_abs, tag = 'smem constant byte address 0x4 - core index']
  #allocation1 [shape = 'u32[144,128]{1,0:T(1,128)}', space=vmem, size = 0x12000, scoped, tag = 'internal scratch']
  #allocation2 [shape = 'f32[160,32]{1,0:T(8,128)}', space=vmem, size = 0x14000, scoped, tag = 'scratch operand']
  %s0 = inlined_call_operand.vmem [shape: f32[128,32], index: 0, kind: input, shape index: {}]
  %s1 = inlined_call_operand.vmem [shape: f32[9,128,32], index: 1, kind: input, shape index: {}]
  %s2 = inlined_call_operand.vmem [shape: bf16[9,32,32], index: 2, kind: input, shape index: {}]
  %s3 = inlined_call_operand.vmem [shape: bf16[9,32,64], index: 3, kind: input, shape index: {}]
  %s4 = inlined_call_operand.vmem [shape: bf16[96,128], index: 4, kind: input, shape index: {}]
  %s5 = inlined_call_operand.vmem [shape: f32[16,128], index: 5, kind: input, shape index: {}]
  %s6 = inlined_call_operand.hbm [shape: f32[128,128], index: 6, kind: output, shape index: {}]
  %s7 = sld [smem:[#allocation0]]
  $region34: #{tiny_phase_correlation_tensor_computation.1} parent=0
    _
  %s9 = ssub.s32 1, %s7
  %s10 = scalar_select 0, %s9, %s7
  $region1: #{tiny_phase_correlation_tensor_computation.1} parent=0
    #allocation3 [shape = 'u8[65536]{0}', space=vmem, size = 0x10000, scoped, tag = 'output window, operand 0, single buffered']
    #allocation4 [shape = 's32[1]{0}', space=sflag, size = 0x4, scoped, tag = 'scoped memory for tiny_phase_correlation_tensor_computation.1']
    %11 = vsyncpa [#allocation4], 0
    // Predicated region
    $region2: #{tiny_phase_correlation_tensor_computation.1} parent=1 // pred_check
      _
    $region3: #{tiny_phase_correlation_tensor_computation.1} parent=1 // pred_check_branch
      %13 = sbr.rel (0) target = $region5
    $region4: #{tiny_phase_correlation_tensor_computation.1} parent=1 // pred_region
      _
    $region5: #{tiny_phase_correlation_tensor_computation.1} parent=1 // pred_fallthru
      _
    // Predicated region
    $region6: #{tiny_phase_correlation_tensor_computation.1} parent=1 // pred_check
      _
    $region7: #{tiny_phase_correlation_tensor_computation.1} parent=1 // pred_check_branch
      %15 = sbr.rel (0) target = $region9
    $region8: #{tiny_phase_correlation_tensor_computation.1} parent=1 // pred_region
      _
    $region9: #{tiny_phase_correlation_tensor_computation.1} parent=1 // pred_fallthru
      _
    // Predicated region
    $region10: #{tiny_phase_correlation_tensor_computation.1} parent=1 // pred_check
      _
    $region11: #{tiny_phase_correlation_tensor_computation.1} parent=1 // pred_check_branch
      %17 = sbr.rel (0) target = $region13
    $region12: #{tiny_phase_correlation_tensor_computation.1} parent=1 // pred_region
      _
    $region13: #{tiny_phase_correlation_tensor_computation.1} parent=1 // pred_fallthru
      _
    // Predicated region
    $region14: #{tiny_phase_correlation_tensor_computation.1} parent=1 // pred_check
      _
    $region15: #{tiny_phase_correlation_tensor_computation.1} parent=1 // pred_check_branch
      %19 = sbr.rel (0) target = $region17
    $region16: #{tiny_phase_correlation_tensor_computation.1} parent=1 // pred_region
      _
    $region17: #{tiny_phase_correlation_tensor_computation.1} parent=1 // pred_fallthru
      _
    // Predicated region
    $region18: #{tiny_phase_correlation_tensor_computation.1} parent=1 // pred_check
      _
    $region19: #{tiny_phase_correlation_tensor_computation.1} parent=1 // pred_check_branch
      %21 = sbr.rel (0) target = $region21
    $region20: #{tiny_phase_correlation_tensor_computation.1} parent=1 // pred_region
      _
    $region21: #{tiny_phase_correlation_tensor_computation.1} parent=1 // pred_fallthru
      _
    // Predicated region
    $region22: #{tiny_phase_correlation_tensor_computation.1} parent=1 // pred_check
      _
    $region23: #{tiny_phase_correlation_tensor_computation.1} parent=1 // pred_check_branch
      %23 = sbr.rel (0) target = $region25
    $region24: #{tiny_phase_correlation_tensor_computation.1} parent=1 // pred_region
      _
    $region25: #{tiny_phase_correlation_tensor_computation.1} parent=1 // pred_fallthru
      _
    %v25 = vld [vmem:[%s5] sm:$0xff]
    %v26 = vld [vmem:[%s5 + $0x8] sm:$0xff]
    %vm27 = vcmask 261120
    %28 = vst.msk [vmem:[#allocation2] sm:$0xff] %vm27, 0.0
    %29 = vst.msk [vmem:[#allocation2 + $0x8] sm:$0xff] %vm27, 0.0
    %30 = vst.msk [vmem:[#allocation2 + $0x90] sm:$0xff] %vm27, 0.0
    %31 = vst.msk [vmem:[#allocation2 + $0x98] sm:$0xff] %vm27, 0.0
    %v32 = vld [vmem:[%s0] sm:$0xff]
    %v33 = vld [vmem:[%s0 + $0x8] sm:$0xff]
    %v34 = vld [vmem:[%s0 + $0x10] sm:$0xff]
    %v35 = vld [vmem:[%s0 + $0x18] sm:$0xff]
    %v36 = vld [vmem:[%s0 + $0x20] sm:$0xff]
    %v37 = vld [vmem:[%s0 + $0x28] sm:$0xff]
    %v38 = vld [vmem:[%s0 + $0x30] sm:$0xff]
    %v39 = vld [vmem:[%s0 + $0x38] sm:$0xff]
    %v40 = vld [vmem:[%s0 + $0x40] sm:$0xff]
    %v41 = vld [vmem:[%s0 + $0x48] sm:$0xff]
    %v42 = vld [vmem:[%s0 + $0x50] sm:$0xff]
    %v43 = vld [vmem:[%s0 + $0x58] sm:$0xff]
    %v44 = vld [vmem:[%s0 + $0x60] sm:$0xff]
    %v45 = vld [vmem:[%s0 + $0x68] sm:$0xff]
    %v46 = vld [vmem:[%s0 + $0x70] sm:$0xff]
    %v47 = vld [vmem:[%s0 + $0x78] sm:$0xff]
    %48 = vst.msk [vmem:[#allocation2 + $0x10] sm:$0xff] %vm27, %v32
    %49 = vst.msk [vmem:[#allocation2 + $0x18] sm:$0xff] %vm27, %v33
    %50 = vst.msk [vmem:[#allocation2 + $0x20] sm:$0xff] %vm27, %v34
    %51 = vst.msk [vmem:[#allocation2 + $0x28] sm:$0xff] %vm27, %v35
    %52 = vst.msk [vmem:[#allocation2 + $0x30] sm:$0xff] %vm27, %v36
    %53 = vst.msk [vmem:[#allocation2 + $0x38] sm:$0xff] %vm27, %v37
    %54 = vst.msk [vmem:[#allocation2 + $0x40] sm:$0xff] %vm27, %v38
    %55 = vst.msk [vmem:[#allocation2 + $0x48] sm:$0xff] %vm27, %v39
    %56 = vst.msk [vmem:[#allocation2 + $0x50] sm:$0xff] %vm27, %v40
    %57 = vst.msk [vmem:[#allocation2 + $0x58] sm:$0xff] %vm27, %v41
    %58 = vst.msk [vmem:[#allocation2 + $0x60] sm:$0xff] %vm27, %v42
    %59 = vst.msk [vmem:[#allocation2 + $0x68] sm:$0xff] %vm27, %v43
    %60 = vst.msk [vmem:[#allocation2 + $0x70] sm:$0xff] %vm27, %v44
    %61 = vst.msk [vmem:[#allocation2 + $0x78] sm:$0xff] %vm27, %v45
    %62 = vst.msk [vmem:[#allocation2 + $0x80] sm:$0xff] %vm27, %v46
    %63 = vst.msk [vmem:[#allocation2 + $0x88] sm:$0xff] %vm27, %v47
    %v64 = vld [vmem:[#allocation2 + $0x7] sm:$0xff]
    %v65 = vld [vmem:[#allocation2 + $0xf] sm:$0xff]
    %v66 = vld [vmem:[#allocation2 + $0x17] sm:$0xff]
    %v67 = vld [vmem:[#allocation2 + $0x1f] sm:$0xff]
    %v68 = vld [vmem:[#allocation2 + $0x27] sm:$0xff]
    %v69 = vld [vmem:[#allocation2 + $0x2f] sm:$0xff]
    %v70 = vld [vmem:[#allocation2 + $0x37] sm:$0xff]
    %v71 = vld [vmem:[#allocation2 + $0x3f] sm:$0xff]
    %v72 = vld [vmem:[#allocation2 + $0x47] sm:$0xff]
    %v73 = vld [vmem:[#allocation2 + $0x4f] sm:$0xff]
    %v74 = vld [vmem:[#allocation2 + $0x57] sm:$0xff]
    %v75 = vld [vmem:[#allocation2 + $0x5f] sm:$0xff]
    %v76 = vld [vmem:[#allocation2 + $0x67] sm:$0xff]
    %v77 = vld [vmem:[#allocation2 + $0x6f] sm:$0xff]
    %v78 = vld [vmem:[#allocation2 + $0x77] sm:$0xff]
    %v79 = vld [vmem:[#allocation2 + $0x7f] sm:$0xff]
    %v80 = vld [vmem:[%s1] sm:$0xff]
    %v81 = vld [vmem:[%s1 + $0x8] sm:$0xff]
    %v82 = vld [vmem:[%s1 + $0x10] sm:$0xff]
    %v83 = vld [vmem:[%s1 + $0x18] sm:$0xff]
    %v84 = vld [vmem:[%s1 + $0x20] sm:$0xff]
    %v85 = vld [vmem:[%s1 + $0x28] sm:$0xff]
    %v86 = vld [vmem:[%s1 + $0x30] sm:$0xff]
    %v87 = vld [vmem:[%s1 + $0x38] sm:$0xff]
    %v88 = vld [vmem:[%s1 + $0x40] sm:$0xff]
    %v89 = vld [vmem:[%s1 + $0x48] sm:$0xff]
    %v90 = vld [vmem:[%s1 + $0x50] sm:$0xff]
    %v91 = vld [vmem:[%s1 + $0x58] sm:$0xff]
    %v92 = vld [vmem:[%s1 + $0x60] sm:$0xff]
    %v93 = vld [vmem:[%s1 + $0x68] sm:$0xff]
    %v94 = vld [vmem:[%s1 + $0x70] sm:$0xff]
    %v95 = vld [vmem:[%s1 + $0x78] sm:$0xff]
    %v96 = vmul.f32 %v64, %v80
    %v97 = vmul.f32 %v65, %v81
    %v98 = vmul.f32 %v66, %v82
    %v99 = vmul.f32 %v67, %v83
    %v100 = vmul.f32 %v68, %v84
    %v101 = vmul.f32 %v69, %v85
    %v102 = vmul.f32 %v70, %v86
    %v103 = vmul.f32 %v71, %v87
    %v104 = vmul.f32 %v72, %v88
    %v105 = vmul.f32 %v73, %v89
    %v106 = vmul.f32 %v74, %v90
    %v107 = vmul.f32 %v75, %v91
    %v108 = vmul.f32 %v76, %v92
    %v109 = vmul.f32 %v77, %v93
    %v110 = vmul.f32 %v78, %v94
    %v111 = vmul.f32 %v79, %v95
    %v112 = vpack.c.bf16 %v97, %v96
    %v113 = vpack.c.bf16 %v99, %v98
    %v114 = vpack.c.bf16 %v101, %v100
    %v115 = vpack.c.bf16 %v103, %v102
    %v116 = vpack.c.bf16 %v105, %v104
    %v117 = vpack.c.bf16 %v107, %v106
    %v118 = vpack.c.bf16 %v109, %v108
    %v119 = vpack.c.bf16 %v111, %v110
    %v120 = vld [vmem:[%s2] sm:$0xf]
    %v121 = vld [vmem:[%s2 + $0x4] sm:$0xf]
    %v122 = vld [vmem:[%s2 + $0x8] sm:$0xf]
    %v123 = vld [vmem:[%s2 + $0xc] sm:$0xf]
    %v124 = vlaneseq
    %v125 = vshrl.u32 %v124, 7
    %v126 = vsub.s32 6, %v125
    %v127 = vrot.slane %v25, %v126
    %v128 = vmul.f32 %v96, %v127
    %v129 = vmul.f32 %v97, %v127
    %v130 = vmul.f32 %v98, %v127
    %v131 = vmul.f32 %v99, %v127
    %v132 = vmul.f32 %v100, %v127
    %v133 = vmul.f32 %v101, %v127
    %v134 = vmul.f32 %v102, %v127
    %v135 = vmul.f32 %v103, %v127
    %v136 = vmul.f32 %v104, %v127
    %v137 = vmul.f32 %v105, %v127
    %v138 = vmul.f32 %v106, %v127
    %v139 = vmul.f32 %v107, %v127
    %v140 = vmul.f32 %v108, %v127
    %v141 = vmul.f32 %v109, %v127
    %v142 = vmul.f32 %v110, %v127
    %v143 = vmul.f32 %v111, %v127
    %v144 = vadd.f32 %v128, 0.0
    %v145 = vadd.f32 %v129, 0.0
    %v146 = vadd.f32 %v130, 0.0
    %v147 = vadd.f32 %v131, 0.0
    %v148 = vadd.f32 %v132, 0.0
    %v149 = vadd.f32 %v133, 0.0
    %v150 = vadd.f32 %v134, 0.0
    %v151 = vadd.f32 %v135, 0.0
    %v152 = vadd.f32 %v136, 0.0
    %v153 = vadd.f32 %v137, 0.0
    %v154 = vadd.f32 %v138, 0.0
    %v155 = vadd.f32 %v139, 0.0
    %v156 = vadd.f32 %v140, 0.0
    %v157 = vadd.f32 %v141, 0.0
    %v158 = vadd.f32 %v142, 0.0
    %v159 = vadd.f32 %v143, 0.0
    %v160 = vld [vmem:[#allocation2 + $0x8] sm:$0xff]
    %v161 = vld [vmem:[#allocation2 + $0x10] sm:$0xff]
    %v162 = vld [vmem:[#allocation2 + $0x18] sm:$0xff]
    %v163 = vld [vmem:[#allocation2 + $0x20] sm:$0xff]
    %v164 = vld [vmem:[#allocation2 + $0x28] sm:$0xff]
    %v165 = vld [vmem:[#allocation2 + $0x30] sm:$0xff]
    %v166 = vld [vmem:[#allocation2 + $0x38] sm:$0xff]
    %v167 = vld [vmem:[#allocation2 + $0x40] sm:$0xff]
    %v168 = vld [vmem:[#allocation2 + $0x48] sm:$0xff]
    %v169 = vld [vmem:[#allocation2 + $0x50] sm:$0xff]
    %v170 = vld [vmem:[#allocation2 + $0x58] sm:$0xff]
    %v171 = vld [vmem:[#allocation2 + $0x60] sm:$0xff]
    %v172 = vld [vmem:[#allocation2 + $0x68] sm:$0xff]
    %v173 = vld [vmem:[#allocation2 + $0x70] sm:$0xff]
    %v174 = vld [vmem:[#allocation2 + $0x78] sm:$0xff]
    %v175 = vld [vmem:[#allocation2 + $0x80] sm:$0xff]
    %s176 = scalar_lea.vmem %s1, 128
    %v177 = vld [vmem:[%s176] sm:$0xff]
    %v178 = vld [vmem:[%s176 + $0x8] sm:$0xff]
    %v179 = vld [vmem:[%s176 + $0x10] sm:$0xff]
    %v180 = vld [vmem:[%s176 + $0x18] sm:$0xff]
    %v181 = vld [vmem:[%s176 + $0x20] sm:$0xff]
    %v182 = vld [vmem:[%s176 + $0x28] sm:$0xff]
    %v183 = vld [vmem:[%s176 + $0x30] sm:$0xff]
    %v184 = vld [vmem:[%s176 + $0x38] sm:$0xff]
    %v185 = vld [vmem:[%s176 + $0x40] sm:$0xff]
    %v186 = vld [vmem:[%s176 + $0x48] sm:$0xff]
    %v187 = vld [vmem:[%s176 + $0x50] sm:$0xff]
    %v188 = vld [vmem:[%s176 + $0x58] sm:$0xff]
    %v189 = vld [vmem:[%s176 + $0x60] sm:$0xff]
    %v190 = vld [vmem:[%s176 + $0x68] sm:$0xff]
    %v191 = vld [vmem:[%s176 + $0x70] sm:$0xff]
    %v192 = vld [vmem:[%s176 + $0x78] sm:$0xff]
    %v193 = vmul.f32 %v160, %v177
    %v194 = vmul.f32 %v161, %v178
    %v195 = vmul.f32 %v162, %v179
    %v196 = vmul.f32 %v163, %v180
    %v197 = vmul.f32 %v164, %v181
    %v198 = vmul.f32 %v165, %v182
    %v199 = vmul.f32 %v166, %v183
    %v200 = vmul.f32 %v167, %v184
    %v201 = vmul.f32 %v168, %v185
    %v202 = vmul.f32 %v169, %v186
    %v203 = vmul.f32 %v170, %v187
    %v204 = vmul.f32 %v171, %v188
    %v205 = vmul.f32 %v172, %v189
    %v206 = vmul.f32 %v173, %v190
    %v207 = vmul.f32 %v174, %v191
    %v208 = vmul.f32 %v175, %v192
    %v209 = vpack.c.bf16 %v194, %v193
    %v210 = vpack.c.bf16 %v196, %v195
    %v211 = vpack.c.bf16 %v198, %v197
    %v212 = vpack.c.bf16 %v200, %v199
    %v213 = vpack.c.bf16 %v202, %v201
    %v214 = vpack.c.bf16 %v204, %v203
    %v215 = vpack.c.bf16 %v206, %v205
    %v216 = vpack.c.bf16 %v208, %v207
    %s217 = scalar_lea.vmem %s2, 16
    %v218 = vld [vmem:[%s217] sm:$0xf]
    %v219 = vld [vmem:[%s217 + $0x4] sm:$0xf]
    %v220 = vld [vmem:[%s217 + $0x8] sm:$0xf]
    %v221 = vld [vmem:[%s217 + $0xc] sm:$0xf]
    %v226 = vunpack.c.l.b16 %v218
    %v227 = vunpack.c.l.b16 %v219
    %v228 = vunpack.c.l.b16 %v220
    %v229 = vunpack.c.l.b16 %v221
    %v230 = vpack.c.b16 %v227, %v226
    %v231 = vpack.c.b16 %v229, %v228
    %v235 = vsel %vm27, %v209, 0
    %v238 = vsel %vm27, %v210, 0
    %v241 = vsel %vm27, %v211, 0
    %v244 = vsel %vm27, %v212, 0
    %v247 = vsel %vm27, %v213, 0
    %v250 = vsel %vm27, %v214, 0
    %v253 = vsel %vm27, %v215, 0
    %v256 = vsel %vm27, %v216, 0
    %258 = vmatprep.subr.bf16.mxu0 0
    %259 = vmatpush1.bf16.msra.mxu0 0
    %260 = vmatprep.subr.bf16.mxu0 0
    %261 = vmatpush1.bf16.msra.mxu0 0
    %262 = vmatprep.subr.bf16.mxu0 0
    %263 = vmatpush1.bf16.msra.mxu0 0
    %264 = vmatprep.subr.bf16.mxu0 0
    %265 = vmatpush1.bf16.msra.mxu0 0
    %266 = vmatprep.subr.bf16.mxu0 0
    %267 = vmatpush1.bf16.msra.mxu0 0
    %268 = vmatprep.subr.bf16.mxu0 0
    %269 = vmatpush1.bf16.msra.mxu0 0
    %270 = vmatprep.subr.bf16.mxu0 0
    %271 = vmatpush1.bf16.msra.mxu0 %v231
    %272 = vmatprep.subr.bf16.mxu0 0
    %273 = vmatpush1.bf16.msra.mxu0 %v230
    %274 = vmatprep.subr.bf16.mxu0 0
    %275 = vmatpush2.bf16.msra.mxu0 0
    %276 = vmatprep.subr.bf16.mxu0 0
    %277 = vmatpush2.bf16.msra.mxu0 0
    %278 = vmatprep.subr.bf16.mxu0 0
    %279 = vmatpush2.bf16.msra.mxu0 0
    %280 = vmatprep.subr.bf16.mxu0 0
    %281 = vmatpush2.bf16.msra.mxu0 0
    %282 = vmatprep.subr.bf16.mxu0 0
    %283 = vmatpush2.bf16.msra.mxu0 0
    %284 = vmatprep.subr.bf16.mxu0 0
    %285 = vmatpush2.bf16.msra.mxu0 0
    %286 = vmatprep.subr.bf16.mxu0 0
    %287 = vmatpush2.bf16.msra.mxu0 0
    %288 = vmatprep.subr.bf16.mxu0 0
    %289 = vmatpush2.bf16.msra.mxu0 0
    %290 = vmatprep.mubr.bf16.mxu0 0
    %291 = vmatmul.mubr.bf16.gmra.mxu0 %v235
    %v292 = vpop.f32.mrf.mxu0
    %v293 = vadd.f32 0.0, %v292
    %v294 = vpop.f32.mrf.mxu0
    %v295 = vpop.f32.mrf.mxu0
    %v296 = vadd.f32 0.0, %v295
    %v297 = vpop.f32.mrf.mxu0
    %298 = vmatprep.mubr.bf16.mxu0 0
    %299 = vmatmul.mubr.bf16.gmra.mxu0 %v238
    %v300 = vpop.f32.mrf.mxu0
    %v301 = vadd.f32 0.0, %v300
    %v302 = vpop.f32.mrf.mxu0
    %v303 = vpop.f32.mrf.mxu0
    %v304 = vadd.f32 0.0, %v303
    %v305 = vpop.f32.mrf.mxu0
    %306 = vmatprep.mubr.bf16.mxu0 0
    %307 = vmatmul.mubr.bf16.gmra.mxu0 %v241
    %v308 = vpop.f32.mrf.mxu0
    %v309 = vadd.f32 0.0, %v308
    %v310 = vpop.f32.mrf.mxu0
    %v311 = vpop.f32.mrf.mxu0
    %v312 = vadd.f32 0.0, %v311
    %v313 = vpop.f32.mrf.mxu0
    %314 = vmatprep.mubr.bf16.mxu0 0
    %315 = vmatmul.mubr.bf16.gmra.mxu0 %v244
    %v316 = vpop.f32.mrf.mxu0
    %v317 = vadd.f32 0.0, %v316
    %v318 = vpop.f32.mrf.mxu0
    %v319 = vpop.f32.mrf.mxu0
    %v320 = vadd.f32 0.0, %v319
    %v321 = vpop.f32.mrf.mxu0
    %322 = vmatprep.mubr.bf16.mxu0 0
    %323 = vmatmul.mubr.bf16.gmra.mxu0 %v247
    %v324 = vpop.f32.mrf.mxu0
    %v325 = vadd.f32 0.0, %v324
    %v326 = vpop.f32.mrf.mxu0
    %v327 = vpop.f32.mrf.mxu0
    %v328 = vadd.f32 0.0, %v327
    %v329 = vpop.f32.mrf.mxu0
    %330 = vmatprep.mubr.bf16.mxu0 0
    %331 = vmatmul.mubr.bf16.gmra.mxu0 %v250
    %v332 = vpop.f32.mrf.mxu0
    %v333 = vadd.f32 0.0, %v332
    %v334 = vpop.f32.mrf.mxu0
    %v335 = vpop.f32.mrf.mxu0
    %v336 = vadd.f32 0.0, %v335
    %v337 = vpop.f32.mrf.mxu0
    %338 = vmatprep.mubr.bf16.mxu0 0
    %339 = vmatmul.mubr.bf16.gmra.mxu0 %v253
    %v340 = vpop.f32.mrf.mxu0
    %v341 = vadd.f32 0.0, %v340
    %v342 = vpop.f32.mrf.mxu0
    %v343 = vpop.f32.mrf.mxu0
    %v344 = vadd.f32 0.0, %v343
    %v345 = vpop.f32.mrf.mxu0
    %346 = vmatprep.mubr.bf16.mxu0 0
    %347 = vmatmul.mubr.bf16.gmra.mxu0 %v256
    %v348 = vpop.f32.mrf.mxu0
    %v349 = vadd.f32 0.0, %v348
    %v350 = vpop.f32.mrf.mxu0
    %v351 = vpop.f32.mrf.mxu0
    %v352 = vadd.f32 0.0, %v351
    %v353 = vpop.f32.mrf.mxu0
    %354 = vdwg.mxu0
    %v359 = vunpack.c.l.b16 %v120
    %v360 = vunpack.c.l.b16 %v121
    %v361 = vunpack.c.l.b16 %v122
    %v362 = vunpack.c.l.b16 %v123
    %v363 = vpack.c.b16 %v360, %v359
    %v364 = vpack.c.b16 %v362, %v361
    %v368 = vsel %vm27, %v112, 0
    %v371 = vsel %vm27, %v113, 0
    %v374 = vsel %vm27, %v114, 0
    %v377 = vsel %vm27, %v115, 0
    %v380 = vsel %vm27, %v116, 0
    %v383 = vsel %vm27, %v117, 0
    %v386 = vsel %vm27, %v118, 0
    %v389 = vsel %vm27, %v119, 0
    %391 = vmatprep.subr.bf16.mxu0 0
    %392 = vmatpush1.bf16.msra.mxu0 0
    %393 = vmatprep.subr.bf16.mxu0 0
    %394 = vmatpush1.bf16.msra.mxu0 0
    %395 = vmatprep.subr.bf16.mxu0 0
    %396 = vmatpush1.bf16.msra.mxu0 0
    %397 = vmatprep.subr.bf16.mxu0 0
    %398 = vmatpush1.bf16.msra.mxu0 0
    %399 = vmatprep.subr.bf16.mxu0 0
    %400 = vmatpush1.bf16.msra.mxu0 0
    %401 = vmatprep.subr.bf16.mxu0 0
    %402 = vmatpush1.bf16.msra.mxu0 0
    %403 = vmatprep.subr.bf16.mxu0 0
    %404 = vmatpush1.bf16.msra.mxu0 %v364
    %405 = vmatprep.subr.bf16.mxu0 0
    %406 = vmatpush1.bf16.msra.mxu0 %v363
    %407 = vmatprep.subr.bf16.mxu0 0
    %408 = vmatpush2.bf16.msra.mxu0 0
    %409 = vmatprep.subr.bf16.mxu0 0
    %410 = vmatpush2.bf16.msra.mxu0 0
    %411 = vmatprep.subr.bf16.mxu0 0
    %412 = vmatpush2.bf16.msra.mxu0 0
    %413 = vmatprep.subr.bf16.mxu0 0
    %414 = vmatpush2.bf16.msra.mxu0 0
    %415 = vmatprep.subr.bf16.mxu0 0
    %416 = vmatpush2.bf16.msra.mxu0 0
    %417 = vmatprep.subr.bf16.mxu0 0
    %418 = vmatpush2.bf16.msra.mxu0 0
    %419 = vmatprep.subr.bf16.mxu0 0
    %420 = vmatpush2.bf16.msra.mxu0 0
    %421 = vmatprep.subr.bf16.mxu0 0
    %422 = vmatpush2.bf16.msra.mxu0 0
    %423 = vmatprep.mubr.bf16.mxu0 0
    %424 = vmatmul.mubr.bf16.gmra.mxu0 %v368
    %v425 = vpop.f32.mrf.mxu0
    %v426 = vadd.f32 %v293, %v425
    %v427 = vpop.f32.mrf.mxu0
    %v428 = vpop.f32.mrf.mxu0
    %v429 = vadd.f32 %v296, %v428
    %v430 = vpop.f32.mrf.mxu0
    %431 = vmatprep.mubr.bf16.mxu0 0
    %432 = vmatmul.mubr.bf16.gmra.mxu0 %v371
    %v433 = vpop.f32.mrf.mxu0
    %v434 = vadd.f32 %v301, %v433
    %v435 = vpop.f32.mrf.mxu0
    %v436 = vpop.f32.mrf.mxu0
    %v437 = vadd.f32 %v304, %v436
    %v438 = vpop.f32.mrf.mxu0
    %439 = vmatprep.mubr.bf16.mxu0 0
    %440 = vmatmul.mubr.bf16.gmra.mxu0 %v374
    %v441 = vpop.f32.mrf.mxu0
    %v442 = vadd.f32 %v309, %v441
    %v443 = vpop.f32.mrf.mxu0
    %v444 = vpop.f32.mrf.mxu0
    %v445 = vadd.f32 %v312, %v444
    %v446 = vpop.f32.mrf.mxu0
    %447 = vmatprep.mubr.bf16.mxu0 0
    %448 = vmatmul.mubr.bf16.gmra.mxu0 %v377
    %v449 = vpop.f32.mrf.mxu0
    %v450 = vadd.f32 %v317, %v449
    %v451 = vpop.f32.mrf.mxu0
    %v452 = vpop.f32.mrf.mxu0
    %v453 = vadd.f32 %v320, %v452
    %v454 = vpop.f32.mrf.mxu0
    %455 = vmatprep.mubr.bf16.mxu0 0
    %456 = vmatmul.mubr.bf16.gmra.mxu0 %v380
    %v457 = vpop.f32.mrf.mxu0
    %v458 = vadd.f32 %v325, %v457
    %v459 = vpop.f32.mrf.mxu0
    %v460 = vpop.f32.mrf.mxu0
    %v461 = vadd.f32 %v328, %v460
    %v462 = vpop.f32.mrf.mxu0
    %463 = vmatprep.mubr.bf16.mxu0 0
    %464 = vmatmul.mubr.bf16.gmra.mxu0 %v383
    %v465 = vpop.f32.mrf.mxu0
    %v466 = vadd.f32 %v333, %v465
    %v467 = vpop.f32.mrf.mxu0
    %v468 = vpop.f32.mrf.mxu0
    %v469 = vadd.f32 %v336, %v468
    %v470 = vpop.f32.mrf.mxu0
    %471 = vmatprep.mubr.bf16.mxu0 0
    %472 = vmatmul.mubr.bf16.gmra.mxu0 %v386
    %v473 = vpop.f32.mrf.mxu0
    %v474 = vadd.f32 %v341, %v473
    %v475 = vpop.f32.mrf.mxu0
    %v476 = vpop.f32.mrf.mxu0
    %v477 = vadd.f32 %v344, %v476
    %v478 = vpop.f32.mrf.mxu0
    %479 = vmatprep.mubr.bf16.mxu0 0
    %480 = vmatmul.mubr.bf16.gmra.mxu0 %v389
    %v481 = vpop.f32.mrf.mxu0
    %v482 = vadd.f32 %v349, %v481
    %v483 = vpop.f32.mrf.mxu0
    %v484 = vpop.f32.mrf.mxu0
    %v485 = vadd.f32 %v352, %v484
    %v486 = vpop.f32.mrf.mxu0
    %487 = vdwg.mxu0
    %v488 = vlaneseq
    %v489 = vshrl.u32 %v488, 7
    %v490 = vsub.s32 7, %v489
    %v491 = vrot.slane %v25, %v490
    %v492 = vmul.f32 %v193, %v491
    %v493 = vmul.f32 %v194, %v491
    %v494 = vmul.f32 %v195, %v491
    %v495 = vmul.f32 %v196, %v491
    %v496 = vmul.f32 %v197, %v491
    %v497 = vmul.f32 %v198, %v491
    %v498 = vmul.f32 %v199, %v491
    %v499 = vmul.f32 %v200, %v491
    %v500 = vmul.f32 %v201, %v491
    %v501 = vmul.f32 %v202, %v491
    %v502 = vmul.f32 %v203, %v491
    %v503 = vmul.f32 %v204, %v491
    %v504 = vmul.f32 %v205, %v491
    %v505 = vmul.f32 %v206, %v491
    %v506 = vmul.f32 %v207, %v491
    %v507 = vmul.f32 %v208, %v491
    %v508 = vadd.f32 %v144, %v492
    %v509 = vadd.f32 %v145, %v493
    %v510 = vadd.f32 %v146, %v494
    %v511 = vadd.f32 %v147, %v495
    %v512 = vadd.f32 %v148, %v496
    %v513 = vadd.f32 %v149, %v497
    %v514 = vadd.f32 %v150, %v498
    %v515 = vadd.f32 %v151, %v499
    %v516 = vadd.f32 %v152, %v500
    %v517 = vadd.f32 %v153, %v501
    %v518 = vadd.f32 %v154, %v502
    %v519 = vadd.f32 %v155, %v503
    %v520 = vadd.f32 %v156, %v504
    %v521 = vadd.f32 %v157, %v505
    %v522 = vadd.f32 %v158, %v506
    %v523 = vadd.f32 %v159, %v507
    %v524 = vld [vmem:[#allocation2 + $0x9] sm:$0xff]
    %v525 = vld [vmem:[#allocation2 + $0x11] sm:$0xff]
    %v526 = vld [vmem:[#allocation2 + $0x19] sm:$0xff]
    %v527 = vld [vmem:[#allocation2 + $0x21] sm:$0xff]
    %v528 = vld [vmem:[#allocation2 + $0x29] sm:$0xff]
    %v529 = vld [vmem:[#allocation2 + $0x31] sm:$0xff]
    %v530 = vld [vmem:[#allocation2 + $0x39] sm:$0xff]
    %v531 = vld [vmem:[#allocation2 + $0x41] sm:$0xff]
    %v532 = vld [vmem:[#allocation2 + $0x49] sm:$0xff]
    %v533 = vld [vmem:[#allocation2 + $0x51] sm:$0xff]
    %v534 = vld [vmem:[#allocation2 + $0x59] sm:$0xff]
    %v535 = vld [vmem:[#allocation2 + $0x61] sm:$0xff]
    %v536 = vld [vmem:[#allocation2 + $0x69] sm:$0xff]
    %v537 = vld [vmem:[#allocation2 + $0x71] sm:$0xff]
    %v538 = vld [vmem:[#allocation2 + $0x79] sm:$0xff]
    %v539 = vld [vmem:[#allocation2 + $0x81] sm:$0xff]
    %s540 = scalar_lea.vmem %s1, 256
    %v541 = vld [vmem:[%s540] sm:$0xff]
    %v542 = vld [vmem:[%s540 + $0x8] sm:$0xff]
    %v543 = vld [vmem:[%s540 + $0x10] sm:$0xff]
    %v544 = vld [vmem:[%s540 + $0x18] sm:$0xff]
    %v545 = vld [vmem:[%s540 + $0x20] sm:$0xff]
    %v546 = vld [vmem:[%s540 + $0x28] sm:$0xff]
    %v547 = vld [vmem:[%s540 + $0x30] sm:$0xff]
    %v548 = vld [vmem:[%s540 + $0x38] sm:$0xff]
    %v549 = vld [vmem:[%s540 + $0x40] sm:$0xff]
    %v550 = vld [vmem:[%s540 + $0x48] sm:$0xff]
    %v551 = vld [vmem:[%s540 + $0x50] sm:$0xff]
    %v552 = vld [vmem:[%s540 + $0x58] sm:$0xff]
    %v553 = vld [vmem:[%s540 + $0x60] sm:$0xff]
    %v554 = vld [vmem:[%s540 + $0x68] sm:$0xff]
    %v555 = vld [vmem:[%s540 + $0x70] sm:$0xff]
    %v556 = vld [vmem:[%s540 + $0x78] sm:$0xff]
    %v557 = vmul.f32 %v524, %v541
    %v558 = vmul.f32 %v525, %v542
    %v559 = vmul.f32 %v526, %v543
    %v560 = vmul.f32 %v527, %v544
    %v561 = vmul.f32 %v528, %v545
    %v562 = vmul.f32 %v529, %v546
    %v563 = vmul.f32 %v530, %v547
    %v564 = vmul.f32 %v531, %v548
    %v565 = vmul.f32 %v532, %v549
    %v566 = vmul.f32 %v533, %v550
    %v567 = vmul.f32 %v534, %v551
    %v568 = vmul.f32 %v535, %v552
    %v569 = vmul.f32 %v536, %v553
    %v570 = vmul.f32 %v537, %v554
    %v571 = vmul.f32 %v538, %v555
    %v572 = vmul.f32 %v539, %v556
    %v573 = vpack.c.bf16 %v558, %v557
    %v574 = vpack.c.bf16 %v560, %v559
    %v575 = vpack.c.bf16 %v562, %v561
    %v576 = vpack.c.bf16 %v564, %v563
    %v577 = vpack.c.bf16 %v566, %v565
    %v578 = vpack.c.bf16 %v568, %v567
    %v579 = vpack.c.bf16 %v570, %v569
    %v580 = vpack.c.bf16 %v572, %v571
    %s581 = scalar_lea.vmem %s2, 32
    %v582 = vld [vmem:[%s581] sm:$0xf]
    %v583 = vld [vmem:[%s581 + $0x4] sm:$0xf]
    %v584 = vld [vmem:[%s581 + $0x8] sm:$0xf]
    %v585 = vld [vmem:[%s581 + $0xc] sm:$0xf]
    %v590 = vunpack.c.l.b16 %v582
    %v591 = vunpack.c.l.b16 %v583
    %v592 = vunpack.c.l.b16 %v584
    %v593 = vunpack.c.l.b16 %v585
    %v594 = vpack.c.b16 %v591, %v590
    %v595 = vpack.c.b16 %v593, %v592
    %v599 = vsel %vm27, %v573, 0
    %v602 = vsel %vm27, %v574, 0
    %v605 = vsel %vm27, %v575, 0
    %v608 = vsel %vm27, %v576, 0
    %v611 = vsel %vm27, %v577, 0
    %v614 = vsel %vm27, %v578, 0
    %v617 = vsel %vm27, %v579, 0
    %v620 = vsel %vm27, %v580, 0
    %622 = vmatprep.subr.bf16.mxu0 0
    %623 = vmatpush1.bf16.msra.mxu0 0
    %624 = vmatprep.subr.bf16.mxu0 0
    %625 = vmatpush1.bf16.msra.mxu0 0
    %626 = vmatprep.subr.bf16.mxu0 0
    %627 = vmatpush1.bf16.msra.mxu0 0
    %628 = vmatprep.subr.bf16.mxu0 0
    %629 = vmatpush1.bf16.msra.mxu0 0
    %630 = vmatprep.subr.bf16.mxu0 0
    %631 = vmatpush1.bf16.msra.mxu0 0
    %632 = vmatprep.subr.bf16.mxu0 0
    %633 = vmatpush1.bf16.msra.mxu0 0
    %634 = vmatprep.subr.bf16.mxu0 0
    %635 = vmatpush1.bf16.msra.mxu0 %v595
    %636 = vmatprep.subr.bf16.mxu0 0
    %637 = vmatpush1.bf16.msra.mxu0 %v594
    %638 = vmatprep.subr.bf16.mxu0 0
    %639 = vmatpush2.bf16.msra.mxu0 0
    %640 = vmatprep.subr.bf16.mxu0 0
    %641 = vmatpush2.bf16.msra.mxu0 0
    %642 = vmatprep.subr.bf16.mxu0 0
    %643 = vmatpush2.bf16.msra.mxu0 0
    %644 = vmatprep.subr.bf16.mxu0 0
    %645 = vmatpush2.bf16.msra.mxu0 0
    %646 = vmatprep.subr.bf16.mxu0 0
    %647 = vmatpush2.bf16.msra.mxu0 0
    %648 = vmatprep.subr.bf16.mxu0 0
    %649 = vmatpush2.bf16.msra.mxu0 0
    %650 = vmatprep.subr.bf16.mxu0 0
    %651 = vmatpush2.bf16.msra.mxu0 0
    %652 = vmatprep.subr.bf16.mxu0 0
    %653 = vmatpush2.bf16.msra.mxu0 0
    %654 = vmatprep.mubr.bf16.mxu0 0
    %655 = vmatmul.mubr.bf16.gmra.mxu0 %v599
    %v656 = vpop.f32.mrf.mxu0
    %v657 = vadd.f32 0.0, %v656
    %v658 = vpop.f32.mrf.mxu0
    %v659 = vpop.f32.mrf.mxu0
    %v660 = vadd.f32 0.0, %v659
    %v661 = vpop.f32.mrf.mxu0
    %662 = vmatprep.mubr.bf16.mxu0 0
    %663 = vmatmul.mubr.bf16.gmra.mxu0 %v602
    %v664 = vpop.f32.mrf.mxu0
    %v665 = vadd.f32 0.0, %v664
    %v666 = vpop.f32.mrf.mxu0
    %v667 = vpop.f32.mrf.mxu0
    %v668 = vadd.f32 0.0, %v667
    %v669 = vpop.f32.mrf.mxu0
    %670 = vmatprep.mubr.bf16.mxu0 0
    %671 = vmatmul.mubr.bf16.gmra.mxu0 %v605
    %v672 = vpop.f32.mrf.mxu0
    %v673 = vadd.f32 0.0, %v672
    %v674 = vpop.f32.mrf.mxu0
    %v675 = vpop.f32.mrf.mxu0
    %v676 = vadd.f32 0.0, %v675
    %v677 = vpop.f32.mrf.mxu0
    %678 = vmatprep.mubr.bf16.mxu0 0
    %679 = vmatmul.mubr.bf16.gmra.mxu0 %v608
    %v680 = vpop.f32.mrf.mxu0
    %v681 = vadd.f32 0.0, %v680
    %v682 = vpop.f32.mrf.mxu0
    %v683 = vpop.f32.mrf.mxu0
    %v684 = vadd.f32 0.0, %v683
    %v685 = vpop.f32.mrf.mxu0
    %686 = vmatprep.mubr.bf16.mxu0 0
    %687 = vmatmul.mubr.bf16.gmra.mxu0 %v611
    %v688 = vpop.f32.mrf.mxu0
    %v689 = vadd.f32 0.0, %v688
    %v690 = vpop.f32.mrf.mxu0
    %v691 = vpop.f32.mrf.mxu0
    %v692 = vadd.f32 0.0, %v691
    %v693 = vpop.f32.mrf.mxu0
    %694 = vmatprep.mubr.bf16.mxu0 0
    %695 = vmatmul.mubr.bf16.gmra.mxu0 %v614
    %v696 = vpop.f32.mrf.mxu0
    %v697 = vadd.f32 0.0, %v696
    %v698 = vpop.f32.mrf.mxu0
    %v699 = vpop.f32.mrf.mxu0
    %v700 = vadd.f32 0.0, %v699
    %v701 = vpop.f32.mrf.mxu0
    %702 = vmatprep.mubr.bf16.mxu0 0
    %703 = vmatmul.mubr.bf16.gmra.mxu0 %v617
    %v704 = vpop.f32.mrf.mxu0
    %v705 = vadd.f32 0.0, %v704
    %v706 = vpop.f32.mrf.mxu0
    %v707 = vpop.f32.mrf.mxu0
    %v708 = vadd.f32 0.0, %v707
    %v709 = vpop.f32.mrf.mxu0
    %710 = vmatprep.mubr.bf16.mxu0 0
    %711 = vmatmul.mubr.bf16.gmra.mxu0 %v620
    %v712 = vpop.f32.mrf.mxu0
    %v713 = vadd.f32 0.0, %v712
    %v714 = vpop.f32.mrf.mxu0
    %v715 = vpop.f32.mrf.mxu0
    %v716 = vadd.f32 0.0, %v715
    %v717 = vpop.f32.mrf.mxu0
    %718 = vdwg.mxu0
    %v719 = vadd.f32 %v426, %v657
    %v720 = vadd.f32 %v429, %v660
    %v721 = vadd.f32 %v434, %v665
    %v722 = vadd.f32 %v437, %v668
    %v723 = vadd.f32 %v442, %v673
    %v724 = vadd.f32 %v445, %v676
    %v725 = vadd.f32 %v450, %v681
    %v726 = vadd.f32 %v453, %v684
    %v727 = vadd.f32 %v458, %v689
    %v728 = vadd.f32 %v461, %v692
    %v729 = vadd.f32 %v466, %v697
    %v730 = vadd.f32 %v469, %v700
    %v731 = vadd.f32 %v474, %v705
    %v732 = vadd.f32 %v477, %v708
    %v733 = vadd.f32 %v482, %v713
    %v734 = vadd.f32 %v485, %v716
    %v735 = vlaneseq
    %v736 = vshrl.u32 %v735, 7
    %v737 = vsub.s32 0, %v736
    %v738 = vrot.slane %v26, %v737
    %v739 = vmul.f32 %v557, %v738
    %v740 = vmul.f32 %v558, %v738
    %v741 = vmul.f32 %v559, %v738
    %v742 = vmul.f32 %v560, %v738
    %v743 = vmul.f32 %v561, %v738
    %v744 = vmul.f32 %v562, %v738
    %v745 = vmul.f32 %v563, %v738
    %v746 = vmul.f32 %v564, %v738
    %v747 = vmul.f32 %v565, %v738
    %v748 = vmul.f32 %v566, %v738
    %v749 = vmul.f32 %v567, %v738
    %v750 = vmul.f32 %v568, %v738
    %v751 = vmul.f32 %v569, %v738
    %v752 = vmul.f32 %v570, %v738
    %v753 = vmul.f32 %v571, %v738
    %v754 = vmul.f32 %v572, %v738
    %v755 = vadd.f32 %v508, %v739
    %v756 = vadd.f32 %v509, %v740
    %v757 = vadd.f32 %v510, %v741
    %v758 = vadd.f32 %v511, %v742
    %v759 = vadd.f32 %v512, %v743
    %v760 = vadd.f32 %v513, %v744
    %v761 = vadd.f32 %v514, %v745
    %v762 = vadd.f32 %v515, %v746
    %v763 = vadd.f32 %v516, %v747
    %v764 = vadd.f32 %v517, %v748
    %v765 = vadd.f32 %v518, %v749
    %v766 = vadd.f32 %v519, %v750
    %v767 = vadd.f32 %v520, %v751
    %v768 = vadd.f32 %v521, %v752
    %v769 = vadd.f32 %v522, %v753
    %v770 = vadd.f32 %v523, %v754
    %v771 = vld [vmem:[#allocation2 + $0xf] sm:$0xff]
    %v772 = vld [vmem:[#allocation2 + $0x17] sm:$0xff]
    %v773 = vld [vmem:[#allocation2 + $0x1f] sm:$0xff]
    %v774 = vld [vmem:[#allocation2 + $0x27] sm:$0xff]
    %v775 = vld [vmem:[#allocation2 + $0x2f] sm:$0xff]
    %v776 = vld [vmem:[#allocation2 + $0x37] sm:$0xff]
    %v777 = vld [vmem:[#allocation2 + $0x3f] sm:$0xff]
    %v778 = vld [vmem:[#allocation2 + $0x47] sm:$0xff]
    %v779 = vld [vmem:[#allocation2 + $0x4f] sm:$0xff]
    %v780 = vld [vmem:[#allocation2 + $0x57] sm:$0xff]
    %v781 = vld [vmem:[#allocation2 + $0x5f] sm:$0xff]
    %v782 = vld [vmem:[#allocation2 + $0x67] sm:$0xff]
    %v783 = vld [vmem:[#allocation2 + $0x6f] sm:$0xff]
    %v784 = vld [vmem:[#allocation2 + $0x77] sm:$0xff]
    %v785 = vld [vmem:[#allocation2 + $0x7f] sm:$0xff]
    %v786 = vld [vmem:[#allocation2 + $0x87] sm:$0xff]
    %s787 = scalar_lea.vmem %s1, 384
    %v788 = vld [vmem:[%s787] sm:$0xff]
    %v789 = vld [vmem:[%s787 + $0x8] sm:$0xff]
    %v790 = vld [vmem:[%s787 + $0x10] sm:$0xff]
    %v791 = vld [vmem:[%s787 + $0x18] sm:$0xff]
    %v792 = vld [vmem:[%s787 + $0x20] sm:$0xff]
    %v793 = vld [vmem:[%s787 + $0x28] sm:$0xff]
    %v794 = vld [vmem:[%s787 + $0x30] sm:$0xff]
    %v795 = vld [vmem:[%s787 + $0x38] sm:$0xff]
    %v796 = vld [vmem:[%s787 + $0x40] sm:$0xff]
    %v797 = vld [vmem:[%s787 + $0x48] sm:$0xff]
    %v798 = vld [vmem:[%s787 + $0x50] sm:$0xff]
    %v799 = vld [vmem:[%s787 + $0x58] sm:$0xff]
    %v800 = vld [vmem:[%s787 + $0x60] sm:$0xff]
    %v801 = vld [vmem:[%s787 + $0x68] sm:$0xff]
    %v802 = vld [vmem:[%s787 + $0x70] sm:$0xff]
    %v803 = vld [vmem:[%s787 + $0x78] sm:$0xff]
    %v804 = vmul.f32 %v771, %v788
    %v805 = vmul.f32 %v772, %v789
    %v806 = vmul.f32 %v773, %v790
    %v807 = vmul.f32 %v774, %v791
    %v808 = vmul.f32 %v775, %v792
    %v809 = vmul.f32 %v776, %v793
    %v810 = vmul.f32 %v777, %v794
    %v811 = vmul.f32 %v778, %v795
    %v812 = vmul.f32 %v779, %v796
    %v813 = vmul.f32 %v780, %v797
    %v814 = vmul.f32 %v781, %v798
    %v815 = vmul.f32 %v782, %v799
    %v816 = vmul.f32 %v783, %v800
    %v817 = vmul.f32 %v784, %v801
    %v818 = vmul.f32 %v785, %v802
    %v819 = vmul.f32 %v786, %v803
    %v820 = vpack.c.bf16 %v805, %v804
    %v821 = vpack.c.bf16 %v807, %v806
    %v822 = vpack.c.bf16 %v809, %v808
    %v823 = vpack.c.bf16 %v811, %v810
    %v824 = vpack.c.bf16 %v813, %v812
    %v825 = vpack.c.bf16 %v815, %v814
    %v826 = vpack.c.bf16 %v817, %v816
    %v827 = vpack.c.bf16 %v819, %v818
    %s828 = scalar_lea.vmem %s2, 48
    %v829 = vld [vmem:[%s828] sm:$0xf]
    %v830 = vld [vmem:[%s828 + $0x4] sm:$0xf]
    %v831 = vld [vmem:[%s828 + $0x8] sm:$0xf]
    %v832 = vld [vmem:[%s828 + $0xc] sm:$0xf]
    %v837 = vunpack.c.l.b16 %v829
    %v838 = vunpack.c.l.b16 %v830
    %v839 = vunpack.c.l.b16 %v831
    %v840 = vunpack.c.l.b16 %v832
    %v841 = vpack.c.b16 %v838, %v837
    %v842 = vpack.c.b16 %v840, %v839
    %v846 = vsel %vm27, %v820, 0
    %v849 = vsel %vm27, %v821, 0
    %v852 = vsel %vm27, %v822, 0
    %v855 = vsel %vm27, %v823, 0
    %v858 = vsel %vm27, %v824, 0
    %v861 = vsel %vm27, %v825, 0
    %v864 = vsel %vm27, %v826, 0
    %v867 = vsel %vm27, %v827, 0
    %869 = vmatprep.subr.bf16.mxu0 0
    %870 = vmatpush1.bf16.msra.mxu0 0
    %871 = vmatprep.subr.bf16.mxu0 0
    %872 = vmatpush1.bf16.msra.mxu0 0
    %873 = vmatprep.subr.bf16.mxu0 0
    %874 = vmatpush1.bf16.msra.mxu0 0
    %875 = vmatprep.subr.bf16.mxu0 0
    %876 = vmatpush1.bf16.msra.mxu0 0
    %877 = vmatprep.subr.bf16.mxu0 0
    %878 = vmatpush1.bf16.msra.mxu0 0
    %879 = vmatprep.subr.bf16.mxu0 0
    %880 = vmatpush1.bf16.msra.mxu0 0
    %881 = vmatprep.subr.bf16.mxu0 0
    %882 = vmatpush1.bf16.msra.mxu0 %v842
    %883 = vmatprep.subr.bf16.mxu0 0
    %884 = vmatpush1.bf16.msra.mxu0 %v841
    %885 = vmatprep.subr.bf16.mxu0 0
    %886 = vmatpush2.bf16.msra.mxu0 0
    %887 = vmatprep.subr.bf16.mxu0 0
    %888 = vmatpush2.bf16.msra.mxu0 0
    %889 = vmatprep.subr.bf16.mxu0 0
    %890 = vmatpush2.bf16.msra.mxu0 0
    %891 = vmatprep.subr.bf16.mxu0 0
    %892 = vmatpush2.bf16.msra.mxu0 0
    %893 = vmatprep.subr.bf16.mxu0 0
    %894 = vmatpush2.bf16.msra.mxu0 0
    %895 = vmatprep.subr.bf16.mxu0 0
    %896 = vmatpush2.bf16.msra.mxu0 0
    %897 = vmatprep.subr.bf16.mxu0 0
    %898 = vmatpush2.bf16.msra.mxu0 0
    %899 = vmatprep.subr.bf16.mxu0 0
    %900 = vmatpush2.bf16.msra.mxu0 0
    %901 = vmatprep.mubr.bf16.mxu0 0
    %902 = vmatmul.mubr.bf16.gmra.mxu0 %v846
    %v903 = vpop.f32.mrf.mxu0
    %v904 = vadd.f32 0.0, %v903
    %v905 = vpop.f32.mrf.mxu0
    %v906 = vpop.f32.mrf.mxu0
    %v907 = vadd.f32 0.0, %v906
    %v908 = vpop.f32.mrf.mxu0
    %909 = vmatprep.mubr.bf16.mxu0 0
    %910 = vmatmul.mubr.bf16.gmra.mxu0 %v849
    %v911 = vpop.f32.mrf.mxu0
    %v912 = vadd.f32 0.0, %v911
    %v913 = vpop.f32.mrf.mxu0
    %v914 = vpop.f32.mrf.mxu0
    %v915 = vadd.f32 0.0, %v914
    %v916 = vpop.f32.mrf.mxu0
    %917 = vmatprep.mubr.bf16.mxu0 0
    %918 = vmatmul.mubr.bf16.gmra.mxu0 %v852
    %v919 = vpop.f32.mrf.mxu0
    %v920 = vadd.f32 0.0, %v919
    %v921 = vpop.f32.mrf.mxu0
    %v922 = vpop.f32.mrf.mxu0
    %v923 = vadd.f32 0.0, %v922
    %v924 = vpop.f32.mrf.mxu0
    %925 = vmatprep.mubr.bf16.mxu0 0
    %926 = vmatmul.mubr.bf16.gmra.mxu0 %v855
    %v927 = vpop.f32.mrf.mxu0
    %v928 = vadd.f32 0.0, %v927
    %v929 = vpop.f32.mrf.mxu0
    %v930 = vpop.f32.mrf.mxu0
    %v931 = vadd.f32 0.0, %v930
    %v932 = vpop.f32.mrf.mxu0
    %933 = vmatprep.mubr.bf16.mxu0 0
    %934 = vmatmul.mubr.bf16.gmra.mxu0 %v858
    %v935 = vpop.f32.mrf.mxu0
    %v936 = vadd.f32 0.0, %v935
    %v937 = vpop.f32.mrf.mxu0
    %v938 = vpop.f32.mrf.mxu0
    %v939 = vadd.f32 0.0, %v938
    %v940 = vpop.f32.mrf.mxu0
    %941 = vmatprep.mubr.bf16.mxu0 0
    %942 = vmatmul.mubr.bf16.gmra.mxu0 %v861
    %v943 = vpop.f32.mrf.mxu0
    %v944 = vadd.f32 0.0, %v943
    %v945 = vpop.f32.mrf.mxu0
    %v946 = vpop.f32.mrf.mxu0
    %v947 = vadd.f32 0.0, %v946
    %v948 = vpop.f32.mrf.mxu0
    %949 = vmatprep.mubr.bf16.mxu0 0
    %950 = vmatmul.mubr.bf16.gmra.mxu0 %v864
    %v951 = vpop.f32.mrf.mxu0
    %v952 = vadd.f32 0.0, %v951
    %v953 = vpop.f32.mrf.mxu0
    %v954 = vpop.f32.mrf.mxu0
    %v955 = vadd.f32 0.0, %v954
    %v956 = vpop.f32.mrf.mxu0
    %957 = vmatprep.mubr.bf16.mxu0 0
    %958 = vmatmul.mubr.bf16.gmra.mxu0 %v867
    %v959 = vpop.f32.mrf.mxu0
    %v960 = vadd.f32 0.0, %v959
    %v961 = vpop.f32.mrf.mxu0
    %v962 = vpop.f32.mrf.mxu0
    %v963 = vadd.f32 0.0, %v962
    %v964 = vpop.f32.mrf.mxu0
    %965 = vdwg.mxu0
    %v966 = vadd.f32 %v719, %v904
    %v967 = vadd.f32 %v720, %v907
    %v968 = vadd.f32 %v721, %v912
    %v969 = vadd.f32 %v722, %v915
    %v970 = vadd.f32 %v723, %v920
    %v971 = vadd.f32 %v724, %v923
    %v972 = vadd.f32 %v725, %v928
    %v973 = vadd.f32 %v726, %v931
    %v974 = vadd.f32 %v727, %v936
    %v975 = vadd.f32 %v728, %v939
    %v976 = vadd.f32 %v729, %v944
    %v977 = vadd.f32 %v730, %v947
    %v978 = vadd.f32 %v731, %v952
    %v979 = vadd.f32 %v732, %v955
    %v980 = vadd.f32 %v733, %v960
    %v981 = vadd.f32 %v734, %v963
    %v982 = vlaneseq
    %v983 = vshrl.u32 %v982, 7
    %v984 = vsub.s32 1, %v983
    %v985 = vrot.slane %v26, %v984
    %v986 = vmul.f32 %v804, %v985
    %v987 = vmul.f32 %v805, %v985
    %v988 = vmul.f32 %v806, %v985
    %v989 = vmul.f32 %v807, %v985
    %v990 = vmul.f32 %v808, %v985
    %v991 = vmul.f32 %v809, %v985
    %v992 = vmul.f32 %v810, %v985
    %v993 = vmul.f32 %v811, %v985
    %v994 = vmul.f32 %v812, %v985
    %v995 = vmul.f32 %v813, %v985
    %v996 = vmul.f32 %v814, %v985
    %v997 = vmul.f32 %v815, %v985
    %v998 = vmul.f32 %v816, %v985
    %v999 = vmul.f32 %v817, %v985
    %v1000 = vmul.f32 %v818, %v985
    %v1001 = vmul.f32 %v819, %v985
    %v1002 = vadd.f32 %v755, %v986
    %v1003 = vadd.f32 %v756, %v987
    %v1004 = vadd.f32 %v757, %v988
    %v1005 = vadd.f32 %v758, %v989
    %v1006 = vadd.f32 %v759, %v990
    %v1007 = vadd.f32 %v760, %v991
    %v1008 = vadd.f32 %v761, %v992
    %v1009 = vadd.f32 %v762, %v993
    %v1010 = vadd.f32 %v763, %v994
    %v1011 = vadd.f32 %v764, %v995
    %v1012 = vadd.f32 %v765, %v996
    %v1013 = vadd.f32 %v766, %v997
    %v1014 = vadd.f32 %v767, %v998
    %v1015 = vadd.f32 %v768, %v999
    %v1016 = vadd.f32 %v769, %v1000
    %v1017 = vadd.f32 %v770, %v1001
    %v1018 = vld [vmem:[#allocation2 + $0x10] sm:$0xff]
    %v1019 = vld [vmem:[#allocation2 + $0x18] sm:$0xff]
    %v1020 = vld [vmem:[#allocation2 + $0x20] sm:$0xff]
    %v1021 = vld [vmem:[#allocation2 + $0x28] sm:$0xff]
    %v1022 = vld [vmem:[#allocation2 + $0x30] sm:$0xff]
    %v1023 = vld [vmem:[#allocation2 + $0x38] sm:$0xff]
    %v1024 = vld [vmem:[#allocation2 + $0x40] sm:$0xff]
    %v1025 = vld [vmem:[#allocation2 + $0x48] sm:$0xff]
    %v1026 = vld [vmem:[#allocation2 + $0x50] sm:$0xff]
    %v1027 = vld [vmem:[#allocation2 + $0x58] sm:$0xff]
    %v1028 = vld [vmem:[#allocation2 + $0x60] sm:$0xff]
    %v1029 = vld [vmem:[#allocation2 + $0x68] sm:$0xff]
    %v1030 = vld [vmem:[#allocation2 + $0x70] sm:$0xff]
    %v1031 = vld [vmem:[#allocation2 + $0x78] sm:$0xff]
    %v1032 = vld [vmem:[#allocation2 + $0x80] sm:$0xff]
    %v1033 = vld [vmem:[#allocation2 + $0x88] sm:$0xff]
    %s1034 = scalar_lea.vmem %s1, 512
    %v1035 = vld [vmem:[%s1034] sm:$0xff]
    %v1036 = vld [vmem:[%s1034 + $0x8] sm:$0xff]
    %v1037 = vld [vmem:[%s1034 + $0x10] sm:$0xff]
    %v1038 = vld [vmem:[%s1034 + $0x18] sm:$0xff]
    %v1039 = vld [vmem:[%s1034 + $0x20] sm:$0xff]
    %v1040 = vld [vmem:[%s1034 + $0x28] sm:$0xff]
    %v1041 = vld [vmem:[%s1034 + $0x30] sm:$0xff]
    %v1042 = vld [vmem:[%s1034 + $0x38] sm:$0xff]
    %v1043 = vld [vmem:[%s1034 + $0x40] sm:$0xff]
    %v1044 = vld [vmem:[%s1034 + $0x48] sm:$0xff]
    %v1045 = vld [vmem:[%s1034 + $0x50] sm:$0xff]
    %v1046 = vld [vmem:[%s1034 + $0x58] sm:$0xff]
    %v1047 = vld [vmem:[%s1034 + $0x60] sm:$0xff]
    %v1048 = vld [vmem:[%s1034 + $0x68] sm:$0xff]
    %v1049 = vld [vmem:[%s1034 + $0x70] sm:$0xff]
    %v1050 = vld [vmem:[%s1034 + $0x78] sm:$0xff]
    %v1051 = vmul.f32 %v1018, %v1035
    %v1052 = vmul.f32 %v1019, %v1036
    %v1053 = vmul.f32 %v1020, %v1037
    %v1054 = vmul.f32 %v1021, %v1038
    %v1055 = vmul.f32 %v1022, %v1039
    %v1056 = vmul.f32 %v1023, %v1040
    %v1057 = vmul.f32 %v1024, %v1041
    %v1058 = vmul.f32 %v1025, %v1042
    %v1059 = vmul.f32 %v1026, %v1043
    %v1060 = vmul.f32 %v1027, %v1044
    %v1061 = vmul.f32 %v1028, %v1045
    %v1062 = vmul.f32 %v1029, %v1046
    %v1063 = vmul.f32 %v1030, %v1047
    %v1064 = vmul.f32 %v1031, %v1048
    %v1065 = vmul.f32 %v1032, %v1049
    %v1066 = vmul.f32 %v1033, %v1050
    %v1067 = vpack.c.bf16 %v1052, %v1051
    %v1068 = vpack.c.bf16 %v1054, %v1053
    %v1069 = vpack.c.bf16 %v1056, %v1055
    %v1070 = vpack.c.bf16 %v1058, %v1057
    %v1071 = vpack.c.bf16 %v1060, %v1059
    %v1072 = vpack.c.bf16 %v1062, %v1061
    %v1073 = vpack.c.bf16 %v1064, %v1063
    %v1074 = vpack.c.bf16 %v1066, %v1065
    %s1075 = scalar_lea.vmem %s2, 64
    %v1076 = vld [vmem:[%s1075] sm:$0xf]
    %v1077 = vld [vmem:[%s1075 + $0x4] sm:$0xf]
    %v1078 = vld [vmem:[%s1075 + $0x8] sm:$0xf]
    %v1079 = vld [vmem:[%s1075 + $0xc] sm:$0xf]
    %v1084 = vunpack.c.l.b16 %v1076
    %v1085 = vunpack.c.l.b16 %v1077
    %v1086 = vunpack.c.l.b16 %v1078
    %v1087 = vunpack.c.l.b16 %v1079
    %v1088 = vpack.c.b16 %v1085, %v1084
    %v1089 = vpack.c.b16 %v1087, %v1086
    %v1093 = vsel %vm27, %v1067, 0
    %v1096 = vsel %vm27, %v1068, 0
    %v1099 = vsel %vm27, %v1069, 0
    %v1102 = vsel %vm27, %v1070, 0
    %v1105 = vsel %vm27, %v1071, 0
    %v1108 = vsel %vm27, %v1072, 0
    %v1111 = vsel %vm27, %v1073, 0
    %v1114 = vsel %vm27, %v1074, 0
    %1116 = vmatprep.subr.bf16.mxu0 0
    %1117 = vmatpush1.bf16.msra.mxu0 0
    %1118 = vmatprep.subr.bf16.mxu0 0
    %1119 = vmatpush1.bf16.msra.mxu0 0
    %1120 = vmatprep.subr.bf16.mxu0 0
    %1121 = vmatpush1.bf16.msra.mxu0 0
    %1122 = vmatprep.subr.bf16.mxu0 0
    %1123 = vmatpush1.bf16.msra.mxu0 0
    %1124 = vmatprep.subr.bf16.mxu0 0
    %1125 = vmatpush1.bf16.msra.mxu0 0
    %1126 = vmatprep.subr.bf16.mxu0 0
    %1127 = vmatpush1.bf16.msra.mxu0 0
    %1128 = vmatprep.subr.bf16.mxu0 0
    %1129 = vmatpush1.bf16.msra.mxu0 %v1089
    %1130 = vmatprep.subr.bf16.mxu0 0
    %1131 = vmatpush1.bf16.msra.mxu0 %v1088
    %1132 = vmatprep.subr.bf16.mxu0 0
    %1133 = vmatpush2.bf16.msra.mxu0 0
    %1134 = vmatprep.subr.bf16.mxu0 0
    %1135 = vmatpush2.bf16.msra.mxu0 0
    %1136 = vmatprep.subr.bf16.mxu0 0
    %1137 = vmatpush2.bf16.msra.mxu0 0
    %1138 = vmatprep.subr.bf16.mxu0 0
    %1139 = vmatpush2.bf16.msra.mxu0 0
    %1140 = vmatprep.subr.bf16.mxu0 0
    %1141 = vmatpush2.bf16.msra.mxu0 0
    %1142 = vmatprep.subr.bf16.mxu0 0
    %1143 = vmatpush2.bf16.msra.mxu0 0
    %1144 = vmatprep.subr.bf16.mxu0 0
    %1145 = vmatpush2.bf16.msra.mxu0 0
    %1146 = vmatprep.subr.bf16.mxu0 0
    %1147 = vmatpush2.bf16.msra.mxu0 0
    %1148 = vmatprep.mubr.bf16.mxu0 0
    %1149 = vmatmul.mubr.bf16.gmra.mxu0 %v1093
    %v1150 = vpop.f32.mrf.mxu0
    %v1151 = vadd.f32 0.0, %v1150
    %v1152 = vpop.f32.mrf.mxu0
    %v1153 = vpop.f32.mrf.mxu0
    %v1154 = vadd.f32 0.0, %v1153
    %v1155 = vpop.f32.mrf.mxu0
    %1156 = vmatprep.mubr.bf16.mxu0 0
    %1157 = vmatmul.mubr.bf16.gmra.mxu0 %v1096
    %v1158 = vpop.f32.mrf.mxu0
    %v1159 = vadd.f32 0.0, %v1158
    %v1160 = vpop.f32.mrf.mxu0
    %v1161 = vpop.f32.mrf.mxu0
    %v1162 = vadd.f32 0.0, %v1161
    %v1163 = vpop.f32.mrf.mxu0
    %1164 = vmatprep.mubr.bf16.mxu0 0
    %1165 = vmatmul.mubr.bf16.gmra.mxu0 %v1099
    %v1166 = vpop.f32.mrf.mxu0
    %v1167 = vadd.f32 0.0, %v1166
    %v1168 = vpop.f32.mrf.mxu0
    %v1169 = vpop.f32.mrf.mxu0
    %v1170 = vadd.f32 0.0, %v1169
    %v1171 = vpop.f32.mrf.mxu0
    %1172 = vmatprep.mubr.bf16.mxu0 0
    %1173 = vmatmul.mubr.bf16.gmra.mxu0 %v1102
    %v1174 = vpop.f32.mrf.mxu0
    %v1175 = vadd.f32 0.0, %v1174
    %v1176 = vpop.f32.mrf.mxu0
    %v1177 = vpop.f32.mrf.mxu0
    %v1178 = vadd.f32 0.0, %v1177
    %v1179 = vpop.f32.mrf.mxu0
    %1180 = vmatprep.mubr.bf16.mxu0 0
    %1181 = vmatmul.mubr.bf16.gmra.mxu0 %v1105
    %v1182 = vpop.f32.mrf.mxu0
    %v1183 = vadd.f32 0.0, %v1182
    %v1184 = vpop.f32.mrf.mxu0
    %v1185 = vpop.f32.mrf.mxu0
    %v1186 = vadd.f32 0.0, %v1185
    %v1187 = vpop.f32.mrf.mxu0
    %1188 = vmatprep.mubr.bf16.mxu0 0
    %1189 = vmatmul.mubr.bf16.gmra.mxu0 %v1108
    %v1190 = vpop.f32.mrf.mxu0
    %v1191 = vadd.f32 0.0, %v1190
    %v1192 = vpop.f32.mrf.mxu0
    %v1193 = vpop.f32.mrf.mxu0
    %v1194 = vadd.f32 0.0, %v1193
    %v1195 = vpop.f32.mrf.mxu0
    %1196 = vmatprep.mubr.bf16.mxu0 0
    %1197 = vmatmul.mubr.bf16.gmra.mxu0 %v1111
    %v1198 = vpop.f32.mrf.mxu0
    %v1199 = vadd.f32 0.0, %v1198
    %v1200 = vpop.f32.mrf.mxu0
    %v1201 = vpop.f32.mrf.mxu0
    %v1202 = vadd.f32 0.0, %v1201
    %v1203 = vpop.f32.mrf.mxu0
    %1204 = vmatprep.mubr.bf16.mxu0 0
    %1205 = vmatmul.mubr.bf16.gmra.mxu0 %v1114
    %v1206 = vpop.f32.mrf.mxu0
    %v1207 = vadd.f32 0.0, %v1206
    %v1208 = vpop.f32.mrf.mxu0
    %v1209 = vpop.f32.mrf.mxu0
    %v1210 = vadd.f32 0.0, %v1209
    %v1211 = vpop.f32.mrf.mxu0
    %1212 = vdwg.mxu0
    %v1213 = vadd.f32 %v966, %v1151
    %v1214 = vadd.f32 %v967, %v1154
    %v1215 = vadd.f32 %v968, %v1159
    %v1216 = vadd.f32 %v969, %v1162
    %v1217 = vadd.f32 %v970, %v1167
    %v1218 = vadd.f32 %v971, %v1170
    %v1219 = vadd.f32 %v972, %v1175
    %v1220 = vadd.f32 %v973, %v1178
    %v1221 = vadd.f32 %v974, %v1183
    %v1222 = vadd.f32 %v975, %v1186
    %v1223 = vadd.f32 %v976, %v1191
    %v1224 = vadd.f32 %v977, %v1194
    %v1225 = vadd.f32 %v978, %v1199
    %v1226 = vadd.f32 %v979, %v1202
    %v1227 = vadd.f32 %v980, %v1207
    %v1228 = vadd.f32 %v981, %v1210
    %v1229 = vlaneseq
    %v1230 = vshrl.u32 %v1229, 7
    %v1231 = vsub.s32 2, %v1230
    %v1232 = vrot.slane %v26, %v1231
    %v1233 = vmul.f32 %v1051, %v1232
    %v1234 = vmul.f32 %v1052, %v1232
    %v1235 = vmul.f32 %v1053, %v1232
    %v1236 = vmul.f32 %v1054, %v1232
    %v1237 = vmul.f32 %v1055, %v1232
    %v1238 = vmul.f32 %v1056, %v1232
    %v1239 = vmul.f32 %v1057, %v1232
    %v1240 = vmul.f32 %v1058, %v1232
    %v1241 = vmul.f32 %v1059, %v1232
    %v1242 = vmul.f32 %v1060, %v1232
    %v1243 = vmul.f32 %v1061, %v1232
    %v1244 = vmul.f32 %v1062, %v1232
    %v1245 = vmul.f32 %v1063, %v1232
    %v1246 = vmul.f32 %v1064, %v1232
    %v1247 = vmul.f32 %v1065, %v1232
    %v1248 = vmul.f32 %v1066, %v1232
    %v1249 = vadd.f32 %v1002, %v1233
    %v1250 = vadd.f32 %v1003, %v1234
    %v1251 = vadd.f32 %v1004, %v1235
    %v1252 = vadd.f32 %v1005, %v1236
    %v1253 = vadd.f32 %v1006, %v1237
    %v1254 = vadd.f32 %v1007, %v1238
    %v1255 = vadd.f32 %v1008, %v1239
    %v1256 = vadd.f32 %v1009, %v1240
    %v1257 = vadd.f32 %v1010, %v1241
    %v1258 = vadd.f32 %v1011, %v1242
    %v1259 = vadd.f32 %v1012, %v1243
    %v1260 = vadd.f32 %v1013, %v1244
    %v1261 = vadd.f32 %v1014, %v1245
    %v1262 = vadd.f32 %v1015, %v1246
    %v1263 = vadd.f32 %v1016, %v1247
    %v1264 = vadd.f32 %v1017, %v1248
    %v1265 = vld [vmem:[#allocation2 + $0x11] sm:$0xff]
    %v1266 = vld [vmem:[#allocation2 + $0x19] sm:$0xff]
    %v1267 = vld [vmem:[#allocation2 + $0x21] sm:$0xff]
    %v1268 = vld [vmem:[#allocation2 + $0x29] sm:$0xff]
    %v1269 = vld [vmem:[#allocation2 + $0x31] sm:$0xff]
    %v1270 = vld [vmem:[#allocation2 + $0x39] sm:$0xff]
    %v1271 = vld [vmem:[#allocation2 + $0x41] sm:$0xff]
    %v1272 = vld [vmem:[#allocation2 + $0x49] sm:$0xff]
    %v1273 = vld [vmem:[#allocation2 + $0x51] sm:$0xff]
    %v1274 = vld [vmem:[#allocation2 + $0x59] sm:$0xff]
    %v1275 = vld [vmem:[#allocation2 + $0x61] sm:$0xff]
    %v1276 = vld [vmem:[#allocation2 + $0x69] sm:$0xff]
    %v1277 = vld [vmem:[#allocation2 + $0x71] sm:$0xff]
    %v1278 = vld [vmem:[#allocation2 + $0x79] sm:$0xff]
    %v1279 = vld [vmem:[#allocation2 + $0x81] sm:$0xff]
    %v1280 = vld [vmem:[#allocation2 + $0x89] sm:$0xff]
    %s1281 = scalar_lea.vmem %s1, 640
    %v1282 = vld [vmem:[%s1281] sm:$0xff]
    %v1283 = vld [vmem:[%s1281 + $0x8] sm:$0xff]
    %v1284 = vld [vmem:[%s1281 + $0x10] sm:$0xff]
    %v1285 = vld [vmem:[%s1281 + $0x18] sm:$0xff]
    %v1286 = vld [vmem:[%s1281 + $0x20] sm:$0xff]
    %v1287 = vld [vmem:[%s1281 + $0x28] sm:$0xff]
    %v1288 = vld [vmem:[%s1281 + $0x30] sm:$0xff]
    %v1289 = vld [vmem:[%s1281 + $0x38] sm:$0xff]
    %v1290 = vld [vmem:[%s1281 + $0x40] sm:$0xff]
    %v1291 = vld [vmem:[%s1281 + $0x48] sm:$0xff]
    %v1292 = vld [vmem:[%s1281 + $0x50] sm:$0xff]
    %v1293 = vld [vmem:[%s1281 + $0x58] sm:$0xff]
    %v1294 = vld [vmem:[%s1281 + $0x60] sm:$0xff]
    %v1295 = vld [vmem:[%s1281 + $0x68] sm:$0xff]
    %v1296 = vld [vmem:[%s1281 + $0x70] sm:$0xff]
    %v1297 = vld [vmem:[%s1281 + $0x78] sm:$0xff]
    %v1298 = vmul.f32 %v1265, %v1282
    %v1299 = vmul.f32 %v1266, %v1283
    %v1300 = vmul.f32 %v1267, %v1284
    %v1301 = vmul.f32 %v1268, %v1285
    %v1302 = vmul.f32 %v1269, %v1286
    %v1303 = vmul.f32 %v1270, %v1287
    %v1304 = vmul.f32 %v1271, %v1288
    %v1305 = vmul.f32 %v1272, %v1289
    %v1306 = vmul.f32 %v1273, %v1290
    %v1307 = vmul.f32 %v1274, %v1291
    %v1308 = vmul.f32 %v1275, %v1292
    %v1309 = vmul.f32 %v1276, %v1293
    %v1310 = vmul.f32 %v1277, %v1294
    %v1311 = vmul.f32 %v1278, %v1295
    %v1312 = vmul.f32 %v1279, %v1296
    %v1313 = vmul.f32 %v1280, %v1297
    %v1314 = vpack.c.bf16 %v1299, %v1298
    %v1315 = vpack.c.bf16 %v1301, %v1300
    %v1316 = vpack.c.bf16 %v1303, %v1302
    %v1317 = vpack.c.bf16 %v1305, %v1304
    %v1318 = vpack.c.bf16 %v1307, %v1306
    %v1319 = vpack.c.bf16 %v1309, %v1308
    %v1320 = vpack.c.bf16 %v1311, %v1310
    %v1321 = vpack.c.bf16 %v1313, %v1312
    %s1322 = scalar_lea.vmem %s2, 80
    %v1323 = vld [vmem:[%s1322] sm:$0xf]
    %v1324 = vld [vmem:[%s1322 + $0x4] sm:$0xf]
    %v1325 = vld [vmem:[%s1322 + $0x8] sm:$0xf]
    %v1326 = vld [vmem:[%s1322 + $0xc] sm:$0xf]
    %v1331 = vunpack.c.l.b16 %v1323
    %v1332 = vunpack.c.l.b16 %v1324
    %v1333 = vunpack.c.l.b16 %v1325
    %v1334 = vunpack.c.l.b16 %v1326
    %v1335 = vpack.c.b16 %v1332, %v1331
    %v1336 = vpack.c.b16 %v1334, %v1333
    %v1340 = vsel %vm27, %v1314, 0
    %v1343 = vsel %vm27, %v1315, 0
    %v1346 = vsel %vm27, %v1316, 0
    %v1349 = vsel %vm27, %v1317, 0
    %v1352 = vsel %vm27, %v1318, 0
    %v1355 = vsel %vm27, %v1319, 0
    %v1358 = vsel %vm27, %v1320, 0
    %v1361 = vsel %vm27, %v1321, 0
    %1363 = vmatprep.subr.bf16.mxu0 0
    %1364 = vmatpush1.bf16.msra.mxu0 0
    %1365 = vmatprep.subr.bf16.mxu0 0
    %1366 = vmatpush1.bf16.msra.mxu0 0
    %1367 = vmatprep.subr.bf16.mxu0 0
    %1368 = vmatpush1.bf16.msra.mxu0 0
    %1369 = vmatprep.subr.bf16.mxu0 0
    %1370 = vmatpush1.bf16.msra.mxu0 0
    %1371 = vmatprep.subr.bf16.mxu0 0
    %1372 = vmatpush1.bf16.msra.mxu0 0
    %1373 = vmatprep.subr.bf16.mxu0 0
    %1374 = vmatpush1.bf16.msra.mxu0 0
    %1375 = vmatprep.subr.bf16.mxu0 0
    %1376 = vmatpush1.bf16.msra.mxu0 %v1336
    %1377 = vmatprep.subr.bf16.mxu0 0
    %1378 = vmatpush1.bf16.msra.mxu0 %v1335
    %1379 = vmatprep.subr.bf16.mxu0 0
    %1380 = vmatpush2.bf16.msra.mxu0 0
    %1381 = vmatprep.subr.bf16.mxu0 0
    %1382 = vmatpush2.bf16.msra.mxu0 0
    %1383 = vmatprep.subr.bf16.mxu0 0
    %1384 = vmatpush2.bf16.msra.mxu0 0
    %1385 = vmatprep.subr.bf16.mxu0 0
    %1386 = vmatpush2.bf16.msra.mxu0 0
    %1387 = vmatprep.subr.bf16.mxu0 0
    %1388 = vmatpush2.bf16.msra.mxu0 0
    %1389 = vmatprep.subr.bf16.mxu0 0
    %1390 = vmatpush2.bf16.msra.mxu0 0
    %1391 = vmatprep.subr.bf16.mxu0 0
    %1392 = vmatpush2.bf16.msra.mxu0 0
    %1393 = vmatprep.subr.bf16.mxu0 0
    %1394 = vmatpush2.bf16.msra.mxu0 0
    %1395 = vmatprep.mubr.bf16.mxu0 0
    %1396 = vmatmul.mubr.bf16.gmra.mxu0 %v1340
    %v1397 = vpop.f32.mrf.mxu0
    %v1398 = vadd.f32 0.0, %v1397
    %v1399 = vpop.f32.mrf.mxu0
    %v1400 = vpop.f32.mrf.mxu0
    %v1401 = vadd.f32 0.0, %v1400
    %v1402 = vpop.f32.mrf.mxu0
    %1403 = vmatprep.mubr.bf16.mxu0 0
    %1404 = vmatmul.mubr.bf16.gmra.mxu0 %v1343
    %v1405 = vpop.f32.mrf.mxu0
    %v1406 = vadd.f32 0.0, %v1405
    %v1407 = vpop.f32.mrf.mxu0
    %v1408 = vpop.f32.mrf.mxu0
    %v1409 = vadd.f32 0.0, %v1408
    %v1410 = vpop.f32.mrf.mxu0
    %1411 = vmatprep.mubr.bf16.mxu0 0
    %1412 = vmatmul.mubr.bf16.gmra.mxu0 %v1346
    %v1413 = vpop.f32.mrf.mxu0
    %v1414 = vadd.f32 0.0, %v1413
    %v1415 = vpop.f32.mrf.mxu0
    %v1416 = vpop.f32.mrf.mxu0
    %v1417 = vadd.f32 0.0, %v1416
    %v1418 = vpop.f32.mrf.mxu0
    %1419 = vmatprep.mubr.bf16.mxu0 0
    %1420 = vmatmul.mubr.bf16.gmra.mxu0 %v1349
    %v1421 = vpop.f32.mrf.mxu0
    %v1422 = vadd.f32 0.0, %v1421
    %v1423 = vpop.f32.mrf.mxu0
    %v1424 = vpop.f32.mrf.mxu0
    %v1425 = vadd.f32 0.0, %v1424
    %v1426 = vpop.f32.mrf.mxu0
    %1427 = vmatprep.mubr.bf16.mxu0 0
    %1428 = vmatmul.mubr.bf16.gmra.mxu0 %v1352
    %v1429 = vpop.f32.mrf.mxu0
    %v1430 = vadd.f32 0.0, %v1429
    %v1431 = vpop.f32.mrf.mxu0
    %v1432 = vpop.f32.mrf.mxu0
    %v1433 = vadd.f32 0.0, %v1432
    %v1434 = vpop.f32.mrf.mxu0
    %1435 = vmatprep.mubr.bf16.mxu0 0
    %1436 = vmatmul.mubr.bf16.gmra.mxu0 %v1355
    %v1437 = vpop.f32.mrf.mxu0
    %v1438 = vadd.f32 0.0, %v1437
    %v1439 = vpop.f32.mrf.mxu0
    %v1440 = vpop.f32.mrf.mxu0
    %v1441 = vadd.f32 0.0, %v1440
    %v1442 = vpop.f32.mrf.mxu0
    %1443 = vmatprep.mubr.bf16.mxu0 0
    %1444 = vmatmul.mubr.bf16.gmra.mxu0 %v1358
    %v1445 = vpop.f32.mrf.mxu0
    %v1446 = vadd.f32 0.0, %v1445
    %v1447 = vpop.f32.mrf.mxu0
    %v1448 = vpop.f32.mrf.mxu0
    %v1449 = vadd.f32 0.0, %v1448
    %v1450 = vpop.f32.mrf.mxu0
    %1451 = vmatprep.mubr.bf16.mxu0 0
    %1452 = vmatmul.mubr.bf16.gmra.mxu0 %v1361
    %v1453 = vpop.f32.mrf.mxu0
    %v1454 = vadd.f32 0.0, %v1453
    %v1455 = vpop.f32.mrf.mxu0
    %v1456 = vpop.f32.mrf.mxu0
    %v1457 = vadd.f32 0.0, %v1456
    %v1458 = vpop.f32.mrf.mxu0
    %1459 = vdwg.mxu0
    %v1460 = vadd.f32 %v1213, %v1398
    %v1461 = vadd.f32 %v1214, %v1401
    %v1462 = vadd.f32 %v1215, %v1406
    %v1463 = vadd.f32 %v1216, %v1409
    %v1464 = vadd.f32 %v1217, %v1414
    %v1465 = vadd.f32 %v1218, %v1417
    %v1466 = vadd.f32 %v1219, %v1422
    %v1467 = vadd.f32 %v1220, %v1425
    %v1468 = vadd.f32 %v1221, %v1430
    %v1469 = vadd.f32 %v1222, %v1433
    %v1470 = vadd.f32 %v1223, %v1438
    %v1471 = vadd.f32 %v1224, %v1441
    %v1472 = vadd.f32 %v1225, %v1446
    %v1473 = vadd.f32 %v1226, %v1449
    %v1474 = vadd.f32 %v1227, %v1454
    %v1475 = vadd.f32 %v1228, %v1457
    %v1476 = vlaneseq
    %v1477 = vshrl.u32 %v1476, 7
    %v1478 = vsub.s32 3, %v1477
    %v1479 = vrot.slane %v26, %v1478
    %v1480 = vmul.f32 %v1298, %v1479
    %v1481 = vmul.f32 %v1299, %v1479
    %v1482 = vmul.f32 %v1300, %v1479
    %v1483 = vmul.f32 %v1301, %v1479
    %v1484 = vmul.f32 %v1302, %v1479
    %v1485 = vmul.f32 %v1303, %v1479
    %v1486 = vmul.f32 %v1304, %v1479
    %v1487 = vmul.f32 %v1305, %v1479
    %v1488 = vmul.f32 %v1306, %v1479
    %v1489 = vmul.f32 %v1307, %v1479
    %v1490 = vmul.f32 %v1308, %v1479
    %v1491 = vmul.f32 %v1309, %v1479
    %v1492 = vmul.f32 %v1310, %v1479
    %v1493 = vmul.f32 %v1311, %v1479
    %v1494 = vmul.f32 %v1312, %v1479
    %v1495 = vmul.f32 %v1313, %v1479
    %v1496 = vadd.f32 %v1249, %v1480
    %v1497 = vadd.f32 %v1250, %v1481
    %v1498 = vadd.f32 %v1251, %v1482
    %v1499 = vadd.f32 %v1252, %v1483
    %v1500 = vadd.f32 %v1253, %v1484
    %v1501 = vadd.f32 %v1254, %v1485
    %v1502 = vadd.f32 %v1255, %v1486
    %v1503 = vadd.f32 %v1256, %v1487
    %v1504 = vadd.f32 %v1257, %v1488
    %v1505 = vadd.f32 %v1258, %v1489
    %v1506 = vadd.f32 %v1259, %v1490
    %v1507 = vadd.f32 %v1260, %v1491
    %v1508 = vadd.f32 %v1261, %v1492
    %v1509 = vadd.f32 %v1262, %v1493
    %v1510 = vadd.f32 %v1263, %v1494
    %v1511 = vadd.f32 %v1264, %v1495
    %v1512 = vld [vmem:[#allocation2 + $0x17] sm:$0xff]
    %v1513 = vld [vmem:[#allocation2 + $0x1f] sm:$0xff]
    %v1514 = vld [vmem:[#allocation2 + $0x27] sm:$0xff]
    %v1515 = vld [vmem:[#allocation2 + $0x2f] sm:$0xff]
    %v1516 = vld [vmem:[#allocation2 + $0x37] sm:$0xff]
    %v1517 = vld [vmem:[#allocation2 + $0x3f] sm:$0xff]
    %v1518 = vld [vmem:[#allocation2 + $0x47] sm:$0xff]
    %v1519 = vld [vmem:[#allocation2 + $0x4f] sm:$0xff]
    %v1520 = vld [vmem:[#allocation2 + $0x57] sm:$0xff]
    %v1521 = vld [vmem:[#allocation2 + $0x5f] sm:$0xff]
    %v1522 = vld [vmem:[#allocation2 + $0x67] sm:$0xff]
    %v1523 = vld [vmem:[#allocation2 + $0x6f] sm:$0xff]
    %v1524 = vld [vmem:[#allocation2 + $0x77] sm:$0xff]
    %v1525 = vld [vmem:[#allocation2 + $0x7f] sm:$0xff]
    %v1526 = vld [vmem:[#allocation2 + $0x87] sm:$0xff]
    %v1527 = vld [vmem:[#allocation2 + $0x8f] sm:$0xff]
    %s1528 = scalar_lea.vmem %s1, 768
    %v1529 = vld [vmem:[%s1528] sm:$0xff]
    %v1530 = vld [vmem:[%s1528 + $0x8] sm:$0xff]
    %v1531 = vld [vmem:[%s1528 + $0x10] sm:$0xff]
    %v1532 = vld [vmem:[%s1528 + $0x18] sm:$0xff]
    %v1533 = vld [vmem:[%s1528 + $0x20] sm:$0xff]
    %v1534 = vld [vmem:[%s1528 + $0x28] sm:$0xff]
    %v1535 = vld [vmem:[%s1528 + $0x30] sm:$0xff]
    %v1536 = vld [vmem:[%s1528 + $0x38] sm:$0xff]
    %v1537 = vld [vmem:[%s1528 + $0x40] sm:$0xff]
    %v1538 = vld [vmem:[%s1528 + $0x48] sm:$0xff]
    %v1539 = vld [vmem:[%s1528 + $0x50] sm:$0xff]
    %v1540 = vld [vmem:[%s1528 + $0x58] sm:$0xff]
    %v1541 = vld [vmem:[%s1528 + $0x60] sm:$0xff]
    %v1542 = vld [vmem:[%s1528 + $0x68] sm:$0xff]
    %v1543 = vld [vmem:[%s1528 + $0x70] sm:$0xff]
    %v1544 = vld [vmem:[%s1528 + $0x78] sm:$0xff]
    %v1545 = vmul.f32 %v1512, %v1529
    %v1546 = vmul.f32 %v1513, %v1530
    %v1547 = vmul.f32 %v1514, %v1531
    %v1548 = vmul.f32 %v1515, %v1532
    %v1549 = vmul.f32 %v1516, %v1533
    %v1550 = vmul.f32 %v1517, %v1534
    %v1551 = vmul.f32 %v1518, %v1535
    %v1552 = vmul.f32 %v1519, %v1536
    %v1553 = vmul.f32 %v1520, %v1537
    %v1554 = vmul.f32 %v1521, %v1538
    %v1555 = vmul.f32 %v1522, %v1539
    %v1556 = vmul.f32 %v1523, %v1540
    %v1557 = vmul.f32 %v1524, %v1541
    %v1558 = vmul.f32 %v1525, %v1542
    %v1559 = vmul.f32 %v1526, %v1543
    %v1560 = vmul.f32 %v1527, %v1544
    %v1561 = vpack.c.bf16 %v1546, %v1545
    %v1562 = vpack.c.bf16 %v1548, %v1547
    %v1563 = vpack.c.bf16 %v1550, %v1549
    %v1564 = vpack.c.bf16 %v1552, %v1551
    %v1565 = vpack.c.bf16 %v1554, %v1553
    %v1566 = vpack.c.bf16 %v1556, %v1555
    %v1567 = vpack.c.bf16 %v1558, %v1557
    %v1568 = vpack.c.bf16 %v1560, %v1559
    %s1569 = scalar_lea.vmem %s2, 96
    %v1570 = vld [vmem:[%s1569] sm:$0xf]
    %v1571 = vld [vmem:[%s1569 + $0x4] sm:$0xf]
    %v1572 = vld [vmem:[%s1569 + $0x8] sm:$0xf]
    %v1573 = vld [vmem:[%s1569 + $0xc] sm:$0xf]
    %v1578 = vunpack.c.l.b16 %v1570
    %v1579 = vunpack.c.l.b16 %v1571
    %v1580 = vunpack.c.l.b16 %v1572
    %v1581 = vunpack.c.l.b16 %v1573
    %v1582 = vpack.c.b16 %v1579, %v1578
    %v1583 = vpack.c.b16 %v1581, %v1580
    %v1587 = vsel %vm27, %v1561, 0
    %v1590 = vsel %vm27, %v1562, 0
    %v1593 = vsel %vm27, %v1563, 0
    %v1596 = vsel %vm27, %v1564, 0
    %v1599 = vsel %vm27, %v1565, 0
    %v1602 = vsel %vm27, %v1566, 0
    %v1605 = vsel %vm27, %v1567, 0
    %v1608 = vsel %vm27, %v1568, 0
    %1610 = vmatprep.subr.bf16.mxu0 0
    %1611 = vmatpush1.bf16.msra.mxu0 0
    %1612 = vmatprep.subr.bf16.mxu0 0
    %1613 = vmatpush1.bf16.msra.mxu0 0
    %1614 = vmatprep.subr.bf16.mxu0 0
    %1615 = vmatpush1.bf16.msra.mxu0 0
    %1616 = vmatprep.subr.bf16.mxu0 0
    %1617 = vmatpush1.bf16.msra.mxu0 0
    %1618 = vmatprep.subr.bf16.mxu0 0
    %1619 = vmatpush1.bf16.msra.mxu0 0
    %1620 = vmatprep.subr.bf16.mxu0 0
    %1621 = vmatpush1.bf16.msra.mxu0 0
    %1622 = vmatprep.subr.bf16.mxu0 0
    %1623 = vmatpush1.bf16.msra.mxu0 %v1583
    %1624 = vmatprep.subr.bf16.mxu0 0
    %1625 = vmatpush1.bf16.msra.mxu0 %v1582
    %1626 = vmatprep.subr.bf16.mxu0 0
    %1627 = vmatpush2.bf16.msra.mxu0 0
    %1628 = vmatprep.subr.bf16.mxu0 0
    %1629 = vmatpush2.bf16.msra.mxu0 0
    %1630 = vmatprep.subr.bf16.mxu0 0
    %1631 = vmatpush2.bf16.msra.mxu0 0
    %1632 = vmatprep.subr.bf16.mxu0 0
    %1633 = vmatpush2.bf16.msra.mxu0 0
    %1634 = vmatprep.subr.bf16.mxu0 0
    %1635 = vmatpush2.bf16.msra.mxu0 0
    %1636 = vmatprep.subr.bf16.mxu0 0
    %1637 = vmatpush2.bf16.msra.mxu0 0
    %1638 = vmatprep.subr.bf16.mxu0 0
    %1639 = vmatpush2.bf16.msra.mxu0 0
    %1640 = vmatprep.subr.bf16.mxu0 0
    %1641 = vmatpush2.bf16.msra.mxu0 0
    %1642 = vmatprep.mubr.bf16.mxu0 0
    %1643 = vmatmul.mubr.bf16.gmra.mxu0 %v1587
    %v1644 = vpop.f32.mrf.mxu0
    %v1645 = vadd.f32 0.0, %v1644
    %v1646 = vpop.f32.mrf.mxu0
    %v1647 = vpop.f32.mrf.mxu0
    %v1648 = vadd.f32 0.0, %v1647
    %v1649 = vpop.f32.mrf.mxu0
    %1650 = vmatprep.mubr.bf16.mxu0 0
    %1651 = vmatmul.mubr.bf16.gmra.mxu0 %v1590
    %v1652 = vpop.f32.mrf.mxu0
    %v1653 = vadd.f32 0.0, %v1652
    %v1654 = vpop.f32.mrf.mxu0
    %v1655 = vpop.f32.mrf.mxu0
    %v1656 = vadd.f32 0.0, %v1655
    %v1657 = vpop.f32.mrf.mxu0
    %1658 = vmatprep.mubr.bf16.mxu0 0
    %1659 = vmatmul.mubr.bf16.gmra.mxu0 %v1593
    %v1660 = vpop.f32.mrf.mxu0
    %v1661 = vadd.f32 0.0, %v1660
    %v1662 = vpop.f32.mrf.mxu0
    %v1663 = vpop.f32.mrf.mxu0
    %v1664 = vadd.f32 0.0, %v1663
    %v1665 = vpop.f32.mrf.mxu0
    %1666 = vmatprep.mubr.bf16.mxu0 0
    %1667 = vmatmul.mubr.bf16.gmra.mxu0 %v1596
    %v1668 = vpop.f32.mrf.mxu0
    %v1669 = vadd.f32 0.0, %v1668
    %v1670 = vpop.f32.mrf.mxu0
    %v1671 = vpop.f32.mrf.mxu0
    %v1672 = vadd.f32 0.0, %v1671
    %v1673 = vpop.f32.mrf.mxu0
    %1674 = vmatprep.mubr.bf16.mxu0 0
    %1675 = vmatmul.mubr.bf16.gmra.mxu0 %v1599
    %v1676 = vpop.f32.mrf.mxu0
    %v1677 = vadd.f32 0.0, %v1676
    %v1678 = vpop.f32.mrf.mxu0
    %v1679 = vpop.f32.mrf.mxu0
    %v1680 = vadd.f32 0.0, %v1679
    %v1681 = vpop.f32.mrf.mxu0
    %1682 = vmatprep.mubr.bf16.mxu0 0
    %1683 = vmatmul.mubr.bf16.gmra.mxu0 %v1602
    %v1684 = vpop.f32.mrf.mxu0
    %v1685 = vadd.f32 0.0, %v1684
    %v1686 = vpop.f32.mrf.mxu0
    %v1687 = vpop.f32.mrf.mxu0
    %v1688 = vadd.f32 0.0, %v1687
    %v1689 = vpop.f32.mrf.mxu0
    %1690 = vmatprep.mubr.bf16.mxu0 0
    %1691 = vmatmul.mubr.bf16.gmra.mxu0 %v1605
    %v1692 = vpop.f32.mrf.mxu0
    %v1693 = vadd.f32 0.0, %v1692
    %v1694 = vpop.f32.mrf.mxu0
    %v1695 = vpop.f32.mrf.mxu0
    %v1696 = vadd.f32 0.0, %v1695
    %v1697 = vpop.f32.mrf.mxu0
    %1698 = vmatprep.mubr.bf16.mxu0 0
    %1699 = vmatmul.mubr.bf16.gmra.mxu0 %v1608
    %v1700 = vpop.f32.mrf.mxu0
    %v1701 = vadd.f32 0.0, %v1700
    %v1702 = vpop.f32.mrf.mxu0
    %v1703 = vpop.f32.mrf.mxu0
    %v1704 = vadd.f32 0.0, %v1703
    %v1705 = vpop.f32.mrf.mxu0
    %1706 = vdwg.mxu0
    %v1707 = vadd.f32 %v1460, %v1645
    %v1708 = vadd.f32 %v1461, %v1648
    %v1709 = vadd.f32 %v1462, %v1653
    %v1710 = vadd.f32 %v1463, %v1656
    %v1711 = vadd.f32 %v1464, %v1661
    %v1712 = vadd.f32 %v1465, %v1664
    %v1713 = vadd.f32 %v1466, %v1669
    %v1714 = vadd.f32 %v1467, %v1672
    %v1715 = vadd.f32 %v1468, %v1677
    %v1716 = vadd.f32 %v1469, %v1680
    %v1717 = vadd.f32 %v1470, %v1685
    %v1718 = vadd.f32 %v1471, %v1688
    %v1719 = vadd.f32 %v1472, %v1693
    %v1720 = vadd.f32 %v1473, %v1696
    %v1721 = vadd.f32 %v1474, %v1701
    %v1722 = vadd.f32 %v1475, %v1704
    %v1723 = vlaneseq
    %v1724 = vshrl.u32 %v1723, 7
    %v1725 = vsub.s32 4, %v1724
    %v1726 = vrot.slane %v26, %v1725
    %v1727 = vmul.f32 %v1545, %v1726
    %v1728 = vmul.f32 %v1546, %v1726
    %v1729 = vmul.f32 %v1547, %v1726
    %v1730 = vmul.f32 %v1548, %v1726
    %v1731 = vmul.f32 %v1549, %v1726
    %v1732 = vmul.f32 %v1550, %v1726
    %v1733 = vmul.f32 %v1551, %v1726
    %v1734 = vmul.f32 %v1552, %v1726
    %v1735 = vmul.f32 %v1553, %v1726
    %v1736 = vmul.f32 %v1554, %v1726
    %v1737 = vmul.f32 %v1555, %v1726
    %v1738 = vmul.f32 %v1556, %v1726
    %v1739 = vmul.f32 %v1557, %v1726
    %v1740 = vmul.f32 %v1558, %v1726
    %v1741 = vmul.f32 %v1559, %v1726
    %v1742 = vmul.f32 %v1560, %v1726
    %v1743 = vadd.f32 %v1496, %v1727
    %v1744 = vadd.f32 %v1497, %v1728
    %v1745 = vadd.f32 %v1498, %v1729
    %v1746 = vadd.f32 %v1499, %v1730
    %v1747 = vadd.f32 %v1500, %v1731
    %v1748 = vadd.f32 %v1501, %v1732
    %v1749 = vadd.f32 %v1502, %v1733
    %v1750 = vadd.f32 %v1503, %v1734
    %v1751 = vadd.f32 %v1504, %v1735
    %v1752 = vadd.f32 %v1505, %v1736
    %v1753 = vadd.f32 %v1506, %v1737
    %v1754 = vadd.f32 %v1507, %v1738
    %v1755 = vadd.f32 %v1508, %v1739
    %v1756 = vadd.f32 %v1509, %v1740
    %v1757 = vadd.f32 %v1510, %v1741
    %v1758 = vadd.f32 %v1511, %v1742
    %v1759 = vld [vmem:[#allocation2 + $0x18] sm:$0xff]
    %v1760 = vld [vmem:[#allocation2 + $0x20] sm:$0xff]
    %v1761 = vld [vmem:[#allocation2 + $0x28] sm:$0xff]
    %v1762 = vld [vmem:[#allocation2 + $0x30] sm:$0xff]
    %v1763 = vld [vmem:[#allocation2 + $0x38] sm:$0xff]
    %v1764 = vld [vmem:[#allocation2 + $0x40] sm:$0xff]
    %v1765 = vld [vmem:[#allocation2 + $0x48] sm:$0xff]
    %v1766 = vld [vmem:[#allocation2 + $0x50] sm:$0xff]
    %v1767 = vld [vmem:[#allocation2 + $0x58] sm:$0xff]
    %v1768 = vld [vmem:[#allocation2 + $0x60] sm:$0xff]
    %v1769 = vld [vmem:[#allocation2 + $0x68] sm:$0xff]
    %v1770 = vld [vmem:[#allocation2 + $0x70] sm:$0xff]
    %v1771 = vld [vmem:[#allocation2 + $0x78] sm:$0xff]
    %v1772 = vld [vmem:[#allocation2 + $0x80] sm:$0xff]
    %v1773 = vld [vmem:[#allocation2 + $0x88] sm:$0xff]
    %v1774 = vld [vmem:[#allocation2 + $0x90] sm:$0xff]
    %s1775 = scalar_lea.vmem %s1, 896
    %v1776 = vld [vmem:[%s1775] sm:$0xff]
    %v1777 = vld [vmem:[%s1775 + $0x8] sm:$0xff]
    %v1778 = vld [vmem:[%s1775 + $0x10] sm:$0xff]
    %v1779 = vld [vmem:[%s1775 + $0x18] sm:$0xff]
    %v1780 = vld [vmem:[%s1775 + $0x20] sm:$0xff]
    %v1781 = vld [vmem:[%s1775 + $0x28] sm:$0xff]
    %v1782 = vld [vmem:[%s1775 + $0x30] sm:$0xff]
    %v1783 = vld [vmem:[%s1775 + $0x38] sm:$0xff]
    %v1784 = vld [vmem:[%s1775 + $0x40] sm:$0xff]
    %v1785 = vld [vmem:[%s1775 + $0x48] sm:$0xff]
    %v1786 = vld [vmem:[%s1775 + $0x50] sm:$0xff]
    %v1787 = vld [vmem:[%s1775 + $0x58] sm:$0xff]
    %v1788 = vld [vmem:[%s1775 + $0x60] sm:$0xff]
    %v1789 = vld [vmem:[%s1775 + $0x68] sm:$0xff]
    %v1790 = vld [vmem:[%s1775 + $0x70] sm:$0xff]
    %v1791 = vld [vmem:[%s1775 + $0x78] sm:$0xff]
    %v1792 = vmul.f32 %v1759, %v1776
    %v1793 = vmul.f32 %v1760, %v1777
    %v1794 = vmul.f32 %v1761, %v1778
    %v1795 = vmul.f32 %v1762, %v1779
    %v1796 = vmul.f32 %v1763, %v1780
    %v1797 = vmul.f32 %v1764, %v1781
    %v1798 = vmul.f32 %v1765, %v1782
    %v1799 = vmul.f32 %v1766, %v1783
    %v1800 = vmul.f32 %v1767, %v1784
    %v1801 = vmul.f32 %v1768, %v1785
    %v1802 = vmul.f32 %v1769, %v1786
    %v1803 = vmul.f32 %v1770, %v1787
    %v1804 = vmul.f32 %v1771, %v1788
    %v1805 = vmul.f32 %v1772, %v1789
    %v1806 = vmul.f32 %v1773, %v1790
    %v1807 = vmul.f32 %v1774, %v1791
    %v1808 = vpack.c.bf16 %v1793, %v1792
    %v1809 = vpack.c.bf16 %v1795, %v1794
    %v1810 = vpack.c.bf16 %v1797, %v1796
    %v1811 = vpack.c.bf16 %v1799, %v1798
    %v1812 = vpack.c.bf16 %v1801, %v1800
    %v1813 = vpack.c.bf16 %v1803, %v1802
    %v1814 = vpack.c.bf16 %v1805, %v1804
    %v1815 = vpack.c.bf16 %v1807, %v1806
    %s1816 = scalar_lea.vmem %s2, 112
    %v1817 = vld [vmem:[%s1816] sm:$0xf]
    %v1818 = vld [vmem:[%s1816 + $0x4] sm:$0xf]
    %v1819 = vld [vmem:[%s1816 + $0x8] sm:$0xf]
    %v1820 = vld [vmem:[%s1816 + $0xc] sm:$0xf]
    %v1825 = vunpack.c.l.b16 %v1817
    %v1826 = vunpack.c.l.b16 %v1818
    %v1827 = vunpack.c.l.b16 %v1819
    %v1828 = vunpack.c.l.b16 %v1820
    %v1829 = vpack.c.b16 %v1826, %v1825
    %v1830 = vpack.c.b16 %v1828, %v1827
    %v1834 = vsel %vm27, %v1808, 0
    %v1837 = vsel %vm27, %v1809, 0
    %v1840 = vsel %vm27, %v1810, 0
    %v1843 = vsel %vm27, %v1811, 0
    %v1846 = vsel %vm27, %v1812, 0
    %v1849 = vsel %vm27, %v1813, 0
    %v1852 = vsel %vm27, %v1814, 0
    %v1855 = vsel %vm27, %v1815, 0
    %1857 = vmatprep.subr.bf16.mxu0 0
    %1858 = vmatpush1.bf16.msra.mxu0 0
    %1859 = vmatprep.subr.bf16.mxu0 0
    %1860 = vmatpush1.bf16.msra.mxu0 0
    %1861 = vmatprep.subr.bf16.mxu0 0
    %1862 = vmatpush1.bf16.msra.mxu0 0
    %1863 = vmatprep.subr.bf16.mxu0 0
    %1864 = vmatpush1.bf16.msra.mxu0 0
    %1865 = vmatprep.subr.bf16.mxu0 0
    %1866 = vmatpush1.bf16.msra.mxu0 0
    %1867 = vmatprep.subr.bf16.mxu0 0
    %1868 = vmatpush1.bf16.msra.mxu0 0
    %1869 = vmatprep.subr.bf16.mxu0 0
    %1870 = vmatpush1.bf16.msra.mxu0 %v1830
    %1871 = vmatprep.subr.bf16.mxu0 0
    %1872 = vmatpush1.bf16.msra.mxu0 %v1829
    %1873 = vmatprep.subr.bf16.mxu0 0
    %1874 = vmatpush2.bf16.msra.mxu0 0
    %1875 = vmatprep.subr.bf16.mxu0 0
    %1876 = vmatpush2.bf16.msra.mxu0 0
    %1877 = vmatprep.subr.bf16.mxu0 0
    %1878 = vmatpush2.bf16.msra.mxu0 0
    %1879 = vmatprep.subr.bf16.mxu0 0
    %1880 = vmatpush2.bf16.msra.mxu0 0
    %1881 = vmatprep.subr.bf16.mxu0 0
    %1882 = vmatpush2.bf16.msra.mxu0 0
    %1883 = vmatprep.subr.bf16.mxu0 0
    %1884 = vmatpush2.bf16.msra.mxu0 0
    %1885 = vmatprep.subr.bf16.mxu0 0
    %1886 = vmatpush2.bf16.msra.mxu0 0
    %1887 = vmatprep.subr.bf16.mxu0 0
    %1888 = vmatpush2.bf16.msra.mxu0 0
    %1889 = vmatprep.mubr.bf16.mxu0 0
    %1890 = vmatmul.mubr.bf16.gmra.mxu0 %v1834
    %v1891 = vpop.f32.mrf.mxu0
    %v1892 = vadd.f32 0.0, %v1891
    %v1893 = vpop.f32.mrf.mxu0
    %v1894 = vpop.f32.mrf.mxu0
    %v1895 = vadd.f32 0.0, %v1894
    %v1896 = vpop.f32.mrf.mxu0
    %1897 = vmatprep.mubr.bf16.mxu0 0
    %1898 = vmatmul.mubr.bf16.gmra.mxu0 %v1837
    %v1899 = vpop.f32.mrf.mxu0
    %v1900 = vadd.f32 0.0, %v1899
    %v1901 = vpop.f32.mrf.mxu0
    %v1902 = vpop.f32.mrf.mxu0
    %v1903 = vadd.f32 0.0, %v1902
    %v1904 = vpop.f32.mrf.mxu0
    %1905 = vmatprep.mubr.bf16.mxu0 0
    %1906 = vmatmul.mubr.bf16.gmra.mxu0 %v1840
    %v1907 = vpop.f32.mrf.mxu0
    %v1908 = vadd.f32 0.0, %v1907
    %v1909 = vpop.f32.mrf.mxu0
    %v1910 = vpop.f32.mrf.mxu0
    %v1911 = vadd.f32 0.0, %v1910
    %v1912 = vpop.f32.mrf.mxu0
    %1913 = vmatprep.mubr.bf16.mxu0 0
    %1914 = vmatmul.mubr.bf16.gmra.mxu0 %v1843
    %v1915 = vpop.f32.mrf.mxu0
    %v1916 = vadd.f32 0.0, %v1915
    %v1917 = vpop.f32.mrf.mxu0
    %v1918 = vpop.f32.mrf.mxu0
    %v1919 = vadd.f32 0.0, %v1918
    %v1920 = vpop.f32.mrf.mxu0
    %1921 = vmatprep.mubr.bf16.mxu0 0
    %1922 = vmatmul.mubr.bf16.gmra.mxu0 %v1846
    %v1923 = vpop.f32.mrf.mxu0
    %v1924 = vadd.f32 0.0, %v1923
    %v1925 = vpop.f32.mrf.mxu0
    %v1926 = vpop.f32.mrf.mxu0
    %v1927 = vadd.f32 0.0, %v1926
    %v1928 = vpop.f32.mrf.mxu0
    %1929 = vmatprep.mubr.bf16.mxu0 0
    %1930 = vmatmul.mubr.bf16.gmra.mxu0 %v1849
    %v1931 = vpop.f32.mrf.mxu0
    %v1932 = vadd.f32 0.0, %v1931
    %v1933 = vpop.f32.mrf.mxu0
    %v1934 = vpop.f32.mrf.mxu0
    %v1935 = vadd.f32 0.0, %v1934
    %v1936 = vpop.f32.mrf.mxu0
    %1937 = vmatprep.mubr.bf16.mxu0 0
    %1938 = vmatmul.mubr.bf16.gmra.mxu0 %v1852
    %v1939 = vpop.f32.mrf.mxu0
    %v1940 = vadd.f32 0.0, %v1939
    %v1941 = vpop.f32.mrf.mxu0
    %v1942 = vpop.f32.mrf.mxu0
    %v1943 = vadd.f32 0.0, %v1942
    %v1944 = vpop.f32.mrf.mxu0
    %1945 = vmatprep.mubr.bf16.mxu0 0
    %1946 = vmatmul.mubr.bf16.gmra.mxu0 %v1855
    %v1947 = vpop.f32.mrf.mxu0
    %v1948 = vadd.f32 0.0, %v1947
    %v1949 = vpop.f32.mrf.mxu0
    %v1950 = vpop.f32.mrf.mxu0
    %v1951 = vadd.f32 0.0, %v1950
    %v1952 = vpop.f32.mrf.mxu0
    %1953 = vdwg.mxu0
    %v1954 = vadd.f32 %v1707, %v1892
    %v1955 = vadd.f32 %v1708, %v1895
    %v1956 = vadd.f32 %v1709, %v1900
    %v1957 = vadd.f32 %v1710, %v1903
    %v1958 = vadd.f32 %v1711, %v1908
    %v1959 = vadd.f32 %v1712, %v1911
    %v1960 = vadd.f32 %v1713, %v1916
    %v1961 = vadd.f32 %v1714, %v1919
    %v1962 = vadd.f32 %v1715, %v1924
    %v1963 = vadd.f32 %v1716, %v1927
    %v1964 = vadd.f32 %v1717, %v1932
    %v1965 = vadd.f32 %v1718, %v1935
    %v1966 = vadd.f32 %v1719, %v1940
    %v1967 = vadd.f32 %v1720, %v1943
    %v1968 = vadd.f32 %v1721, %v1948
    %v1969 = vadd.f32 %v1722, %v1951
    %v1970 = vlaneseq
    %v1971 = vshrl.u32 %v1970, 7
    %v1972 = vsub.s32 5, %v1971
    %v1973 = vrot.slane %v26, %v1972
    %v1974 = vmul.f32 %v1792, %v1973
    %v1975 = vmul.f32 %v1793, %v1973
    %v1976 = vmul.f32 %v1794, %v1973
    %v1977 = vmul.f32 %v1795, %v1973
    %v1978 = vmul.f32 %v1796, %v1973
    %v1979 = vmul.f32 %v1797, %v1973
    %v1980 = vmul.f32 %v1798, %v1973
    %v1981 = vmul.f32 %v1799, %v1973
    %v1982 = vmul.f32 %v1800, %v1973
    %v1983 = vmul.f32 %v1801, %v1973
    %v1984 = vmul.f32 %v1802, %v1973
    %v1985 = vmul.f32 %v1803, %v1973
    %v1986 = vmul.f32 %v1804, %v1973
    %v1987 = vmul.f32 %v1805, %v1973
    %v1988 = vmul.f32 %v1806, %v1973
    %v1989 = vmul.f32 %v1807, %v1973
    %v1990 = vadd.f32 %v1743, %v1974
    %v1991 = vadd.f32 %v1744, %v1975
    %v1992 = vadd.f32 %v1745, %v1976
    %v1993 = vadd.f32 %v1746, %v1977
    %v1994 = vadd.f32 %v1747, %v1978
    %v1995 = vadd.f32 %v1748, %v1979
    %v1996 = vadd.f32 %v1749, %v1980
    %v1997 = vadd.f32 %v1750, %v1981
    %v1998 = vadd.f32 %v1751, %v1982
    %v1999 = vadd.f32 %v1752, %v1983
    %v2000 = vadd.f32 %v1753, %v1984
    %v2001 = vadd.f32 %v1754, %v1985
    %v2002 = vadd.f32 %v1755, %v1986
    %v2003 = vadd.f32 %v1756, %v1987
    %v2004 = vadd.f32 %v1757, %v1988
    %v2005 = vadd.f32 %v1758, %v1989
    %v2006 = vld [vmem:[#allocation2 + $0x19] sm:$0xff]
    %v2007 = vld [vmem:[#allocation2 + $0x21] sm:$0xff]
    %v2008 = vld [vmem:[#allocation2 + $0x29] sm:$0xff]
    %v2009 = vld [vmem:[#allocation2 + $0x31] sm:$0xff]
    %v2010 = vld [vmem:[#allocation2 + $0x39] sm:$0xff]
    %v2011 = vld [vmem:[#allocation2 + $0x41] sm:$0xff]
    %v2012 = vld [vmem:[#allocation2 + $0x49] sm:$0xff]
    %v2013 = vld [vmem:[#allocation2 + $0x51] sm:$0xff]
    %v2014 = vld [vmem:[#allocation2 + $0x59] sm:$0xff]
    %v2015 = vld [vmem:[#allocation2 + $0x61] sm:$0xff]
    %v2016 = vld [vmem:[#allocation2 + $0x69] sm:$0xff]
    %v2017 = vld [vmem:[#allocation2 + $0x71] sm:$0xff]
    %v2018 = vld [vmem:[#allocation2 + $0x79] sm:$0xff]
    %v2019 = vld [vmem:[#allocation2 + $0x81] sm:$0xff]
    %v2020 = vld [vmem:[#allocation2 + $0x89] sm:$0xff]
    %v2021 = vld [vmem:[#allocation2 + $0x91] sm:$0xff]
    %s2022 = scalar_lea.vmem %s1, 1024
    %v2023 = vld [vmem:[%s2022] sm:$0xff]
    %v2024 = vld [vmem:[%s2022 + $0x8] sm:$0xff]
    %v2025 = vld [vmem:[%s2022 + $0x10] sm:$0xff]
    %v2026 = vld [vmem:[%s2022 + $0x18] sm:$0xff]
    %v2027 = vld [vmem:[%s2022 + $0x20] sm:$0xff]
    %v2028 = vld [vmem:[%s2022 + $0x28] sm:$0xff]
    %v2029 = vld [vmem:[%s2022 + $0x30] sm:$0xff]
    %v2030 = vld [vmem:[%s2022 + $0x38] sm:$0xff]
    %v2031 = vld [vmem:[%s2022 + $0x40] sm:$0xff]
    %v2032 = vld [vmem:[%s2022 + $0x48] sm:$0xff]
    %v2033 = vld [vmem:[%s2022 + $0x50] sm:$0xff]
    %v2034 = vld [vmem:[%s2022 + $0x58] sm:$0xff]
    %v2035 = vld [vmem:[%s2022 + $0x60] sm:$0xff]
    %v2036 = vld [vmem:[%s2022 + $0x68] sm:$0xff]
    %v2037 = vld [vmem:[%s2022 + $0x70] sm:$0xff]
    %v2038 = vld [vmem:[%s2022 + $0x78] sm:$0xff]
    %v2039 = vmul.f32 %v2006, %v2023
    %v2040 = vmul.f32 %v2007, %v2024
    %v2041 = vmul.f32 %v2008, %v2025
    %v2042 = vmul.f32 %v2009, %v2026
    %v2043 = vmul.f32 %v2010, %v2027
    %v2044 = vmul.f32 %v2011, %v2028
    %v2045 = vmul.f32 %v2012, %v2029
    %v2046 = vmul.f32 %v2013, %v2030
    %v2047 = vmul.f32 %v2014, %v2031
    %v2048 = vmul.f32 %v2015, %v2032
    %v2049 = vmul.f32 %v2016, %v2033
    %v2050 = vmul.f32 %v2017, %v2034
    %v2051 = vmul.f32 %v2018, %v2035
    %v2052 = vmul.f32 %v2019, %v2036
    %v2053 = vmul.f32 %v2020, %v2037
    %v2054 = vmul.f32 %v2021, %v2038
    %v2055 = vpack.c.bf16 %v2040, %v2039
    %v2056 = vpack.c.bf16 %v2042, %v2041
    %v2057 = vpack.c.bf16 %v2044, %v2043
    %v2058 = vpack.c.bf16 %v2046, %v2045
    %v2059 = vpack.c.bf16 %v2048, %v2047
    %v2060 = vpack.c.bf16 %v2050, %v2049
    %v2061 = vpack.c.bf16 %v2052, %v2051
    %v2062 = vpack.c.bf16 %v2054, %v2053
    %s2063 = scalar_lea.vmem %s2, 128
    %v2064 = vld [vmem:[%s2063] sm:$0xf]
    %v2065 = vld [vmem:[%s2063 + $0x4] sm:$0xf]
    %v2066 = vld [vmem:[%s2063 + $0x8] sm:$0xf]
    %v2067 = vld [vmem:[%s2063 + $0xc] sm:$0xf]
    %v2072 = vunpack.c.l.b16 %v2064
    %v2073 = vunpack.c.l.b16 %v2065
    %v2074 = vunpack.c.l.b16 %v2066
    %v2075 = vunpack.c.l.b16 %v2067
    %v2076 = vpack.c.b16 %v2073, %v2072
    %v2077 = vpack.c.b16 %v2075, %v2074
    %v2081 = vsel %vm27, %v2055, 0
    %v2084 = vsel %vm27, %v2056, 0
    %v2087 = vsel %vm27, %v2057, 0
    %v2090 = vsel %vm27, %v2058, 0
    %v2093 = vsel %vm27, %v2059, 0
    %v2096 = vsel %vm27, %v2060, 0
    %v2099 = vsel %vm27, %v2061, 0
    %v2102 = vsel %vm27, %v2062, 0
    %2104 = vmatprep.subr.bf16.mxu0 0
    %2105 = vmatpush1.bf16.msra.mxu0 0
    %2106 = vmatprep.subr.bf16.mxu0 0
    %2107 = vmatpush1.bf16.msra.mxu0 0
    %2108 = vmatprep.subr.bf16.mxu0 0
    %2109 = vmatpush1.bf16.msra.mxu0 0
    %2110 = vmatprep.subr.bf16.mxu0 0
    %2111 = vmatpush1.bf16.msra.mxu0 0
    %2112 = vmatprep.subr.bf16.mxu0 0
    %2113 = vmatpush1.bf16.msra.mxu0 0
    %2114 = vmatprep.subr.bf16.mxu0 0
    %2115 = vmatpush1.bf16.msra.mxu0 0
    %2116 = vmatprep.subr.bf16.mxu0 0
    %2117 = vmatpush1.bf16.msra.mxu0 %v2077
    %2118 = vmatprep.subr.bf16.mxu0 0
    %2119 = vmatpush1.bf16.msra.mxu0 %v2076
    %2120 = vmatprep.subr.bf16.mxu0 0
    %2121 = vmatpush2.bf16.msra.mxu0 0
    %2122 = vmatprep.subr.bf16.mxu0 0
    %2123 = vmatpush2.bf16.msra.mxu0 0
    %2124 = vmatprep.subr.bf16.mxu0 0
    %2125 = vmatpush2.bf16.msra.mxu0 0
    %2126 = vmatprep.subr.bf16.mxu0 0
    %2127 = vmatpush2.bf16.msra.mxu0 0
    %2128 = vmatprep.subr.bf16.mxu0 0
    %2129 = vmatpush2.bf16.msra.mxu0 0
    %2130 = vmatprep.subr.bf16.mxu0 0
    %2131 = vmatpush2.bf16.msra.mxu0 0
    %2132 = vmatprep.subr.bf16.mxu0 0
    %2133 = vmatpush2.bf16.msra.mxu0 0
    %2134 = vmatprep.subr.bf16.mxu0 0
    %2135 = vmatpush2.bf16.msra.mxu0 0
    %2136 = vmatprep.mubr.bf16.mxu0 0
    %2137 = vmatmul.mubr.bf16.gmra.mxu0 %v2081
    %v2138 = vpop.f32.mrf.mxu0
    %v2139 = vadd.f32 0.0, %v2138
    %v2140 = vpop.f32.mrf.mxu0
    %v2141 = vpop.f32.mrf.mxu0
    %v2142 = vadd.f32 0.0, %v2141
    %v2143 = vpop.f32.mrf.mxu0
    %2144 = vmatprep.mubr.bf16.mxu0 0
    %2145 = vmatmul.mubr.bf16.gmra.mxu0 %v2084
    %v2146 = vpop.f32.mrf.mxu0
    %v2147 = vadd.f32 0.0, %v2146
    %v2148 = vpop.f32.mrf.mxu0
    %v2149 = vpop.f32.mrf.mxu0
    %v2150 = vadd.f32 0.0, %v2149
    %v2151 = vpop.f32.mrf.mxu0
    %2152 = vmatprep.mubr.bf16.mxu0 0
    %2153 = vmatmul.mubr.bf16.gmra.mxu0 %v2087
    %v2154 = vpop.f32.mrf.mxu0
    %v2155 = vadd.f32 0.0, %v2154
    %v2156 = vpop.f32.mrf.mxu0
    %v2157 = vpop.f32.mrf.mxu0
    %v2158 = vadd.f32 0.0, %v2157
    %v2159 = vpop.f32.mrf.mxu0
    %2160 = vmatprep.mubr.bf16.mxu0 0
    %2161 = vmatmul.mubr.bf16.gmra.mxu0 %v2090
    %v2162 = vpop.f32.mrf.mxu0
    %v2163 = vadd.f32 0.0, %v2162
    %v2164 = vpop.f32.mrf.mxu0
    %v2165 = vpop.f32.mrf.mxu0
    %v2166 = vadd.f32 0.0, %v2165
    %v2167 = vpop.f32.mrf.mxu0
    %2168 = vmatprep.mubr.bf16.mxu0 0
    %2169 = vmatmul.mubr.bf16.gmra.mxu0 %v2093
    %v2170 = vpop.f32.mrf.mxu0
    %v2171 = vadd.f32 0.0, %v2170
    %v2172 = vpop.f32.mrf.mxu0
    %v2173 = vpop.f32.mrf.mxu0
    %v2174 = vadd.f32 0.0, %v2173
    %v2175 = vpop.f32.mrf.mxu0
    %2176 = vmatprep.mubr.bf16.mxu0 0
    %2177 = vmatmul.mubr.bf16.gmra.mxu0 %v2096
    %v2178 = vpop.f32.mrf.mxu0
    %v2179 = vadd.f32 0.0, %v2178
    %v2180 = vpop.f32.mrf.mxu0
    %v2181 = vpop.f32.mrf.mxu0
    %v2182 = vadd.f32 0.0, %v2181
    %v2183 = vpop.f32.mrf.mxu0
    %2184 = vmatprep.mubr.bf16.mxu0 0
    %2185 = vmatmul.mubr.bf16.gmra.mxu0 %v2099
    %v2186 = vpop.f32.mrf.mxu0
    %v2187 = vadd.f32 0.0, %v2186
    %v2188 = vpop.f32.mrf.mxu0
    %v2189 = vpop.f32.mrf.mxu0
    %v2190 = vadd.f32 0.0, %v2189
    %v2191 = vpop.f32.mrf.mxu0
    %2192 = vmatprep.mubr.bf16.mxu0 0
    %2193 = vmatmul.mubr.bf16.gmra.mxu0 %v2102
    %v2194 = vpop.f32.mrf.mxu0
    %v2195 = vadd.f32 0.0, %v2194
    %v2196 = vpop.f32.mrf.mxu0
    %v2197 = vpop.f32.mrf.mxu0
    %v2198 = vadd.f32 0.0, %v2197
    %v2199 = vpop.f32.mrf.mxu0
    %2200 = vdwg.mxu0
    %v2201 = vadd.f32 %v1954, %v2139
    %v2202 = vadd.f32 %v1955, %v2142
    %v2203 = vadd.f32 %v1956, %v2147
    %v2204 = vadd.f32 %v1957, %v2150
    %v2205 = vadd.f32 %v1958, %v2155
    %v2206 = vadd.f32 %v1959, %v2158
    %v2207 = vadd.f32 %v1960, %v2163
    %v2208 = vadd.f32 %v1961, %v2166
    %v2209 = vadd.f32 %v1962, %v2171
    %v2210 = vadd.f32 %v1963, %v2174
    %v2211 = vadd.f32 %v1964, %v2179
    %v2212 = vadd.f32 %v1965, %v2182
    %v2213 = vadd.f32 %v1966, %v2187
    %v2214 = vadd.f32 %v1967, %v2190
    %v2215 = vadd.f32 %v1968, %v2195
    %v2216 = vadd.f32 %v1969, %v2198
    %v2217 = vlaneseq
    %v2218 = vshrl.u32 %v2217, 7
    %v2219 = vsub.s32 6, %v2218
    %v2220 = vrot.slane %v26, %v2219
    %v2221 = vmul.f32 %v2039, %v2220
    %v2222 = vmul.f32 %v2040, %v2220
    %v2223 = vmul.f32 %v2041, %v2220
    %v2224 = vmul.f32 %v2042, %v2220
    %v2225 = vmul.f32 %v2043, %v2220
    %v2226 = vmul.f32 %v2044, %v2220
    %v2227 = vmul.f32 %v2045, %v2220
    %v2228 = vmul.f32 %v2046, %v2220
    %v2229 = vmul.f32 %v2047, %v2220
    %v2230 = vmul.f32 %v2048, %v2220
    %v2231 = vmul.f32 %v2049, %v2220
    %v2232 = vmul.f32 %v2050, %v2220
    %v2233 = vmul.f32 %v2051, %v2220
    %v2234 = vmul.f32 %v2052, %v2220
    %v2235 = vmul.f32 %v2053, %v2220
    %v2236 = vmul.f32 %v2054, %v2220
    %v2237 = vadd.f32 %v1990, %v2221
    %v2238 = vadd.f32 %v1991, %v2222
    %v2239 = vadd.f32 %v1992, %v2223
    %v2240 = vadd.f32 %v1993, %v2224
    %v2241 = vadd.f32 %v1994, %v2225
    %v2242 = vadd.f32 %v1995, %v2226
    %v2243 = vadd.f32 %v1996, %v2227
    %v2244 = vadd.f32 %v1997, %v2228
    %v2245 = vadd.f32 %v1998, %v2229
    %v2246 = vadd.f32 %v1999, %v2230
    %v2247 = vadd.f32 %v2000, %v2231
    %v2248 = vadd.f32 %v2001, %v2232
    %v2249 = vadd.f32 %v2002, %v2233
    %v2250 = vadd.f32 %v2003, %v2234
    %v2251 = vadd.f32 %v2004, %v2235
    %v2252 = vadd.f32 %v2005, %v2236
    %v2253 = vsel %vm27, %v2201, 0.0
    %v2254 = vsel %vm27, %v2202, 0.0
    %v2255 = vadd.f32 %v2253, %v2254
    %v2256 = vsel %vm27, %v2203, 0.0
    %v2257 = vadd.f32 %v2255, %v2256
    %v2258 = vsel %vm27, %v2204, 0.0
    %v2259 = vadd.f32 %v2257, %v2258
    %v2260 = vsel %vm27, %v2205, 0.0
    %v2261 = vadd.f32 %v2259, %v2260
    %v2262 = vsel %vm27, %v2206, 0.0
    %v2263 = vadd.f32 %v2261, %v2262
    %v2264 = vsel %vm27, %v2207, 0.0
    %v2265 = vadd.f32 %v2263, %v2264
    %v2266 = vsel %vm27, %v2208, 0.0
    %v2267 = vadd.f32 %v2265, %v2266
    %v2268 = vsel %vm27, %v2209, 0.0
    %v2269 = vadd.f32 %v2267, %v2268
    %v2270 = vsel %vm27, %v2210, 0.0
    %v2271 = vadd.f32 %v2269, %v2270
    %v2272 = vsel %vm27, %v2211, 0.0
    %v2273 = vadd.f32 %v2271, %v2272
    %v2274 = vsel %vm27, %v2212, 0.0
    %v2275 = vadd.f32 %v2273, %v2274
    %v2276 = vsel %vm27, %v2213, 0.0
    %v2277 = vadd.f32 %v2275, %v2276
    %v2278 = vsel %vm27, %v2214, 0.0
    %v2279 = vadd.f32 %v2277, %v2278
    %v2280 = vsel %vm27, %v2215, 0.0
    %v2281 = vadd.f32 %v2279, %v2280
    %v2282 = vsel %vm27, %v2216, 0.0
    %v2283 = vadd.f32 %v2281, %v2282
    %v2284 = vrot.slane %v2283, 4
    %v2285 = vadd.f32 %v2283, %v2284
    %v2286 = vrot.slane %v2285, 2
    %v2287 = vadd.f32 %v2285, %v2286
    %v2288 = vrot.slane %v2287, 1
    %v2289 = vadd.f32 %v2287, %v2288
    %v2290 = vmul.f32 %v2289, 0.0078125
    %v2291 = vmul.f32 %v2201, %v2201
    %v2292 = vmul.f32 %v2202, %v2202
    %v2293 = vmul.f32 %v2203, %v2203
    %v2294 = vmul.f32 %v2204, %v2204
    %v2295 = vmul.f32 %v2205, %v2205
    %v2296 = vmul.f32 %v2206, %v2206
    %v2297 = vmul.f32 %v2207, %v2207
    %v2298 = vmul.f32 %v2208, %v2208
    %v2299 = vmul.f32 %v2209, %v2209
    %v2300 = vmul.f32 %v2210, %v2210
    %v2301 = vmul.f32 %v2211, %v2211
    %v2302 = vmul.f32 %v2212, %v2212
    %v2303 = vmul.f32 %v2213, %v2213
    %v2304 = vmul.f32 %v2214, %v2214
    %v2305 = vmul.f32 %v2215, %v2215
    %v2306 = vmul.f32 %v2216, %v2216
    %v2307 = vsel %vm27, %v2291, 0.0
    %v2308 = vsel %vm27, %v2292, 0.0
    %v2309 = vadd.f32 %v2307, %v2308
    %v2310 = vsel %vm27, %v2293, 0.0
    %v2311 = vadd.f32 %v2309, %v2310
    %v2312 = vsel %vm27, %v2294, 0.0
    %v2313 = vadd.f32 %v2311, %v2312
    %v2314 = vsel %vm27, %v2295, 0.0
    %v2315 = vadd.f32 %v2313, %v2314
    %v2316 = vsel %vm27, %v2296, 0.0
    %v2317 = vadd.f32 %v2315, %v2316
    %v2318 = vsel %vm27, %v2297, 0.0
    %v2319 = vadd.f32 %v2317, %v2318
    %v2320 = vsel %vm27, %v2298, 0.0
    %v2321 = vadd.f32 %v2319, %v2320
    %v2322 = vsel %vm27, %v2299, 0.0
    %v2323 = vadd.f32 %v2321, %v2322
    %v2324 = vsel %vm27, %v2300, 0.0
    %v2325 = vadd.f32 %v2323, %v2324
    %v2326 = vsel %vm27, %v2301, 0.0
    %v2327 = vadd.f32 %v2325, %v2326
    %v2328 = vsel %vm27, %v2302, 0.0
    %v2329 = vadd.f32 %v2327, %v2328
    %v2330 = vsel %vm27, %v2303, 0.0
    %v2331 = vadd.f32 %v2329, %v2330
    %v2332 = vsel %vm27, %v2304, 0.0
    %v2333 = vadd.f32 %v2331, %v2332
    %v2334 = vsel %vm27, %v2305, 0.0
    %v2335 = vadd.f32 %v2333, %v2334
    %v2336 = vsel %vm27, %v2306, 0.0
    %v2337 = vadd.f32 %v2335, %v2336
    %v2338 = vrot.slane %v2337, 4
    %v2339 = vadd.f32 %v2337, %v2338
    %v2340 = vrot.slane %v2339, 2
    %v2341 = vadd.f32 %v2339, %v2340
    %v2342 = vrot.slane %v2341, 1
    %v2343 = vadd.f32 %v2341, %v2342
    %v2344 = vmul.f32 %v2343, 0.0078125
    %v2345 = vmul.f32 %v2290, %v2290
    %v2346 = vsub.f32 %v2344, %v2345
    %v2347 = vadd.f32 %v2346, 1e-05
    %v2348 = vrsqrt.pop %v2347
    %v2349 = vmul.f32 %v25, %v2348
    %v2350 = vmul.f32 %v2290, %v2349
    %v2352 = vrot.slane %v2350, 7
    %v2354 = vsub.f32 %v25, %v2352
    %v2355 = vlaneseq
    %v2356 = vshrl.u32 %v2355, 7
    %v2357 = vsub.s32 0, %v2356
    %v2358 = vrot.slane %v2349, %v2357
    %v2359 = vmul.f32 %v2201, %v2358
    %v2360 = vmul.f32 %v2202, %v2358
    %v2361 = vmul.f32 %v2203, %v2358
    %v2362 = vmul.f32 %v2204, %v2358
    %v2363 = vmul.f32 %v2205, %v2358
    %v2364 = vmul.f32 %v2206, %v2358
    %v2365 = vmul.f32 %v2207, %v2358
    %v2366 = vmul.f32 %v2208, %v2358
    %v2367 = vmul.f32 %v2209, %v2358
    %v2368 = vmul.f32 %v2210, %v2358
    %v2369 = vmul.f32 %v2211, %v2358
    %v2370 = vmul.f32 %v2212, %v2358
    %v2371 = vmul.f32 %v2213, %v2358
    %v2372 = vmul.f32 %v2214, %v2358
    %v2373 = vmul.f32 %v2215, %v2358
    %v2374 = vmul.f32 %v2216, %v2358
    %v2375 = vlaneseq
    %v2376 = vshrl.u32 %v2375, 7
    %v2377 = vsub.s32 1, %v2376
    %v2378 = vrot.slane %v2354, %v2377
    %v2379 = vadd.f32 %v2359, %v2378
    %v2380 = vadd.f32 %v2360, %v2378
    %v2381 = vadd.f32 %v2361, %v2378
    %v2382 = vadd.f32 %v2362, %v2378
    %v2383 = vadd.f32 %v2363, %v2378
    %v2384 = vadd.f32 %v2364, %v2378
    %v2385 = vadd.f32 %v2365, %v2378
    %v2386 = vadd.f32 %v2366, %v2378
    %v2387 = vadd.f32 %v2367, %v2378
    %v2388 = vadd.f32 %v2368, %v2378
    %v2389 = vadd.f32 %v2369, %v2378
    %v2390 = vadd.f32 %v2370, %v2378
    %v2391 = vadd.f32 %v2371, %v2378
    %v2392 = vadd.f32 %v2372, %v2378
    %v2393 = vadd.f32 %v2373, %v2378
    %v2394 = vadd.f32 %v2374, %v2378
    %v2395 = vmax.f32 %v2379, 0.0
    %v2396 = vmax.f32 %v2380, 0.0
    %v2397 = vmax.f32 %v2381, 0.0
    %v2398 = vmax.f32 %v2382, 0.0
    %v2399 = vmax.f32 %v2383, 0.0
    %v2400 = vmax.f32 %v2384, 0.0
    %v2401 = vmax.f32 %v2385, 0.0
    %v2402 = vmax.f32 %v2386, 0.0
    %v2403 = vmax.f32 %v2387, 0.0
    %v2404 = vmax.f32 %v2388, 0.0
    %v2405 = vmax.f32 %v2389, 0.0
    %v2406 = vmax.f32 %v2390, 0.0
    %v2407 = vmax.f32 %v2391, 0.0
    %v2408 = vmax.f32 %v2392, 0.0
    %v2409 = vmax.f32 %v2393, 0.0
    %v2410 = vmax.f32 %v2394, 0.0
    %v2411 = vsel %vm27, %v2237, 0.0
    %v2412 = vsel %vm27, %v2238, 0.0
    %v2413 = vadd.f32 %v2411, %v2412
    %v2414 = vsel %vm27, %v2239, 0.0
    %v2415 = vadd.f32 %v2413, %v2414
    %v2416 = vsel %vm27, %v2240, 0.0
    %v2417 = vadd.f32 %v2415, %v2416
    %v2418 = vsel %vm27, %v2241, 0.0
    %v2419 = vadd.f32 %v2417, %v2418
    %v2420 = vsel %vm27, %v2242, 0.0
    %v2421 = vadd.f32 %v2419, %v2420
    %v2422 = vsel %vm27, %v2243, 0.0
    %v2423 = vadd.f32 %v2421, %v2422
    %v2424 = vsel %vm27, %v2244, 0.0
    %v2425 = vadd.f32 %v2423, %v2424
    %v2426 = vsel %vm27, %v2245, 0.0
    %v2427 = vadd.f32 %v2425, %v2426
    %v2428 = vsel %vm27, %v2246, 0.0
    %v2429 = vadd.f32 %v2427, %v2428
    %v2430 = vsel %vm27, %v2247, 0.0
    %v2431 = vadd.f32 %v2429, %v2430
    %v2432 = vsel %vm27, %v2248, 0.0
    %v2433 = vadd.f32 %v2431, %v2432
    %v2434 = vsel %vm27, %v2249, 0.0
    %v2435 = vadd.f32 %v2433, %v2434
    %v2436 = vsel %vm27, %v2250, 0.0
    %v2437 = vadd.f32 %v2435, %v2436
    %v2438 = vsel %vm27, %v2251, 0.0
    %v2439 = vadd.f32 %v2437, %v2438
    %v2440 = vsel %vm27, %v2252, 0.0
    %v2441 = vadd.f32 %v2439, %v2440
    %v2442 = vrot.slane %v2441, 4
    %v2443 = vadd.f32 %v2441, %v2442
    %v2444 = vrot.slane %v2443, 2
    %v2445 = vadd.f32 %v2443, %v2444
    %v2446 = vrot.slane %v2445, 1
    %v2447 = vadd.f32 %v2445, %v2446
    %v2448 = vmul.f32 %v2447, 0.0078125
    %v2449 = vmul.f32 %v2237, %v2237
    %v2450 = vmul.f32 %v2238, %v2238
    %v2451 = vmul.f32 %v2239, %v2239
    %v2452 = vmul.f32 %v2240, %v2240
    %v2453 = vmul.f32 %v2241, %v2241
    %v2454 = vmul.f32 %v2242, %v2242
    %v2455 = vmul.f32 %v2243, %v2243
    %v2456 = vmul.f32 %v2244, %v2244
    %v2457 = vmul.f32 %v2245, %v2245
    %v2458 = vmul.f32 %v2246, %v2246
    %v2459 = vmul.f32 %v2247, %v2247
    %v2460 = vmul.f32 %v2248, %v2248
    %v2461 = vmul.f32 %v2249, %v2249
    %v2462 = vmul.f32 %v2250, %v2250
    %v2463 = vmul.f32 %v2251, %v2251
    %v2464 = vmul.f32 %v2252, %v2252
    %v2465 = vsel %vm27, %v2449, 0.0
    %v2466 = vsel %vm27, %v2450, 0.0
    %v2467 = vadd.f32 %v2465, %v2466
    %v2468 = vsel %vm27, %v2451, 0.0
    %v2469 = vadd.f32 %v2467, %v2468
    %v2470 = vsel %vm27, %v2452, 0.0
    %v2471 = vadd.f32 %v2469, %v2470
    %v2472 = vsel %vm27, %v2453, 0.0
    %v2473 = vadd.f32 %v2471, %v2472
    %v2474 = vsel %vm27, %v2454, 0.0
    %v2475 = vadd.f32 %v2473, %v2474
    %v2476 = vsel %vm27, %v2455, 0.0
    %v2477 = vadd.f32 %v2475, %v2476
    %v2478 = vsel %vm27, %v2456, 0.0
    %v2479 = vadd.f32 %v2477, %v2478
    %v2480 = vsel %vm27, %v2457, 0.0
    %v2481 = vadd.f32 %v2479, %v2480
    %v2482 = vsel %vm27, %v2458, 0.0
    %v2483 = vadd.f32 %v2481, %v2482
    %v2484 = vsel %vm27, %v2459, 0.0
    %v2485 = vadd.f32 %v2483, %v2484
    %v2486 = vsel %vm27, %v2460, 0.0
    %v2487 = vadd.f32 %v2485, %v2486
    %v2488 = vsel %vm27, %v2461, 0.0
    %v2489 = vadd.f32 %v2487, %v2488
    %v2490 = vsel %vm27, %v2462, 0.0
    %v2491 = vadd.f32 %v2489, %v2490
    %v2492 = vsel %vm27, %v2463, 0.0
    %v2493 = vadd.f32 %v2491, %v2492
    %v2494 = vsel %vm27, %v2464, 0.0
    %v2495 = vadd.f32 %v2493, %v2494
    %v2496 = vrot.slane %v2495, 4
    %v2497 = vadd.f32 %v2495, %v2496
    %v2498 = vrot.slane %v2497, 2
    %v2499 = vadd.f32 %v2497, %v2498
    %v2500 = vrot.slane %v2499, 1
    %v2501 = vadd.f32 %v2499, %v2500
    %v2502 = vmul.f32 %v2501, 0.0078125
    %v2503 = vmul.f32 %v2448, %v2448
    %v2504 = vsub.f32 %v2502, %v2503
    %v2505 = vadd.f32 %v2504, 1e-05
    %v2506 = vrsqrt.pop %v2505
    %v2507 = vmul.f32 %v25, %v2506
    %v2508 = vmul.f32 %v2448, %v2507
    %v2510 = vrot.slane %v2508, 7
    %v2512 = vsub.f32 %v25, %v2510
    %v2513 = vlaneseq
    %v2514 = vshrl.u32 %v2513, 7
    %v2515 = vsub.s32 2, %v2514
    %v2516 = vrot.slane %v2507, %v2515
    %v2517 = vmul.f32 %v2237, %v2516
    %v2518 = vmul.f32 %v2238, %v2516
    %v2519 = vmul.f32 %v2239, %v2516
    %v2520 = vmul.f32 %v2240, %v2516
    %v2521 = vmul.f32 %v2241, %v2516
    %v2522 = vmul.f32 %v2242, %v2516
    %v2523 = vmul.f32 %v2243, %v2516
    %v2524 = vmul.f32 %v2244, %v2516
    %v2525 = vmul.f32 %v2245, %v2516
    %v2526 = vmul.f32 %v2246, %v2516
    %v2527 = vmul.f32 %v2247, %v2516
    %v2528 = vmul.f32 %v2248, %v2516
    %v2529 = vmul.f32 %v2249, %v2516
    %v2530 = vmul.f32 %v2250, %v2516
    %v2531 = vmul.f32 %v2251, %v2516
    %v2532 = vmul.f32 %v2252, %v2516
    %v2533 = vlaneseq
    %v2534 = vshrl.u32 %v2533, 7
    %v2535 = vsub.s32 3, %v2534
    %v2536 = vrot.slane %v2512, %v2535
    %v2537 = vadd.f32 %v2517, %v2536
    %v2538 = vadd.f32 %v2518, %v2536
    %v2539 = vadd.f32 %v2519, %v2536
    %v2540 = vadd.f32 %v2520, %v2536
    %v2541 = vadd.f32 %v2521, %v2536
    %v2542 = vadd.f32 %v2522, %v2536
    %v2543 = vadd.f32 %v2523, %v2536
    %v2544 = vadd.f32 %v2524, %v2536
    %v2545 = vadd.f32 %v2525, %v2536
    %v2546 = vadd.f32 %v2526, %v2536
    %v2547 = vadd.f32 %v2527, %v2536
    %v2548 = vadd.f32 %v2528, %v2536
    %v2549 = vadd.f32 %v2529, %v2536
    %v2550 = vadd.f32 %v2530, %v2536
    %v2551 = vadd.f32 %v2531, %v2536
    %v2552 = vadd.f32 %v2532, %v2536
    %v2553 = vmax.f32 %v2537, 0.0
    %v2554 = vmax.f32 %v2538, 0.0
    %v2555 = vmax.f32 %v2539, 0.0
    %v2556 = vmax.f32 %v2540, 0.0
    %v2557 = vmax.f32 %v2541, 0.0
    %v2558 = vmax.f32 %v2542, 0.0
    %v2559 = vmax.f32 %v2543, 0.0
    %v2560 = vmax.f32 %v2544, 0.0
    %v2561 = vmax.f32 %v2545, 0.0
    %v2562 = vmax.f32 %v2546, 0.0
    %v2563 = vmax.f32 %v2547, 0.0
    %v2564 = vmax.f32 %v2548, 0.0
    %v2565 = vmax.f32 %v2549, 0.0
    %v2566 = vmax.f32 %v2550, 0.0
    %v2567 = vmax.f32 %v2551, 0.0
    %v2568 = vmax.f32 %v2552, 0.0
    %2569 = vst.msk [vmem:[#allocation2 + $0x10] sm:$0xff] %vm27, %v2395
    %2570 = vst.msk [vmem:[#allocation2 + $0x18] sm:$0xff] %vm27, %v2396
    %2571 = vst.msk [vmem:[#allocation2 + $0x20] sm:$0xff] %vm27, %v2397
    %2572 = vst.msk [vmem:[#allocation2 + $0x28] sm:$0xff] %vm27, %v2398
    %2573 = vst.msk [vmem:[#allocation2 + $0x30] sm:$0xff] %vm27, %v2399
    %2574 = vst.msk [vmem:[#allocation2 + $0x38] sm:$0xff] %vm27, %v2400
    %2575 = vst.msk [vmem:[#allocation2 + $0x40] sm:$0xff] %vm27, %v2401
    %2576 = vst.msk [vmem:[#allocation2 + $0x48] sm:$0xff] %vm27, %v2402
    %2577 = vst.msk [vmem:[#allocation2 + $0x50] sm:$0xff] %vm27, %v2403
    %2578 = vst.msk [vmem:[#allocation2 + $0x58] sm:$0xff] %vm27, %v2404
    %2579 = vst.msk [vmem:[#allocation2 + $0x60] sm:$0xff] %vm27, %v2405
    %2580 = vst.msk [vmem:[#allocation2 + $0x68] sm:$0xff] %vm27, %v2406
    %2581 = vst.msk [vmem:[#allocation2 + $0x70] sm:$0xff] %vm27, %v2407
    %2582 = vst.msk [vmem:[#allocation2 + $0x78] sm:$0xff] %vm27, %v2408
    %2583 = vst.msk [vmem:[#allocation2 + $0x80] sm:$0xff] %vm27, %v2409
    %2584 = vst.msk [vmem:[#allocation2 + $0x88] sm:$0xff] %vm27, %v2410
    %v2585 = vld [vmem:[#allocation2 + $0x7] sm:$0xff]
    %v2586 = vld [vmem:[#allocation2 + $0xf] sm:$0xff]
    %v2587 = vld [vmem:[#allocation2 + $0x17] sm:$0xff]
    %v2588 = vld [vmem:[#allocation2 + $0x1f] sm:$0xff]
    %v2589 = vld [vmem:[#allocation2 + $0x27] sm:$0xff]
    %v2590 = vld [vmem:[#allocation2 + $0x2f] sm:$0xff]
    %v2591 = vld [vmem:[#allocation2 + $0x37] sm:$0xff]
    %v2592 = vld [vmem:[#allocation2 + $0x3f] sm:$0xff]
    %v2593 = vld [vmem:[#allocation2 + $0x47] sm:$0xff]
    %v2594 = vld [vmem:[#allocation2 + $0x4f] sm:$0xff]
    %v2595 = vld [vmem:[#allocation2 + $0x57] sm:$0xff]
    %v2596 = vld [vmem:[#allocation2 + $0x5f] sm:$0xff]
    %v2597 = vld [vmem:[#allocation2 + $0x67] sm:$0xff]
    %v2598 = vld [vmem:[#allocation2 + $0x6f] sm:$0xff]
    %v2599 = vld [vmem:[#allocation2 + $0x77] sm:$0xff]
    %v2600 = vld [vmem:[#allocation2 + $0x7f] sm:$0xff]
    %v2601 = vld [vmem:[%s1] sm:$0xff]
    %v2602 = vld [vmem:[%s1 + $0x8] sm:$0xff]
    %v2603 = vld [vmem:[%s1 + $0x10] sm:$0xff]
    %v2604 = vld [vmem:[%s1 + $0x18] sm:$0xff]
    %v2605 = vld [vmem:[%s1 + $0x20] sm:$0xff]
    %v2606 = vld [vmem:[%s1 + $0x28] sm:$0xff]
    %v2607 = vld [vmem:[%s1 + $0x30] sm:$0xff]
    %v2608 = vld [vmem:[%s1 + $0x38] sm:$0xff]
    %v2609 = vld [vmem:[%s1 + $0x40] sm:$0xff]
    %v2610 = vld [vmem:[%s1 + $0x48] sm:$0xff]
    %v2611 = vld [vmem:[%s1 + $0x50] sm:$0xff]
    %v2612 = vld [vmem:[%s1 + $0x58] sm:$0xff]
    %v2613 = vld [vmem:[%s1 + $0x60] sm:$0xff]
    %v2614 = vld [vmem:[%s1 + $0x68] sm:$0xff]
    %v2615 = vld [vmem:[%s1 + $0x70] sm:$0xff]
    %v2616 = vld [vmem:[%s1 + $0x78] sm:$0xff]
    %v2617 = vmul.f32 %v2585, %v2601
    %v2618 = vmul.f32 %v2586, %v2602
    %v2619 = vmul.f32 %v2587, %v2603
    %v2620 = vmul.f32 %v2588, %v2604
    %v2621 = vmul.f32 %v2589, %v2605
    %v2622 = vmul.f32 %v2590, %v2606
    %v2623 = vmul.f32 %v2591, %v2607
    %v2624 = vmul.f32 %v2592, %v2608
    %v2625 = vmul.f32 %v2593, %v2609
    %v2626 = vmul.f32 %v2594, %v2610
    %v2627 = vmul.f32 %v2595, %v2611
    %v2628 = vmul.f32 %v2596, %v2612
    %v2629 = vmul.f32 %v2597, %v2613
    %v2630 = vmul.f32 %v2598, %v2614
    %v2631 = vmul.f32 %v2599, %v2615
    %v2632 = vmul.f32 %v2600, %v2616
    %v2633 = vpack.c.bf16 %v2618, %v2617
    %v2634 = vpack.c.bf16 %v2620, %v2619
    %v2635 = vpack.c.bf16 %v2622, %v2621
    %v2636 = vpack.c.bf16 %v2624, %v2623
    %v2637 = vpack.c.bf16 %v2626, %v2625
    %v2638 = vpack.c.bf16 %v2628, %v2627
    %v2639 = vpack.c.bf16 %v2630, %v2629
    %v2640 = vpack.c.bf16 %v2632, %v2631
    %v2641 = vld [vmem:[%s3] sm:$0xf]
    %v2642 = vld [vmem:[%s3 + $0x4] sm:$0xf]
    %v2643 = vld [vmem:[%s3 + $0x8] sm:$0xf]
    %v2644 = vld [vmem:[%s3 + $0xc] sm:$0xf]
    %v2645 = vld [vmem:[#allocation2 + $0x8] sm:$0xff]
    %v2646 = vld [vmem:[#allocation2 + $0x10] sm:$0xff]
    %v2647 = vld [vmem:[#allocation2 + $0x18] sm:$0xff]
    %v2648 = vld [vmem:[#allocation2 + $0x20] sm:$0xff]
    %v2649 = vld [vmem:[#allocation2 + $0x28] sm:$0xff]
    %v2650 = vld [vmem:[#allocation2 + $0x30] sm:$0xff]
    %v2651 = vld [vmem:[#allocation2 + $0x38] sm:$0xff]
    %v2652 = vld [vmem:[#allocation2 + $0x40] sm:$0xff]
    %v2653 = vld [vmem:[#allocation2 + $0x48] sm:$0xff]
    %v2654 = vld [vmem:[#allocation2 + $0x50] sm:$0xff]
    %v2655 = vld [vmem:[#allocation2 + $0x58] sm:$0xff]
    %v2656 = vld [vmem:[#allocation2 + $0x60] sm:$0xff]
    %v2657 = vld [vmem:[#allocation2 + $0x68] sm:$0xff]
    %v2658 = vld [vmem:[#allocation2 + $0x70] sm:$0xff]
    %v2659 = vld [vmem:[#allocation2 + $0x78] sm:$0xff]
    %v2660 = vld [vmem:[#allocation2 + $0x80] sm:$0xff]
    %v2661 = vld [vmem:[%s176] sm:$0xff]
    %v2662 = vld [vmem:[%s176 + $0x8] sm:$0xff]
    %v2663 = vld [vmem:[%s176 + $0x10] sm:$0xff]
    %v2664 = vld [vmem:[%s176 + $0x18] sm:$0xff]
    %v2665 = vld [vmem:[%s176 + $0x20] sm:$0xff]
    %v2666 = vld [vmem:[%s176 + $0x28] sm:$0xff]
    %v2667 = vld [vmem:[%s176 + $0x30] sm:$0xff]
    %v2668 = vld [vmem:[%s176 + $0x38] sm:$0xff]
    %v2669 = vld [vmem:[%s176 + $0x40] sm:$0xff]
    %v2670 = vld [vmem:[%s176 + $0x48] sm:$0xff]
    %v2671 = vld [vmem:[%s176 + $0x50] sm:$0xff]
    %v2672 = vld [vmem:[%s176 + $0x58] sm:$0xff]
    %v2673 = vld [vmem:[%s176 + $0x60] sm:$0xff]
    %v2674 = vld [vmem:[%s176 + $0x68] sm:$0xff]
    %v2675 = vld [vmem:[%s176 + $0x70] sm:$0xff]
    %v2676 = vld [vmem:[%s176 + $0x78] sm:$0xff]
    %v2677 = vmul.f32 %v2645, %v2661
    %v2678 = vmul.f32 %v2646, %v2662
    %v2679 = vmul.f32 %v2647, %v2663
    %v2680 = vmul.f32 %v2648, %v2664
    %v2681 = vmul.f32 %v2649, %v2665
    %v2682 = vmul.f32 %v2650, %v2666
    %v2683 = vmul.f32 %v2651, %v2667
    %v2684 = vmul.f32 %v2652, %v2668
    %v2685 = vmul.f32 %v2653, %v2669
    %v2686 = vmul.f32 %v2654, %v2670
    %v2687 = vmul.f32 %v2655, %v2671
    %v2688 = vmul.f32 %v2656, %v2672
    %v2689 = vmul.f32 %v2657, %v2673
    %v2690 = vmul.f32 %v2658, %v2674
    %v2691 = vmul.f32 %v2659, %v2675
    %v2692 = vmul.f32 %v2660, %v2676
    %v2693 = vpack.c.bf16 %v2678, %v2677
    %v2694 = vpack.c.bf16 %v2680, %v2679
    %v2695 = vpack.c.bf16 %v2682, %v2681
    %v2696 = vpack.c.bf16 %v2684, %v2683
    %v2697 = vpack.c.bf16 %v2686, %v2685
    %v2698 = vpack.c.bf16 %v2688, %v2687
    %v2699 = vpack.c.bf16 %v2690, %v2689
    %v2700 = vpack.c.bf16 %v2692, %v2691
    %s2701 = scalar_lea.vmem %s3, 16
    %v2702 = vld [vmem:[%s2701] sm:$0xf]
    %v2703 = vld [vmem:[%s2701 + $0x4] sm:$0xf]
    %v2704 = vld [vmem:[%s2701 + $0x8] sm:$0xf]
    %v2705 = vld [vmem:[%s2701 + $0xc] sm:$0xf]
    %v2710 = vunpack.c.l.b16 %v2702
    %v2711 = vunpack.c.l.b16 %v2703
    %v2712 = vunpack.c.l.b16 %v2704
    %v2713 = vunpack.c.l.b16 %v2705
    %v2714 = vpack.c.b16 %v2711, %v2710
    %v2715 = vpack.c.b16 %v2713, %v2712
    %v2719 = vsel %vm27, %v2693, 0
    %v2722 = vsel %vm27, %v2694, 0
    %v2725 = vsel %vm27, %v2695, 0
    %v2728 = vsel %vm27, %v2696, 0
    %v2731 = vsel %vm27, %v2697, 0
    %v2734 = vsel %vm27, %v2698, 0
    %v2737 = vsel %vm27, %v2699, 0
    %v2740 = vsel %vm27, %v2700, 0
    %2742 = vmatprep.subr.bf16.mxu0 0
    %2743 = vmatpush1.bf16.msra.mxu0 0
    %2744 = vmatprep.subr.bf16.mxu0 0
    %2745 = vmatpush1.bf16.msra.mxu0 0
    %2746 = vmatprep.subr.bf16.mxu0 0
    %2747 = vmatpush1.bf16.msra.mxu0 0
    %2748 = vmatprep.subr.bf16.mxu0 0
    %2749 = vmatpush1.bf16.msra.mxu0 0
    %2750 = vmatprep.subr.bf16.mxu0 0
    %2751 = vmatpush1.bf16.msra.mxu0 0
    %2752 = vmatprep.subr.bf16.mxu0 0
    %2753 = vmatpush1.bf16.msra.mxu0 0
    %2754 = vmatprep.subr.bf16.mxu0 0
    %2755 = vmatpush1.bf16.msra.mxu0 %v2715
    %2756 = vmatprep.subr.bf16.mxu0 0
    %2757 = vmatpush1.bf16.msra.mxu0 %v2714
    %2758 = vmatprep.subr.bf16.mxu0 0
    %2759 = vmatpush2.bf16.msra.mxu0 0
    %2760 = vmatprep.subr.bf16.mxu0 0
    %2761 = vmatpush2.bf16.msra.mxu0 0
    %2762 = vmatprep.subr.bf16.mxu0 0
    %2763 = vmatpush2.bf16.msra.mxu0 0
    %2764 = vmatprep.subr.bf16.mxu0 0
    %2765 = vmatpush2.bf16.msra.mxu0 0
    %2766 = vmatprep.subr.bf16.mxu0 0
    %2767 = vmatpush2.bf16.msra.mxu0 0
    %2768 = vmatprep.subr.bf16.mxu0 0
    %2769 = vmatpush2.bf16.msra.mxu0 0
    %2770 = vmatprep.subr.bf16.mxu0 0
    %2771 = vmatpush2.bf16.msra.mxu0 0
    %2772 = vmatprep.subr.bf16.mxu0 0
    %2773 = vmatpush2.bf16.msra.mxu0 0
    %2774 = vmatprep.mubr.bf16.mxu0 0
    %2775 = vmatmul.mubr.bf16.gmra.mxu0 %v2719
    %v2776 = vpop.f32.mrf.mxu0
    %v2777 = vadd.f32 0.0, %v2776
    %v2778 = vpop.f32.mrf.mxu0
    %v2779 = vpop.f32.mrf.mxu0
    %v2780 = vadd.f32 0.0, %v2779
    %v2781 = vpop.f32.mrf.mxu0
    %2782 = vmatprep.mubr.bf16.mxu0 0
    %2783 = vmatmul.mubr.bf16.gmra.mxu0 %v2722
    %v2784 = vpop.f32.mrf.mxu0
    %v2785 = vadd.f32 0.0, %v2784
    %v2786 = vpop.f32.mrf.mxu0
    %v2787 = vpop.f32.mrf.mxu0
    %v2788 = vadd.f32 0.0, %v2787
    %v2789 = vpop.f32.mrf.mxu0
    %2790 = vmatprep.mubr.bf16.mxu0 0
    %2791 = vmatmul.mubr.bf16.gmra.mxu0 %v2725
    %v2792 = vpop.f32.mrf.mxu0
    %v2793 = vadd.f32 0.0, %v2792
    %v2794 = vpop.f32.mrf.mxu0
    %v2795 = vpop.f32.mrf.mxu0
    %v2796 = vadd.f32 0.0, %v2795
    %v2797 = vpop.f32.mrf.mxu0
    %2798 = vmatprep.mubr.bf16.mxu0 0
    %2799 = vmatmul.mubr.bf16.gmra.mxu0 %v2728
    %v2800 = vpop.f32.mrf.mxu0
    %v2801 = vadd.f32 0.0, %v2800
    %v2802 = vpop.f32.mrf.mxu0
    %v2803 = vpop.f32.mrf.mxu0
    %v2804 = vadd.f32 0.0, %v2803
    %v2805 = vpop.f32.mrf.mxu0
    %2806 = vmatprep.mubr.bf16.mxu0 0
    %2807 = vmatmul.mubr.bf16.gmra.mxu0 %v2731
    %v2808 = vpop.f32.mrf.mxu0
    %v2809 = vadd.f32 0.0, %v2808
    %v2810 = vpop.f32.mrf.mxu0
    %v2811 = vpop.f32.mrf.mxu0
    %v2812 = vadd.f32 0.0, %v2811
    %v2813 = vpop.f32.mrf.mxu0
    %2814 = vmatprep.mubr.bf16.mxu0 0
    %2815 = vmatmul.mubr.bf16.gmra.mxu0 %v2734
    %v2816 = vpop.f32.mrf.mxu0
    %v2817 = vadd.f32 0.0, %v2816
    %v2818 = vpop.f32.mrf.mxu0
    %v2819 = vpop.f32.mrf.mxu0
    %v2820 = vadd.f32 0.0, %v2819
    %v2821 = vpop.f32.mrf.mxu0
    %2822 = vmatprep.mubr.bf16.mxu0 0
    %2823 = vmatmul.mubr.bf16.gmra.mxu0 %v2737
    %v2824 = vpop.f32.mrf.mxu0
    %v2825 = vadd.f32 0.0, %v2824
    %v2826 = vpop.f32.mrf.mxu0
    %v2827 = vpop.f32.mrf.mxu0
    %v2828 = vadd.f32 0.0, %v2827
    %v2829 = vpop.f32.mrf.mxu0
    %2830 = vmatprep.mubr.bf16.mxu0 0
    %2831 = vmatmul.mubr.bf16.gmra.mxu0 %v2740
    %v2832 = vpop.f32.mrf.mxu0
    %v2833 = vadd.f32 0.0, %v2832
    %v2834 = vpop.f32.mrf.mxu0
    %v2835 = vpop.f32.mrf.mxu0
    %v2836 = vadd.f32 0.0, %v2835
    %v2837 = vpop.f32.mrf.mxu0
    %2838 = vdwg.mxu0
    %v2843 = vunpack.c.l.b16 %v2641
    %v2844 = vunpack.c.l.b16 %v2642
    %v2845 = vunpack.c.l.b16 %v2643
    %v2846 = vunpack.c.l.b16 %v2644
    %v2847 = vpack.c.b16 %v2844, %v2843
    %v2848 = vpack.c.b16 %v2846, %v2845
    %v2852 = vsel %vm27, %v2633, 0
    %v2855 = vsel %vm27, %v2634, 0
    %v2858 = vsel %vm27, %v2635, 0
    %v2861 = vsel %vm27, %v2636, 0
    %v2864 = vsel %vm27, %v2637, 0
    %v2867 = vsel %vm27, %v2638, 0
    %v2870 = vsel %vm27, %v2639, 0
    %v2873 = vsel %vm27, %v2640, 0
    %2875 = vmatprep.subr.bf16.mxu0 0
    %2876 = vmatpush1.bf16.msra.mxu0 0
    %2877 = vmatprep.subr.bf16.mxu0 0
    %2878 = vmatpush1.bf16.msra.mxu0 0
    %2879 = vmatprep.subr.bf16.mxu0 0
    %2880 = vmatpush1.bf16.msra.mxu0 0
    %2881 = vmatprep.subr.bf16.mxu0 0
    %2882 = vmatpush1.bf16.msra.mxu0 0
    %2883 = vmatprep.subr.bf16.mxu0 0
    %2884 = vmatpush1.bf16.msra.mxu0 0
    %2885 = vmatprep.subr.bf16.mxu0 0
    %2886 = vmatpush1.bf16.msra.mxu0 0
    %2887 = vmatprep.subr.bf16.mxu0 0
    %2888 = vmatpush1.bf16.msra.mxu0 %v2848
    %2889 = vmatprep.subr.bf16.mxu0 0
    %2890 = vmatpush1.bf16.msra.mxu0 %v2847
    %2891 = vmatprep.subr.bf16.mxu0 0
    %2892 = vmatpush2.bf16.msra.mxu0 0
    %2893 = vmatprep.subr.bf16.mxu0 0
    %2894 = vmatpush2.bf16.msra.mxu0 0
    %2895 = vmatprep.subr.bf16.mxu0 0
    %2896 = vmatpush2.bf16.msra.mxu0 0
    %2897 = vmatprep.subr.bf16.mxu0 0
    %2898 = vmatpush2.bf16.msra.mxu0 0
    %2899 = vmatprep.subr.bf16.mxu0 0
    %2900 = vmatpush2.bf16.msra.mxu0 0
    %2901 = vmatprep.subr.bf16.mxu0 0
    %2902 = vmatpush2.bf16.msra.mxu0 0
    %2903 = vmatprep.subr.bf16.mxu0 0
    %2904 = vmatpush2.bf16.msra.mxu0 0
    %2905 = vmatprep.subr.bf16.mxu0 0
    %2906 = vmatpush2.bf16.msra.mxu0 0
    %2907 = vmatprep.mubr.bf16.mxu0 0
    %2908 = vmatmul.mubr.bf16.gmra.mxu0 %v2852
    %v2909 = vpop.f32.mrf.mxu0
    %v2910 = vadd.f32 %v2777, %v2909
    %v2911 = vpop.f32.mrf.mxu0
    %v2912 = vpop.f32.mrf.mxu0
    %v2913 = vadd.f32 %v2780, %v2912
    %v2914 = vpop.f32.mrf.mxu0
    %2915 = vmatprep.mubr.bf16.mxu0 0
    %2916 = vmatmul.mubr.bf16.gmra.mxu0 %v2855
    %v2917 = vpop.f32.mrf.mxu0
    %v2918 = vadd.f32 %v2785, %v2917
    %v2919 = vpop.f32.mrf.mxu0
    %v2920 = vpop.f32.mrf.mxu0
    %v2921 = vadd.f32 %v2788, %v2920
    %v2922 = vpop.f32.mrf.mxu0
    %2923 = vmatprep.mubr.bf16.mxu0 0
    %2924 = vmatmul.mubr.bf16.gmra.mxu0 %v2858
    %v2925 = vpop.f32.mrf.mxu0
    %v2926 = vadd.f32 %v2793, %v2925
    %v2927 = vpop.f32.mrf.mxu0
    %v2928 = vpop.f32.mrf.mxu0
    %v2929 = vadd.f32 %v2796, %v2928
    %v2930 = vpop.f32.mrf.mxu0
    %2931 = vmatprep.mubr.bf16.mxu0 0
    %2932 = vmatmul.mubr.bf16.gmra.mxu0 %v2861
    %v2933 = vpop.f32.mrf.mxu0
    %v2934 = vadd.f32 %v2801, %v2933
    %v2935 = vpop.f32.mrf.mxu0
    %v2936 = vpop.f32.mrf.mxu0
    %v2937 = vadd.f32 %v2804, %v2936
    %v2938 = vpop.f32.mrf.mxu0
    %2939 = vmatprep.mubr.bf16.mxu0 0
    %2940 = vmatmul.mubr.bf16.gmra.mxu0 %v2864
    %v2941 = vpop.f32.mrf.mxu0
    %v2942 = vadd.f32 %v2809, %v2941
    %v2943 = vpop.f32.mrf.mxu0
    %v2944 = vpop.f32.mrf.mxu0
    %v2945 = vadd.f32 %v2812, %v2944
    %v2946 = vpop.f32.mrf.mxu0
    %2947 = vmatprep.mubr.bf16.mxu0 0
    %2948 = vmatmul.mubr.bf16.gmra.mxu0 %v2867
    %v2949 = vpop.f32.mrf.mxu0
    %v2950 = vadd.f32 %v2817, %v2949
    %v2951 = vpop.f32.mrf.mxu0
    %v2952 = vpop.f32.mrf.mxu0
    %v2953 = vadd.f32 %v2820, %v2952
    %v2954 = vpop.f32.mrf.mxu0
    %2955 = vmatprep.mubr.bf16.mxu0 0
    %2956 = vmatmul.mubr.bf16.gmra.mxu0 %v2870
    %v2957 = vpop.f32.mrf.mxu0
    %v2958 = vadd.f32 %v2825, %v2957
    %v2959 = vpop.f32.mrf.mxu0
    %v2960 = vpop.f32.mrf.mxu0
    %v2961 = vadd.f32 %v2828, %v2960
    %v2962 = vpop.f32.mrf.mxu0
    %2963 = vmatprep.mubr.bf16.mxu0 0
    %2964 = vmatmul.mubr.bf16.gmra.mxu0 %v2873
    %v2965 = vpop.f32.mrf.mxu0
    %v2966 = vadd.f32 %v2833, %v2965
    %v2967 = vpop.f32.mrf.mxu0
    %v2968 = vpop.f32.mrf.mxu0
    %v2969 = vadd.f32 %v2836, %v2968
    %v2970 = vpop.f32.mrf.mxu0
    %2971 = vdwg.mxu0
    %v2972 = vld [vmem:[#allocation2 + $0x9] sm:$0xff]
    %v2973 = vld [vmem:[#allocation2 + $0x11] sm:$0xff]
    %v2974 = vld [vmem:[#allocation2 + $0x19] sm:$0xff]
    %v2975 = vld [vmem:[#allocation2 + $0x21] sm:$0xff]
    %v2976 = vld [vmem:[#allocation2 + $0x29] sm:$0xff]
    %v2977 = vld [vmem:[#allocation2 + $0x31] sm:$0xff]
    %v2978 = vld [vmem:[#allocation2 + $0x39] sm:$0xff]
    %v2979 = vld [vmem:[#allocation2 + $0x41] sm:$0xff]
    %v2980 = vld [vmem:[#allocation2 + $0x49] sm:$0xff]
    %v2981 = vld [vmem:[#allocation2 + $0x51] sm:$0xff]
    %v2982 = vld [vmem:[#allocation2 + $0x59] sm:$0xff]
    %v2983 = vld [vmem:[#allocation2 + $0x61] sm:$0xff]
    %v2984 = vld [vmem:[#allocation2 + $0x69] sm:$0xff]
    %v2985 = vld [vmem:[#allocation2 + $0x71] sm:$0xff]
    %v2986 = vld [vmem:[#allocation2 + $0x79] sm:$0xff]
    %v2987 = vld [vmem:[#allocation2 + $0x81] sm:$0xff]
    %v2988 = vld [vmem:[%s540] sm:$0xff]
    %v2989 = vld [vmem:[%s540 + $0x8] sm:$0xff]
    %v2990 = vld [vmem:[%s540 + $0x10] sm:$0xff]
    %v2991 = vld [vmem:[%s540 + $0x18] sm:$0xff]
    %v2992 = vld [vmem:[%s540 + $0x20] sm:$0xff]
    %v2993 = vld [vmem:[%s540 + $0x28] sm:$0xff]
    %v2994 = vld [vmem:[%s540 + $0x30] sm:$0xff]
    %v2995 = vld [vmem:[%s540 + $0x38] sm:$0xff]
    %v2996 = vld [vmem:[%s540 + $0x40] sm:$0xff]
    %v2997 = vld [vmem:[%s540 + $0x48] sm:$0xff]
    %v2998 = vld [vmem:[%s540 + $0x50] sm:$0xff]
    %v2999 = vld [vmem:[%s540 + $0x58] sm:$0xff]
    %v3000 = vld [vmem:[%s540 + $0x60] sm:$0xff]
    %v3001 = vld [vmem:[%s540 + $0x68] sm:$0xff]
    %v3002 = vld [vmem:[%s540 + $0x70] sm:$0xff]
    %v3003 = vld [vmem:[%s540 + $0x78] sm:$0xff]
    %v3004 = vmul.f32 %v2972, %v2988
    %v3005 = vmul.f32 %v2973, %v2989
    %v3006 = vmul.f32 %v2974, %v2990
    %v3007 = vmul.f32 %v2975, %v2991
    %v3008 = vmul.f32 %v2976, %v2992
    %v3009 = vmul.f32 %v2977, %v2993
    %v3010 = vmul.f32 %v2978, %v2994
    %v3011 = vmul.f32 %v2979, %v2995
    %v3012 = vmul.f32 %v2980, %v2996
    %v3013 = vmul.f32 %v2981, %v2997
    %v3014 = vmul.f32 %v2982, %v2998
    %v3015 = vmul.f32 %v2983, %v2999
    %v3016 = vmul.f32 %v2984, %v3000
    %v3017 = vmul.f32 %v2985, %v3001
    %v3018 = vmul.f32 %v2986, %v3002
    %v3019 = vmul.f32 %v2987, %v3003
    %v3020 = vpack.c.bf16 %v3005, %v3004
    %v3021 = vpack.c.bf16 %v3007, %v3006
    %v3022 = vpack.c.bf16 %v3009, %v3008
    %v3023 = vpack.c.bf16 %v3011, %v3010
    %v3024 = vpack.c.bf16 %v3013, %v3012
    %v3025 = vpack.c.bf16 %v3015, %v3014
    %v3026 = vpack.c.bf16 %v3017, %v3016
    %v3027 = vpack.c.bf16 %v3019, %v3018
    %s3028 = scalar_lea.vmem %s3, 32
    %v3029 = vld [vmem:[%s3028] sm:$0xf]
    %v3030 = vld [vmem:[%s3028 + $0x4] sm:$0xf]
    %v3031 = vld [vmem:[%s3028 + $0x8] sm:$0xf]
    %v3032 = vld [vmem:[%s3028 + $0xc] sm:$0xf]
    %v3037 = vunpack.c.l.b16 %v3029
    %v3038 = vunpack.c.l.b16 %v3030
    %v3039 = vunpack.c.l.b16 %v3031
    %v3040 = vunpack.c.l.b16 %v3032
    %v3041 = vpack.c.b16 %v3038, %v3037
    %v3042 = vpack.c.b16 %v3040, %v3039
    %v3046 = vsel %vm27, %v3020, 0
    %v3049 = vsel %vm27, %v3021, 0
    %v3052 = vsel %vm27, %v3022, 0
    %v3055 = vsel %vm27, %v3023, 0
    %v3058 = vsel %vm27, %v3024, 0
    %v3061 = vsel %vm27, %v3025, 0
    %v3064 = vsel %vm27, %v3026, 0
    %v3067 = vsel %vm27, %v3027, 0
    %3069 = vmatprep.subr.bf16.mxu0 0
    %3070 = vmatpush1.bf16.msra.mxu0 0
    %3071 = vmatprep.subr.bf16.mxu0 0
    %3072 = vmatpush1.bf16.msra.mxu0 0
    %3073 = vmatprep.subr.bf16.mxu0 0
    %3074 = vmatpush1.bf16.msra.mxu0 0
    %3075 = vmatprep.subr.bf16.mxu0 0
    %3076 = vmatpush1.bf16.msra.mxu0 0
    %3077 = vmatprep.subr.bf16.mxu0 0
    %3078 = vmatpush1.bf16.msra.mxu0 0
    %3079 = vmatprep.subr.bf16.mxu0 0
    %3080 = vmatpush1.bf16.msra.mxu0 0
    %3081 = vmatprep.subr.bf16.mxu0 0
    %3082 = vmatpush1.bf16.msra.mxu0 %v3042
    %3083 = vmatprep.subr.bf16.mxu0 0
    %3084 = vmatpush1.bf16.msra.mxu0 %v3041
    %3085 = vmatprep.subr.bf16.mxu0 0
    %3086 = vmatpush2.bf16.msra.mxu0 0
    %3087 = vmatprep.subr.bf16.mxu0 0
    %3088 = vmatpush2.bf16.msra.mxu0 0
    %3089 = vmatprep.subr.bf16.mxu0 0
    %3090 = vmatpush2.bf16.msra.mxu0 0
    %3091 = vmatprep.subr.bf16.mxu0 0
    %3092 = vmatpush2.bf16.msra.mxu0 0
    %3093 = vmatprep.subr.bf16.mxu0 0
    %3094 = vmatpush2.bf16.msra.mxu0 0
    %3095 = vmatprep.subr.bf16.mxu0 0
    %3096 = vmatpush2.bf16.msra.mxu0 0
    %3097 = vmatprep.subr.bf16.mxu0 0
    %3098 = vmatpush2.bf16.msra.mxu0 0
    %3099 = vmatprep.subr.bf16.mxu0 0
    %3100 = vmatpush2.bf16.msra.mxu0 0
    %3101 = vmatprep.mubr.bf16.mxu0 0
    %3102 = vmatmul.mubr.bf16.gmra.mxu0 %v3046
    %v3103 = vpop.f32.mrf.mxu0
    %v3104 = vadd.f32 0.0, %v3103
    %v3105 = vpop.f32.mrf.mxu0
    %v3106 = vpop.f32.mrf.mxu0
    %v3107 = vadd.f32 0.0, %v3106
    %v3108 = vpop.f32.mrf.mxu0
    %3109 = vmatprep.mubr.bf16.mxu0 0
    %3110 = vmatmul.mubr.bf16.gmra.mxu0 %v3049
    %v3111 = vpop.f32.mrf.mxu0
    %v3112 = vadd.f32 0.0, %v3111
    %v3113 = vpop.f32.mrf.mxu0
    %v3114 = vpop.f32.mrf.mxu0
    %v3115 = vadd.f32 0.0, %v3114
    %v3116 = vpop.f32.mrf.mxu0
    %3117 = vmatprep.mubr.bf16.mxu0 0
    %3118 = vmatmul.mubr.bf16.gmra.mxu0 %v3052
    %v3119 = vpop.f32.mrf.mxu0
    %v3120 = vadd.f32 0.0, %v3119
    %v3121 = vpop.f32.mrf.mxu0
    %v3122 = vpop.f32.mrf.mxu0
    %v3123 = vadd.f32 0.0, %v3122
    %v3124 = vpop.f32.mrf.mxu0
    %3125 = vmatprep.mubr.bf16.mxu0 0
    %3126 = vmatmul.mubr.bf16.gmra.mxu0 %v3055
    %v3127 = vpop.f32.mrf.mxu0
    %v3128 = vadd.f32 0.0, %v3127
    %v3129 = vpop.f32.mrf.mxu0
    %v3130 = vpop.f32.mrf.mxu0
    %v3131 = vadd.f32 0.0, %v3130
    %v3132 = vpop.f32.mrf.mxu0
    %3133 = vmatprep.mubr.bf16.mxu0 0
    %3134 = vmatmul.mubr.bf16.gmra.mxu0 %v3058
    %v3135 = vpop.f32.mrf.mxu0
    %v3136 = vadd.f32 0.0, %v3135
    %v3137 = vpop.f32.mrf.mxu0
    %v3138 = vpop.f32.mrf.mxu0
    %v3139 = vadd.f32 0.0, %v3138
    %v3140 = vpop.f32.mrf.mxu0
    %3141 = vmatprep.mubr.bf16.mxu0 0
    %3142 = vmatmul.mubr.bf16.gmra.mxu0 %v3061
    %v3143 = vpop.f32.mrf.mxu0
    %v3144 = vadd.f32 0.0, %v3143
    %v3145 = vpop.f32.mrf.mxu0
    %v3146 = vpop.f32.mrf.mxu0
    %v3147 = vadd.f32 0.0, %v3146
    %v3148 = vpop.f32.mrf.mxu0
    %3149 = vmatprep.mubr.bf16.mxu0 0
    %3150 = vmatmul.mubr.bf16.gmra.mxu0 %v3064
    %v3151 = vpop.f32.mrf.mxu0
    %v3152 = vadd.f32 0.0, %v3151
    %v3153 = vpop.f32.mrf.mxu0
    %v3154 = vpop.f32.mrf.mxu0
    %v3155 = vadd.f32 0.0, %v3154
    %v3156 = vpop.f32.mrf.mxu0
    %3157 = vmatprep.mubr.bf16.mxu0 0
    %3158 = vmatmul.mubr.bf16.gmra.mxu0 %v3067
    %v3159 = vpop.f32.mrf.mxu0
    %v3160 = vadd.f32 0.0, %v3159
    %v3161 = vpop.f32.mrf.mxu0
    %v3162 = vpop.f32.mrf.mxu0
    %v3163 = vadd.f32 0.0, %v3162
    %v3164 = vpop.f32.mrf.mxu0
    %3165 = vdwg.mxu0
    %v3166 = vadd.f32 %v2910, %v3104
    %v3167 = vadd.f32 %v2913, %v3107
    %v3168 = vadd.f32 %v2918, %v3112
    %v3169 = vadd.f32 %v2921, %v3115
    %v3170 = vadd.f32 %v2926, %v3120
    %v3171 = vadd.f32 %v2929, %v3123
    %v3172 = vadd.f32 %v2934, %v3128
    %v3173 = vadd.f32 %v2937, %v3131
    %v3174 = vadd.f32 %v2942, %v3136
    %v3175 = vadd.f32 %v2945, %v3139
    %v3176 = vadd.f32 %v2950, %v3144
    %v3177 = vadd.f32 %v2953, %v3147
    %v3178 = vadd.f32 %v2958, %v3152
    %v3179 = vadd.f32 %v2961, %v3155
    %v3180 = vadd.f32 %v2966, %v3160
    %v3181 = vadd.f32 %v2969, %v3163
    %v3182 = vld [vmem:[#allocation2 + $0xf] sm:$0xff]
    %v3183 = vld [vmem:[#allocation2 + $0x17] sm:$0xff]
    %v3184 = vld [vmem:[#allocation2 + $0x1f] sm:$0xff]
    %v3185 = vld [vmem:[#allocation2 + $0x27] sm:$0xff]
    %v3186 = vld [vmem:[#allocation2 + $0x2f] sm:$0xff]
    %v3187 = vld [vmem:[#allocation2 + $0x37] sm:$0xff]
    %v3188 = vld [vmem:[#allocation2 + $0x3f] sm:$0xff]
    %v3189 = vld [vmem:[#allocation2 + $0x47] sm:$0xff]
    %v3190 = vld [vmem:[#allocation2 + $0x4f] sm:$0xff]
    %v3191 = vld [vmem:[#allocation2 + $0x57] sm:$0xff]
    %v3192 = vld [vmem:[#allocation2 + $0x5f] sm:$0xff]
    %v3193 = vld [vmem:[#allocation2 + $0x67] sm:$0xff]
    %v3194 = vld [vmem:[#allocation2 + $0x6f] sm:$0xff]
    %v3195 = vld [vmem:[#allocation2 + $0x77] sm:$0xff]
    %v3196 = vld [vmem:[#allocation2 + $0x7f] sm:$0xff]
    %v3197 = vld [vmem:[#allocation2 + $0x87] sm:$0xff]
    %v3198 = vld [vmem:[%s787] sm:$0xff]
    %v3199 = vld [vmem:[%s787 + $0x8] sm:$0xff]
    %v3200 = vld [vmem:[%s787 + $0x10] sm:$0xff]
    %v3201 = vld [vmem:[%s787 + $0x18] sm:$0xff]
    %v3202 = vld [vmem:[%s787 + $0x20] sm:$0xff]
    %v3203 = vld [vmem:[%s787 + $0x28] sm:$0xff]
    %v3204 = vld [vmem:[%s787 + $0x30] sm:$0xff]
    %v3205 = vld [vmem:[%s787 + $0x38] sm:$0xff]
    %v3206 = vld [vmem:[%s787 + $0x40] sm:$0xff]
    %v3207 = vld [vmem:[%s787 + $0x48] sm:$0xff]
    %v3208 = vld [vmem:[%s787 + $0x50] sm:$0xff]
    %v3209 = vld [vmem:[%s787 + $0x58] sm:$0xff]
    %v3210 = vld [vmem:[%s787 + $0x60] sm:$0xff]
    %v3211 = vld [vmem:[%s787 + $0x68] sm:$0xff]
    %v3212 = vld [vmem:[%s787 + $0x70] sm:$0xff]
    %v3213 = vld [vmem:[%s787 + $0x78] sm:$0xff]
    %v3214 = vmul.f32 %v3182, %v3198
    %v3215 = vmul.f32 %v3183, %v3199
    %v3216 = vmul.f32 %v3184, %v3200
    %v3217 = vmul.f32 %v3185, %v3201
    %v3218 = vmul.f32 %v3186, %v3202
    %v3219 = vmul.f32 %v3187, %v3203
    %v3220 = vmul.f32 %v3188, %v3204
    %v3221 = vmul.f32 %v3189, %v3205
    %v3222 = vmul.f32 %v3190, %v3206
    %v3223 = vmul.f32 %v3191, %v3207
    %v3224 = vmul.f32 %v3192, %v3208
    %v3225 = vmul.f32 %v3193, %v3209
    %v3226 = vmul.f32 %v3194, %v3210
    %v3227 = vmul.f32 %v3195, %v3211
    %v3228 = vmul.f32 %v3196, %v3212
    %v3229 = vmul.f32 %v3197, %v3213
    %v3230 = vpack.c.bf16 %v3215, %v3214
    %v3231 = vpack.c.bf16 %v3217, %v3216
    %v3232 = vpack.c.bf16 %v3219, %v3218
    %v3233 = vpack.c.bf16 %v3221, %v3220
    %v3234 = vpack.c.bf16 %v3223, %v3222
    %v3235 = vpack.c.bf16 %v3225, %v3224
    %v3236 = vpack.c.bf16 %v3227, %v3226
    %v3237 = vpack.c.bf16 %v3229, %v3228
    %s3238 = scalar_lea.vmem %s3, 48
    %v3239 = vld [vmem:[%s3238] sm:$0xf]
    %v3240 = vld [vmem:[%s3238 + $0x4] sm:$0xf]
    %v3241 = vld [vmem:[%s3238 + $0x8] sm:$0xf]
    %v3242 = vld [vmem:[%s3238 + $0xc] sm:$0xf]
    %v3247 = vunpack.c.l.b16 %v3239
    %v3248 = vunpack.c.l.b16 %v3240
    %v3249 = vunpack.c.l.b16 %v3241
    %v3250 = vunpack.c.l.b16 %v3242
    %v3251 = vpack.c.b16 %v3248, %v3247
    %v3252 = vpack.c.b16 %v3250, %v3249
    %v3256 = vsel %vm27, %v3230, 0
    %v3259 = vsel %vm27, %v3231, 0
    %v3262 = vsel %vm27, %v3232, 0
    %v3265 = vsel %vm27, %v3233, 0
    %v3268 = vsel %vm27, %v3234, 0
    %v3271 = vsel %vm27, %v3235, 0
    %v3274 = vsel %vm27, %v3236, 0
    %v3277 = vsel %vm27, %v3237, 0
    %3279 = vmatprep.subr.bf16.mxu0 0
    %3280 = vmatpush1.bf16.msra.mxu0 0
    %3281 = vmatprep.subr.bf16.mxu0 0
    %3282 = vmatpush1.bf16.msra.mxu0 0
    %3283 = vmatprep.subr.bf16.mxu0 0
    %3284 = vmatpush1.bf16.msra.mxu0 0
    %3285 = vmatprep.subr.bf16.mxu0 0
    %3286 = vmatpush1.bf16.msra.mxu0 0
    %3287 = vmatprep.subr.bf16.mxu0 0
    %3288 = vmatpush1.bf16.msra.mxu0 0
    %3289 = vmatprep.subr.bf16.mxu0 0
    %3290 = vmatpush1.bf16.msra.mxu0 0
    %3291 = vmatprep.subr.bf16.mxu0 0
    %3292 = vmatpush1.bf16.msra.mxu0 %v3252
    %3293 = vmatprep.subr.bf16.mxu0 0
    %3294 = vmatpush1.bf16.msra.mxu0 %v3251
    %3295 = vmatprep.subr.bf16.mxu0 0
    %3296 = vmatpush2.bf16.msra.mxu0 0
    %3297 = vmatprep.subr.bf16.mxu0 0
    %3298 = vmatpush2.bf16.msra.mxu0 0
    %3299 = vmatprep.subr.bf16.mxu0 0
    %3300 = vmatpush2.bf16.msra.mxu0 0
    %3301 = vmatprep.subr.bf16.mxu0 0
    %3302 = vmatpush2.bf16.msra.mxu0 0
    %3303 = vmatprep.subr.bf16.mxu0 0
    %3304 = vmatpush2.bf16.msra.mxu0 0
    %3305 = vmatprep.subr.bf16.mxu0 0
    %3306 = vmatpush2.bf16.msra.mxu0 0
    %3307 = vmatprep.subr.bf16.mxu0 0
    %3308 = vmatpush2.bf16.msra.mxu0 0
    %3309 = vmatprep.subr.bf16.mxu0 0
    %3310 = vmatpush2.bf16.msra.mxu0 0
    %3311 = vmatprep.mubr.bf16.mxu0 0
    %3312 = vmatmul.mubr.bf16.gmra.mxu0 %v3256
    %v3313 = vpop.f32.mrf.mxu0
    %v3314 = vadd.f32 0.0, %v3313
    %v3315 = vpop.f32.mrf.mxu0
    %v3316 = vpop.f32.mrf.mxu0
    %v3317 = vadd.f32 0.0, %v3316
    %v3318 = vpop.f32.mrf.mxu0
    %3319 = vmatprep.mubr.bf16.mxu0 0
    %3320 = vmatmul.mubr.bf16.gmra.mxu0 %v3259
    %v3321 = vpop.f32.mrf.mxu0
    %v3322 = vadd.f32 0.0, %v3321
    %v3323 = vpop.f32.mrf.mxu0
    %v3324 = vpop.f32.mrf.mxu0
    %v3325 = vadd.f32 0.0, %v3324
    %v3326 = vpop.f32.mrf.mxu0
    %3327 = vmatprep.mubr.bf16.mxu0 0
    %3328 = vmatmul.mubr.bf16.gmra.mxu0 %v3262
    %v3329 = vpop.f32.mrf.mxu0
    %v3330 = vadd.f32 0.0, %v3329
    %v3331 = vpop.f32.mrf.mxu0
    %v3332 = vpop.f32.mrf.mxu0
    %v3333 = vadd.f32 0.0, %v3332
    %v3334 = vpop.f32.mrf.mxu0
    %3335 = vmatprep.mubr.bf16.mxu0 0
    %3336 = vmatmul.mubr.bf16.gmra.mxu0 %v3265
    %v3337 = vpop.f32.mrf.mxu0
    %v3338 = vadd.f32 0.0, %v3337
    %v3339 = vpop.f32.mrf.mxu0
    %v3340 = vpop.f32.mrf.mxu0
    %v3341 = vadd.f32 0.0, %v3340
    %v3342 = vpop.f32.mrf.mxu0
    %3343 = vmatprep.mubr.bf16.mxu0 0
    %3344 = vmatmul.mubr.bf16.gmra.mxu0 %v3268
    %v3345 = vpop.f32.mrf.mxu0
    %v3346 = vadd.f32 0.0, %v3345
    %v3347 = vpop.f32.mrf.mxu0
    %v3348 = vpop.f32.mrf.mxu0
    %v3349 = vadd.f32 0.0, %v3348
    %v3350 = vpop.f32.mrf.mxu0
    %3351 = vmatprep.mubr.bf16.mxu0 0
    %3352 = vmatmul.mubr.bf16.gmra.mxu0 %v3271
    %v3353 = vpop.f32.mrf.mxu0
    %v3354 = vadd.f32 0.0, %v3353
    %v3355 = vpop.f32.mrf.mxu0
    %v3356 = vpop.f32.mrf.mxu0
    %v3357 = vadd.f32 0.0, %v3356
    %v3358 = vpop.f32.mrf.mxu0
    %3359 = vmatprep.mubr.bf16.mxu0 0
    %3360 = vmatmul.mubr.bf16.gmra.mxu0 %v3274
    %v3361 = vpop.f32.mrf.mxu0
    %v3362 = vadd.f32 0.0, %v3361
    %v3363 = vpop.f32.mrf.mxu0
    %v3364 = vpop.f32.mrf.mxu0
    %v3365 = vadd.f32 0.0, %v3364
    %v3366 = vpop.f32.mrf.mxu0
    %3367 = vmatprep.mubr.bf16.mxu0 0
    %3368 = vmatmul.mubr.bf16.gmra.mxu0 %v3277
    %v3369 = vpop.f32.mrf.mxu0
    %v3370 = vadd.f32 0.0, %v3369
    %v3371 = vpop.f32.mrf.mxu0
    %v3372 = vpop.f32.mrf.mxu0
    %v3373 = vadd.f32 0.0, %v3372
    %v3374 = vpop.f32.mrf.mxu0
    %3375 = vdwg.mxu0
    %v3376 = vadd.f32 %v3166, %v3314
    %v3377 = vadd.f32 %v3167, %v3317
    %v3378 = vadd.f32 %v3168, %v3322
    %v3379 = vadd.f32 %v3169, %v3325
    %v3380 = vadd.f32 %v3170, %v3330
    %v3381 = vadd.f32 %v3171, %v3333
    %v3382 = vadd.f32 %v3172, %v3338
    %v3383 = vadd.f32 %v3173, %v3341
    %v3384 = vadd.f32 %v3174, %v3346
    %v3385 = vadd.f32 %v3175, %v3349
    %v3386 = vadd.f32 %v3176, %v3354
    %v3387 = vadd.f32 %v3177, %v3357
    %v3388 = vadd.f32 %v3178, %v3362
    %v3389 = vadd.f32 %v3179, %v3365
    %v3390 = vadd.f32 %v3180, %v3370
    %v3391 = vadd.f32 %v3181, %v3373
    %v3392 = vld [vmem:[#allocation2 + $0x10] sm:$0xff]
    %v3393 = vld [vmem:[#allocation2 + $0x18] sm:$0xff]
    %v3394 = vld [vmem:[#allocation2 + $0x20] sm:$0xff]
    %v3395 = vld [vmem:[#allocation2 + $0x28] sm:$0xff]
    %v3396 = vld [vmem:[#allocation2 + $0x30] sm:$0xff]
    %v3397 = vld [vmem:[#allocation2 + $0x38] sm:$0xff]
    %v3398 = vld [vmem:[#allocation2 + $0x40] sm:$0xff]
    %v3399 = vld [vmem:[#allocation2 + $0x48] sm:$0xff]
    %v3400 = vld [vmem:[#allocation2 + $0x50] sm:$0xff]
    %v3401 = vld [vmem:[#allocation2 + $0x58] sm:$0xff]
    %v3402 = vld [vmem:[#allocation2 + $0x60] sm:$0xff]
    %v3403 = vld [vmem:[#allocation2 + $0x68] sm:$0xff]
    %v3404 = vld [vmem:[#allocation2 + $0x70] sm:$0xff]
    %v3405 = vld [vmem:[#allocation2 + $0x78] sm:$0xff]
    %v3406 = vld [vmem:[#allocation2 + $0x80] sm:$0xff]
    %v3407 = vld [vmem:[#allocation2 + $0x88] sm:$0xff]
    %v3408 = vld [vmem:[%s1034] sm:$0xff]
    %v3409 = vld [vmem:[%s1034 + $0x8] sm:$0xff]
    %v3410 = vld [vmem:[%s1034 + $0x10] sm:$0xff]
    %v3411 = vld [vmem:[%s1034 + $0x18] sm:$0xff]
    %v3412 = vld [vmem:[%s1034 + $0x20] sm:$0xff]
    %v3413 = vld [vmem:[%s1034 + $0x28] sm:$0xff]
    %v3414 = vld [vmem:[%s1034 + $0x30] sm:$0xff]
    %v3415 = vld [vmem:[%s1034 + $0x38] sm:$0xff]
    %v3416 = vld [vmem:[%s1034 + $0x40] sm:$0xff]
    %v3417 = vld [vmem:[%s1034 + $0x48] sm:$0xff]
    %v3418 = vld [vmem:[%s1034 + $0x50] sm:$0xff]
    %v3419 = vld [vmem:[%s1034 + $0x58] sm:$0xff]
    %v3420 = vld [vmem:[%s1034 + $0x60] sm:$0xff]
    %v3421 = vld [vmem:[%s1034 + $0x68] sm:$0xff]
    %v3422 = vld [vmem:[%s1034 + $0x70] sm:$0xff]
    %v3423 = vld [vmem:[%s1034 + $0x78] sm:$0xff]
    %v3424 = vmul.f32 %v3392, %v3408
    %v3425 = vmul.f32 %v3393, %v3409
    %v3426 = vmul.f32 %v3394, %v3410
    %v3427 = vmul.f32 %v3395, %v3411
    %v3428 = vmul.f32 %v3396, %v3412
    %v3429 = vmul.f32 %v3397, %v3413
    %v3430 = vmul.f32 %v3398, %v3414
    %v3431 = vmul.f32 %v3399, %v3415
    %v3432 = vmul.f32 %v3400, %v3416
    %v3433 = vmul.f32 %v3401, %v3417
    %v3434 = vmul.f32 %v3402, %v3418
    %v3435 = vmul.f32 %v3403, %v3419
    %v3436 = vmul.f32 %v3404, %v3420
    %v3437 = vmul.f32 %v3405, %v3421
    %v3438 = vmul.f32 %v3406, %v3422
    %v3439 = vmul.f32 %v3407, %v3423
    %v3440 = vpack.c.bf16 %v3425, %v3424
    %v3441 = vpack.c.bf16 %v3427, %v3426
    %v3442 = vpack.c.bf16 %v3429, %v3428
    %v3443 = vpack.c.bf16 %v3431, %v3430
    %v3444 = vpack.c.bf16 %v3433, %v3432
    %v3445 = vpack.c.bf16 %v3435, %v3434
    %v3446 = vpack.c.bf16 %v3437, %v3436
    %v3447 = vpack.c.bf16 %v3439, %v3438
    %s3448 = scalar_lea.vmem %s3, 64
    %v3449 = vld [vmem:[%s3448] sm:$0xf]
    %v3450 = vld [vmem:[%s3448 + $0x4] sm:$0xf]
    %v3451 = vld [vmem:[%s3448 + $0x8] sm:$0xf]
    %v3452 = vld [vmem:[%s3448 + $0xc] sm:$0xf]
    %v3457 = vunpack.c.l.b16 %v3449
    %v3458 = vunpack.c.l.b16 %v3450
    %v3459 = vunpack.c.l.b16 %v3451
    %v3460 = vunpack.c.l.b16 %v3452
    %v3461 = vpack.c.b16 %v3458, %v3457
    %v3462 = vpack.c.b16 %v3460, %v3459
    %v3466 = vsel %vm27, %v3440, 0
    %v3469 = vsel %vm27, %v3441, 0
    %v3472 = vsel %vm27, %v3442, 0
    %v3475 = vsel %vm27, %v3443, 0
    %v3478 = vsel %vm27, %v3444, 0
    %v3481 = vsel %vm27, %v3445, 0
    %v3484 = vsel %vm27, %v3446, 0
    %v3487 = vsel %vm27, %v3447, 0
    %3489 = vmatprep.subr.bf16.mxu0 0
    %3490 = vmatpush1.bf16.msra.mxu0 0
    %3491 = vmatprep.subr.bf16.mxu0 0
    %3492 = vmatpush1.bf16.msra.mxu0 0
    %3493 = vmatprep.subr.bf16.mxu0 0
    %3494 = vmatpush1.bf16.msra.mxu0 0
    %3495 = vmatprep.subr.bf16.mxu0 0
    %3496 = vmatpush1.bf16.msra.mxu0 0
    %3497 = vmatprep.subr.bf16.mxu0 0
    %3498 = vmatpush1.bf16.msra.mxu0 0
    %3499 = vmatprep.subr.bf16.mxu0 0
    %3500 = vmatpush1.bf16.msra.mxu0 0
    %3501 = vmatprep.subr.bf16.mxu0 0
    %3502 = vmatpush1.bf16.msra.mxu0 %v3462
    %3503 = vmatprep.subr.bf16.mxu0 0
    %3504 = vmatpush1.bf16.msra.mxu0 %v3461
    %3505 = vmatprep.subr.bf16.mxu0 0
    %3506 = vmatpush2.bf16.msra.mxu0 0
    %3507 = vmatprep.subr.bf16.mxu0 0
    %3508 = vmatpush2.bf16.msra.mxu0 0
    %3509 = vmatprep.subr.bf16.mxu0 0
    %3510 = vmatpush2.bf16.msra.mxu0 0
    %3511 = vmatprep.subr.bf16.mxu0 0
    %3512 = vmatpush2.bf16.msra.mxu0 0
    %3513 = vmatprep.subr.bf16.mxu0 0
    %3514 = vmatpush2.bf16.msra.mxu0 0
    %3515 = vmatprep.subr.bf16.mxu0 0
    %3516 = vmatpush2.bf16.msra.mxu0 0
    %3517 = vmatprep.subr.bf16.mxu0 0
    %3518 = vmatpush2.bf16.msra.mxu0 0
    %3519 = vmatprep.subr.bf16.mxu0 0
    %3520 = vmatpush2.bf16.msra.mxu0 0
    %3521 = vmatprep.mubr.bf16.mxu0 0
    %3522 = vmatmul.mubr.bf16.gmra.mxu0 %v3466
    %v3523 = vpop.f32.mrf.mxu0
    %v3524 = vadd.f32 0.0, %v3523
    %v3525 = vpop.f32.mrf.mxu0
    %v3526 = vpop.f32.mrf.mxu0
    %v3527 = vadd.f32 0.0, %v3526
    %v3528 = vpop.f32.mrf.mxu0
    %3529 = vmatprep.mubr.bf16.mxu0 0
    %3530 = vmatmul.mubr.bf16.gmra.mxu0 %v3469
    %v3531 = vpop.f32.mrf.mxu0
    %v3532 = vadd.f32 0.0, %v3531
    %v3533 = vpop.f32.mrf.mxu0
    %v3534 = vpop.f32.mrf.mxu0
    %v3535 = vadd.f32 0.0, %v3534
    %v3536 = vpop.f32.mrf.mxu0
    %3537 = vmatprep.mubr.bf16.mxu0 0
    %3538 = vmatmul.mubr.bf16.gmra.mxu0 %v3472
    %v3539 = vpop.f32.mrf.mxu0
    %v3540 = vadd.f32 0.0, %v3539
    %v3541 = vpop.f32.mrf.mxu0
    %v3542 = vpop.f32.mrf.mxu0
    %v3543 = vadd.f32 0.0, %v3542
    %v3544 = vpop.f32.mrf.mxu0
    %3545 = vmatprep.mubr.bf16.mxu0 0
    %3546 = vmatmul.mubr.bf16.gmra.mxu0 %v3475
    %v3547 = vpop.f32.mrf.mxu0
    %v3548 = vadd.f32 0.0, %v3547
    %v3549 = vpop.f32.mrf.mxu0
    %v3550 = vpop.f32.mrf.mxu0
    %v3551 = vadd.f32 0.0, %v3550
    %v3552 = vpop.f32.mrf.mxu0
    %3553 = vmatprep.mubr.bf16.mxu0 0
    %3554 = vmatmul.mubr.bf16.gmra.mxu0 %v3478
    %v3555 = vpop.f32.mrf.mxu0
    %v3556 = vadd.f32 0.0, %v3555
    %v3557 = vpop.f32.mrf.mxu0
    %v3558 = vpop.f32.mrf.mxu0
    %v3559 = vadd.f32 0.0, %v3558
    %v3560 = vpop.f32.mrf.mxu0
    %3561 = vmatprep.mubr.bf16.mxu0 0
    %3562 = vmatmul.mubr.bf16.gmra.mxu0 %v3481
    %v3563 = vpop.f32.mrf.mxu0
    %v3564 = vadd.f32 0.0, %v3563
    %v3565 = vpop.f32.mrf.mxu0
    %v3566 = vpop.f32.mrf.mxu0
    %v3567 = vadd.f32 0.0, %v3566
    %v3568 = vpop.f32.mrf.mxu0
    %3569 = vmatprep.mubr.bf16.mxu0 0
    %3570 = vmatmul.mubr.bf16.gmra.mxu0 %v3484
    %v3571 = vpop.f32.mrf.mxu0
    %v3572 = vadd.f32 0.0, %v3571
    %v3573 = vpop.f32.mrf.mxu0
    %v3574 = vpop.f32.mrf.mxu0
    %v3575 = vadd.f32 0.0, %v3574
    %v3576 = vpop.f32.mrf.mxu0
    %3577 = vmatprep.mubr.bf16.mxu0 0
    %3578 = vmatmul.mubr.bf16.gmra.mxu0 %v3487
    %v3579 = vpop.f32.mrf.mxu0
    %v3580 = vadd.f32 0.0, %v3579
    %v3581 = vpop.f32.mrf.mxu0
    %v3582 = vpop.f32.mrf.mxu0
    %v3583 = vadd.f32 0.0, %v3582
    %v3584 = vpop.f32.mrf.mxu0
    %3585 = vdwg.mxu0
    %v3586 = vadd.f32 %v3376, %v3524
    %v3587 = vadd.f32 %v3377, %v3527
    %v3588 = vadd.f32 %v3378, %v3532
    %v3589 = vadd.f32 %v3379, %v3535
    %v3590 = vadd.f32 %v3380, %v3540
    %v3591 = vadd.f32 %v3381, %v3543
    %v3592 = vadd.f32 %v3382, %v3548
    %v3593 = vadd.f32 %v3383, %v3551
    %v3594 = vadd.f32 %v3384, %v3556
    %v3595 = vadd.f32 %v3385, %v3559
    %v3596 = vadd.f32 %v3386, %v3564
    %v3597 = vadd.f32 %v3387, %v3567
    %v3598 = vadd.f32 %v3388, %v3572
    %v3599 = vadd.f32 %v3389, %v3575
    %v3600 = vadd.f32 %v3390, %v3580
    %v3601 = vadd.f32 %v3391, %v3583
    %v3602 = vld [vmem:[#allocation2 + $0x11] sm:$0xff]
    %v3603 = vld [vmem:[#allocation2 + $0x19] sm:$0xff]
    %v3604 = vld [vmem:[#allocation2 + $0x21] sm:$0xff]
    %v3605 = vld [vmem:[#allocation2 + $0x29] sm:$0xff]
    %v3606 = vld [vmem:[#allocation2 + $0x31] sm:$0xff]
    %v3607 = vld [vmem:[#allocation2 + $0x39] sm:$0xff]
    %v3608 = vld [vmem:[#allocation2 + $0x41] sm:$0xff]
    %v3609 = vld [vmem:[#allocation2 + $0x49] sm:$0xff]
    %v3610 = vld [vmem:[#allocation2 + $0x51] sm:$0xff]
    %v3611 = vld [vmem:[#allocation2 + $0x59] sm:$0xff]
    %v3612 = vld [vmem:[#allocation2 + $0x61] sm:$0xff]
    %v3613 = vld [vmem:[#allocation2 + $0x69] sm:$0xff]
    %v3614 = vld [vmem:[#allocation2 + $0x71] sm:$0xff]
    %v3615 = vld [vmem:[#allocation2 + $0x79] sm:$0xff]
    %v3616 = vld [vmem:[#allocation2 + $0x81] sm:$0xff]
    %v3617 = vld [vmem:[#allocation2 + $0x89] sm:$0xff]
    %v3618 = vld [vmem:[%s1281] sm:$0xff]
    %v3619 = vld [vmem:[%s1281 + $0x8] sm:$0xff]
    %v3620 = vld [vmem:[%s1281 + $0x10] sm:$0xff]
    %v3621 = vld [vmem:[%s1281 + $0x18] sm:$0xff]
    %v3622 = vld [vmem:[%s1281 + $0x20] sm:$0xff]
    %v3623 = vld [vmem:[%s1281 + $0x28] sm:$0xff]
    %v3624 = vld [vmem:[%s1281 + $0x30] sm:$0xff]
    %v3625 = vld [vmem:[%s1281 + $0x38] sm:$0xff]
    %v3626 = vld [vmem:[%s1281 + $0x40] sm:$0xff]
    %v3627 = vld [vmem:[%s1281 + $0x48] sm:$0xff]
    %v3628 = vld [vmem:[%s1281 + $0x50] sm:$0xff]
    %v3629 = vld [vmem:[%s1281 + $0x58] sm:$0xff]
    %v3630 = vld [vmem:[%s1281 + $0x60] sm:$0xff]
    %v3631 = vld [vmem:[%s1281 + $0x68] sm:$0xff]
    %v3632 = vld [vmem:[%s1281 + $0x70] sm:$0xff]
    %v3633 = vld [vmem:[%s1281 + $0x78] sm:$0xff]
    %v3634 = vmul.f32 %v3602, %v3618
    %v3635 = vmul.f32 %v3603, %v3619
    %v3636 = vmul.f32 %v3604, %v3620
    %v3637 = vmul.f32 %v3605, %v3621
    %v3638 = vmul.f32 %v3606, %v3622
    %v3639 = vmul.f32 %v3607, %v3623
    %v3640 = vmul.f32 %v3608, %v3624
    %v3641 = vmul.f32 %v3609, %v3625
    %v3642 = vmul.f32 %v3610, %v3626
    %v3643 = vmul.f32 %v3611, %v3627
    %v3644 = vmul.f32 %v3612, %v3628
    %v3645 = vmul.f32 %v3613, %v3629
    %v3646 = vmul.f32 %v3614, %v3630
    %v3647 = vmul.f32 %v3615, %v3631
    %v3648 = vmul.f32 %v3616, %v3632
    %v3649 = vmul.f32 %v3617, %v3633
    %v3650 = vpack.c.bf16 %v3635, %v3634
    %v3651 = vpack.c.bf16 %v3637, %v3636
    %v3652 = vpack.c.bf16 %v3639, %v3638
    %v3653 = vpack.c.bf16 %v3641, %v3640
    %v3654 = vpack.c.bf16 %v3643, %v3642
    %v3655 = vpack.c.bf16 %v3645, %v3644
    %v3656 = vpack.c.bf16 %v3647, %v3646
    %v3657 = vpack.c.bf16 %v3649, %v3648
    %s3658 = scalar_lea.vmem %s3, 80
    %v3659 = vld [vmem:[%s3658] sm:$0xf]
    %v3660 = vld [vmem:[%s3658 + $0x4] sm:$0xf]
    %v3661 = vld [vmem:[%s3658 + $0x8] sm:$0xf]
    %v3662 = vld [vmem:[%s3658 + $0xc] sm:$0xf]
    %v3667 = vunpack.c.l.b16 %v3659
    %v3668 = vunpack.c.l.b16 %v3660
    %v3669 = vunpack.c.l.b16 %v3661
    %v3670 = vunpack.c.l.b16 %v3662
    %v3671 = vpack.c.b16 %v3668, %v3667
    %v3672 = vpack.c.b16 %v3670, %v3669
    %v3676 = vsel %vm27, %v3650, 0
    %v3679 = vsel %vm27, %v3651, 0
    %v3682 = vsel %vm27, %v3652, 0
    %v3685 = vsel %vm27, %v3653, 0
    %v3688 = vsel %vm27, %v3654, 0
    %v3691 = vsel %vm27, %v3655, 0
    %v3694 = vsel %vm27, %v3656, 0
    %v3697 = vsel %vm27, %v3657, 0
    %3699 = vmatprep.subr.bf16.mxu0 0
    %3700 = vmatpush1.bf16.msra.mxu0 0
    %3701 = vmatprep.subr.bf16.mxu0 0
    %3702 = vmatpush1.bf16.msra.mxu0 0
    %3703 = vmatprep.subr.bf16.mxu0 0
    %3704 = vmatpush1.bf16.msra.mxu0 0
    %3705 = vmatprep.subr.bf16.mxu0 0
    %3706 = vmatpush1.bf16.msra.mxu0 0
    %3707 = vmatprep.subr.bf16.mxu0 0
    %3708 = vmatpush1.bf16.msra.mxu0 0
    %3709 = vmatprep.subr.bf16.mxu0 0
    %3710 = vmatpush1.bf16.msra.mxu0 0
    %3711 = vmatprep.subr.bf16.mxu0 0
    %3712 = vmatpush1.bf16.msra.mxu0 %v3672
    %3713 = vmatprep.subr.bf16.mxu0 0
    %3714 = vmatpush1.bf16.msra.mxu0 %v3671
    %3715 = vmatprep.subr.bf16.mxu0 0
    %3716 = vmatpush2.bf16.msra.mxu0 0
    %3717 = vmatprep.subr.bf16.mxu0 0
    %3718 = vmatpush2.bf16.msra.mxu0 0
    %3719 = vmatprep.subr.bf16.mxu0 0
    %3720 = vmatpush2.bf16.msra.mxu0 0
    %3721 = vmatprep.subr.bf16.mxu0 0
    %3722 = vmatpush2.bf16.msra.mxu0 0
    %3723 = vmatprep.subr.bf16.mxu0 0
    %3724 = vmatpush2.bf16.msra.mxu0 0
    %3725 = vmatprep.subr.bf16.mxu0 0
    %3726 = vmatpush2.bf16.msra.mxu0 0
    %3727 = vmatprep.subr.bf16.mxu0 0
    %3728 = vmatpush2.bf16.msra.mxu0 0
    %3729 = vmatprep.subr.bf16.mxu0 0
    %3730 = vmatpush2.bf16.msra.mxu0 0
    %3731 = vmatprep.mubr.bf16.mxu0 0
    %3732 = vmatmul.mubr.bf16.gmra.mxu0 %v3676
    %v3733 = vpop.f32.mrf.mxu0
    %v3734 = vadd.f32 0.0, %v3733
    %v3735 = vpop.f32.mrf.mxu0
    %v3736 = vpop.f32.mrf.mxu0
    %v3737 = vadd.f32 0.0, %v3736
    %v3738 = vpop.f32.mrf.mxu0
    %3739 = vmatprep.mubr.bf16.mxu0 0
    %3740 = vmatmul.mubr.bf16.gmra.mxu0 %v3679
    %v3741 = vpop.f32.mrf.mxu0
    %v3742 = vadd.f32 0.0, %v3741
    %v3743 = vpop.f32.mrf.mxu0
    %v3744 = vpop.f32.mrf.mxu0
    %v3745 = vadd.f32 0.0, %v3744
    %v3746 = vpop.f32.mrf.mxu0
    %3747 = vmatprep.mubr.bf16.mxu0 0
    %3748 = vmatmul.mubr.bf16.gmra.mxu0 %v3682
    %v3749 = vpop.f32.mrf.mxu0
    %v3750 = vadd.f32 0.0, %v3749
    %v3751 = vpop.f32.mrf.mxu0
    %v3752 = vpop.f32.mrf.mxu0
    %v3753 = vadd.f32 0.0, %v3752
    %v3754 = vpop.f32.mrf.mxu0
    %3755 = vmatprep.mubr.bf16.mxu0 0
    %3756 = vmatmul.mubr.bf16.gmra.mxu0 %v3685
    %v3757 = vpop.f32.mrf.mxu0
    %v3758 = vadd.f32 0.0, %v3757
    %v3759 = vpop.f32.mrf.mxu0
    %v3760 = vpop.f32.mrf.mxu0
    %v3761 = vadd.f32 0.0, %v3760
    %v3762 = vpop.f32.mrf.mxu0
    %3763 = vmatprep.mubr.bf16.mxu0 0
    %3764 = vmatmul.mubr.bf16.gmra.mxu0 %v3688
    %v3765 = vpop.f32.mrf.mxu0
    %v3766 = vadd.f32 0.0, %v3765
    %v3767 = vpop.f32.mrf.mxu0
    %v3768 = vpop.f32.mrf.mxu0
    %v3769 = vadd.f32 0.0, %v3768
    %v3770 = vpop.f32.mrf.mxu0
    %3771 = vmatprep.mubr.bf16.mxu0 0
    %3772 = vmatmul.mubr.bf16.gmra.mxu0 %v3691
    %v3773 = vpop.f32.mrf.mxu0
    %v3774 = vadd.f32 0.0, %v3773
    %v3775 = vpop.f32.mrf.mxu0
    %v3776 = vpop.f32.mrf.mxu0
    %v3777 = vadd.f32 0.0, %v3776
    %v3778 = vpop.f32.mrf.mxu0
    %3779 = vmatprep.mubr.bf16.mxu0 0
    %3780 = vmatmul.mubr.bf16.gmra.mxu0 %v3694
    %v3781 = vpop.f32.mrf.mxu0
    %v3782 = vadd.f32 0.0, %v3781
    %v3783 = vpop.f32.mrf.mxu0
    %v3784 = vpop.f32.mrf.mxu0
    %v3785 = vadd.f32 0.0, %v3784
    %v3786 = vpop.f32.mrf.mxu0
    %3787 = vmatprep.mubr.bf16.mxu0 0
    %3788 = vmatmul.mubr.bf16.gmra.mxu0 %v3697
    %v3789 = vpop.f32.mrf.mxu0
    %v3790 = vadd.f32 0.0, %v3789
    %v3791 = vpop.f32.mrf.mxu0
    %v3792 = vpop.f32.mrf.mxu0
    %v3793 = vadd.f32 0.0, %v3792
    %v3794 = vpop.f32.mrf.mxu0
    %3795 = vdwg.mxu0
    %v3796 = vadd.f32 %v3586, %v3734
    %v3797 = vadd.f32 %v3587, %v3737
    %v3798 = vadd.f32 %v3588, %v3742
    %v3799 = vadd.f32 %v3589, %v3745
    %v3800 = vadd.f32 %v3590, %v3750
    %v3801 = vadd.f32 %v3591, %v3753
    %v3802 = vadd.f32 %v3592, %v3758
    %v3803 = vadd.f32 %v3593, %v3761
    %v3804 = vadd.f32 %v3594, %v3766
    %v3805 = vadd.f32 %v3595, %v3769
    %v3806 = vadd.f32 %v3596, %v3774
    %v3807 = vadd.f32 %v3597, %v3777
    %v3808 = vadd.f32 %v3598, %v3782
    %v3809 = vadd.f32 %v3599, %v3785
    %v3810 = vadd.f32 %v3600, %v3790
    %v3811 = vadd.f32 %v3601, %v3793
    %v3812 = vld [vmem:[#allocation2 + $0x17] sm:$0xff]
    %v3813 = vld [vmem:[#allocation2 + $0x1f] sm:$0xff]
    %v3814 = vld [vmem:[#allocation2 + $0x27] sm:$0xff]
    %v3815 = vld [vmem:[#allocation2 + $0x2f] sm:$0xff]
    %v3816 = vld [vmem:[#allocation2 + $0x37] sm:$0xff]
    %v3817 = vld [vmem:[#allocation2 + $0x3f] sm:$0xff]
    %v3818 = vld [vmem:[#allocation2 + $0x47] sm:$0xff]
    %v3819 = vld [vmem:[#allocation2 + $0x4f] sm:$0xff]
    %v3820 = vld [vmem:[#allocation2 + $0x57] sm:$0xff]
    %v3821 = vld [vmem:[#allocation2 + $0x5f] sm:$0xff]
    %v3822 = vld [vmem:[#allocation2 + $0x67] sm:$0xff]
    %v3823 = vld [vmem:[#allocation2 + $0x6f] sm:$0xff]
    %v3824 = vld [vmem:[#allocation2 + $0x77] sm:$0xff]
    %v3825 = vld [vmem:[#allocation2 + $0x7f] sm:$0xff]
    %v3826 = vld [vmem:[#allocation2 + $0x87] sm:$0xff]
    %v3827 = vld [vmem:[#allocation2 + $0x8f] sm:$0xff]
    %v3828 = vld [vmem:[%s1528] sm:$0xff]
    %v3829 = vld [vmem:[%s1528 + $0x8] sm:$0xff]
    %v3830 = vld [vmem:[%s1528 + $0x10] sm:$0xff]
    %v3831 = vld [vmem:[%s1528 + $0x18] sm:$0xff]
    %v3832 = vld [vmem:[%s1528 + $0x20] sm:$0xff]
    %v3833 = vld [vmem:[%s1528 + $0x28] sm:$0xff]
    %v3834 = vld [vmem:[%s1528 + $0x30] sm:$0xff]
    %v3835 = vld [vmem:[%s1528 + $0x38] sm:$0xff]
    %v3836 = vld [vmem:[%s1528 + $0x40] sm:$0xff]
    %v3837 = vld [vmem:[%s1528 + $0x48] sm:$0xff]
    %v3838 = vld [vmem:[%s1528 + $0x50] sm:$0xff]
    %v3839 = vld [vmem:[%s1528 + $0x58] sm:$0xff]
    %v3840 = vld [vmem:[%s1528 + $0x60] sm:$0xff]
    %v3841 = vld [vmem:[%s1528 + $0x68] sm:$0xff]
    %v3842 = vld [vmem:[%s1528 + $0x70] sm:$0xff]
    %v3843 = vld [vmem:[%s1528 + $0x78] sm:$0xff]
    %v3844 = vmul.f32 %v3812, %v3828
    %v3845 = vmul.f32 %v3813, %v3829
    %v3846 = vmul.f32 %v3814, %v3830
    %v3847 = vmul.f32 %v3815, %v3831
    %v3848 = vmul.f32 %v3816, %v3832
    %v3849 = vmul.f32 %v3817, %v3833
    %v3850 = vmul.f32 %v3818, %v3834
    %v3851 = vmul.f32 %v3819, %v3835
    %v3852 = vmul.f32 %v3820, %v3836
    %v3853 = vmul.f32 %v3821, %v3837
    %v3854 = vmul.f32 %v3822, %v3838
    %v3855 = vmul.f32 %v3823, %v3839
    %v3856 = vmul.f32 %v3824, %v3840
    %v3857 = vmul.f32 %v3825, %v3841
    %v3858 = vmul.f32 %v3826, %v3842
    %v3859 = vmul.f32 %v3827, %v3843
    %v3860 = vpack.c.bf16 %v3845, %v3844
    %v3861 = vpack.c.bf16 %v3847, %v3846
    %v3862 = vpack.c.bf16 %v3849, %v3848
    %v3863 = vpack.c.bf16 %v3851, %v3850
    %v3864 = vpack.c.bf16 %v3853, %v3852
    %v3865 = vpack.c.bf16 %v3855, %v3854
    %v3866 = vpack.c.bf16 %v3857, %v3856
    %v3867 = vpack.c.bf16 %v3859, %v3858
    %s3868 = scalar_lea.vmem %s3, 96
    %v3869 = vld [vmem:[%s3868] sm:$0xf]
    %v3870 = vld [vmem:[%s3868 + $0x4] sm:$0xf]
    %v3871 = vld [vmem:[%s3868 + $0x8] sm:$0xf]
    %v3872 = vld [vmem:[%s3868 + $0xc] sm:$0xf]
    %v3877 = vunpack.c.l.b16 %v3869
    %v3878 = vunpack.c.l.b16 %v3870
    %v3879 = vunpack.c.l.b16 %v3871
    %v3880 = vunpack.c.l.b16 %v3872
    %v3881 = vpack.c.b16 %v3878, %v3877
    %v3882 = vpack.c.b16 %v3880, %v3879
    %v3886 = vsel %vm27, %v3860, 0
    %v3889 = vsel %vm27, %v3861, 0
    %v3892 = vsel %vm27, %v3862, 0
    %v3895 = vsel %vm27, %v3863, 0
    %v3898 = vsel %vm27, %v3864, 0
    %v3901 = vsel %vm27, %v3865, 0
    %v3904 = vsel %vm27, %v3866, 0
    %v3907 = vsel %vm27, %v3867, 0
    %3909 = vmatprep.subr.bf16.mxu0 0
    %3910 = vmatpush1.bf16.msra.mxu0 0
    %3911 = vmatprep.subr.bf16.mxu0 0
    %3912 = vmatpush1.bf16.msra.mxu0 0
    %3913 = vmatprep.subr.bf16.mxu0 0
    %3914 = vmatpush1.bf16.msra.mxu0 0
    %3915 = vmatprep.subr.bf16.mxu0 0
    %3916 = vmatpush1.bf16.msra.mxu0 0
    %3917 = vmatprep.subr.bf16.mxu0 0
    %3918 = vmatpush1.bf16.msra.mxu0 0
    %3919 = vmatprep.subr.bf16.mxu0 0
    %3920 = vmatpush1.bf16.msra.mxu0 0
    %3921 = vmatprep.subr.bf16.mxu0 0
    %3922 = vmatpush1.bf16.msra.mxu0 %v3882
    %3923 = vmatprep.subr.bf16.mxu0 0
    %3924 = vmatpush1.bf16.msra.mxu0 %v3881
    %3925 = vmatprep.subr.bf16.mxu0 0
    %3926 = vmatpush2.bf16.msra.mxu0 0
    %3927 = vmatprep.subr.bf16.mxu0 0
    %3928 = vmatpush2.bf16.msra.mxu0 0
    %3929 = vmatprep.subr.bf16.mxu0 0
    %3930 = vmatpush2.bf16.msra.mxu0 0
    %3931 = vmatprep.subr.bf16.mxu0 0
    %3932 = vmatpush2.bf16.msra.mxu0 0
    %3933 = vmatprep.subr.bf16.mxu0 0
    %3934 = vmatpush2.bf16.msra.mxu0 0
    %3935 = vmatprep.subr.bf16.mxu0 0
    %3936 = vmatpush2.bf16.msra.mxu0 0
    %3937 = vmatprep.subr.bf16.mxu0 0
    %3938 = vmatpush2.bf16.msra.mxu0 0
    %3939 = vmatprep.subr.bf16.mxu0 0
    %3940 = vmatpush2.bf16.msra.mxu0 0
    %3941 = vmatprep.mubr.bf16.mxu0 0
    %3942 = vmatmul.mubr.bf16.gmra.mxu0 %v3886
    %v3943 = vpop.f32.mrf.mxu0
    %v3944 = vadd.f32 0.0, %v3943
    %v3945 = vpop.f32.mrf.mxu0
    %v3946 = vpop.f32.mrf.mxu0
    %v3947 = vadd.f32 0.0, %v3946
    %v3948 = vpop.f32.mrf.mxu0
    %3949 = vmatprep.mubr.bf16.mxu0 0
    %3950 = vmatmul.mubr.bf16.gmra.mxu0 %v3889
    %v3951 = vpop.f32.mrf.mxu0
    %v3952 = vadd.f32 0.0, %v3951
    %v3953 = vpop.f32.mrf.mxu0
    %v3954 = vpop.f32.mrf.mxu0
    %v3955 = vadd.f32 0.0, %v3954
    %v3956 = vpop.f32.mrf.mxu0
    %3957 = vmatprep.mubr.bf16.mxu0 0
    %3958 = vmatmul.mubr.bf16.gmra.mxu0 %v3892
    %v3959 = vpop.f32.mrf.mxu0
    %v3960 = vadd.f32 0.0, %v3959
    %v3961 = vpop.f32.mrf.mxu0
    %v3962 = vpop.f32.mrf.mxu0
    %v3963 = vadd.f32 0.0, %v3962
    %v3964 = vpop.f32.mrf.mxu0
    %3965 = vmatprep.mubr.bf16.mxu0 0
    %3966 = vmatmul.mubr.bf16.gmra.mxu0 %v3895
    %v3967 = vpop.f32.mrf.mxu0
    %v3968 = vadd.f32 0.0, %v3967
    %v3969 = vpop.f32.mrf.mxu0
    %v3970 = vpop.f32.mrf.mxu0
    %v3971 = vadd.f32 0.0, %v3970
    %v3972 = vpop.f32.mrf.mxu0
    %3973 = vmatprep.mubr.bf16.mxu0 0
    %3974 = vmatmul.mubr.bf16.gmra.mxu0 %v3898
    %v3975 = vpop.f32.mrf.mxu0
    %v3976 = vadd.f32 0.0, %v3975
    %v3977 = vpop.f32.mrf.mxu0
    %v3978 = vpop.f32.mrf.mxu0
    %v3979 = vadd.f32 0.0, %v3978
    %v3980 = vpop.f32.mrf.mxu0
    %3981 = vmatprep.mubr.bf16.mxu0 0
    %3982 = vmatmul.mubr.bf16.gmra.mxu0 %v3901
    %v3983 = vpop.f32.mrf.mxu0
    %v3984 = vadd.f32 0.0, %v3983
    %v3985 = vpop.f32.mrf.mxu0
    %v3986 = vpop.f32.mrf.mxu0
    %v3987 = vadd.f32 0.0, %v3986
    %v3988 = vpop.f32.mrf.mxu0
    %3989 = vmatprep.mubr.bf16.mxu0 0
    %3990 = vmatmul.mubr.bf16.gmra.mxu0 %v3904
    %v3991 = vpop.f32.mrf.mxu0
    %v3992 = vadd.f32 0.0, %v3991
    %v3993 = vpop.f32.mrf.mxu0
    %v3994 = vpop.f32.mrf.mxu0
    %v3995 = vadd.f32 0.0, %v3994
    %v3996 = vpop.f32.mrf.mxu0
    %3997 = vmatprep.mubr.bf16.mxu0 0
    %3998 = vmatmul.mubr.bf16.gmra.mxu0 %v3907
    %v3999 = vpop.f32.mrf.mxu0
    %v4000 = vadd.f32 0.0, %v3999
    %v4001 = vpop.f32.mrf.mxu0
    %v4002 = vpop.f32.mrf.mxu0
    %v4003 = vadd.f32 0.0, %v4002
    %v4004 = vpop.f32.mrf.mxu0
    %4005 = vdwg.mxu0
    %v4006 = vadd.f32 %v3796, %v3944
    %v4007 = vadd.f32 %v3797, %v3947
    %v4008 = vadd.f32 %v3798, %v3952
    %v4009 = vadd.f32 %v3799, %v3955
    %v4010 = vadd.f32 %v3800, %v3960
    %v4011 = vadd.f32 %v3801, %v3963
    %v4012 = vadd.f32 %v3802, %v3968
    %v4013 = vadd.f32 %v3803, %v3971
    %v4014 = vadd.f32 %v3804, %v3976
    %v4015 = vadd.f32 %v3805, %v3979
    %v4016 = vadd.f32 %v3806, %v3984
    %v4017 = vadd.f32 %v3807, %v3987
    %v4018 = vadd.f32 %v3808, %v3992
    %v4019 = vadd.f32 %v3809, %v3995
    %v4020 = vadd.f32 %v3810, %v4000
    %v4021 = vadd.f32 %v3811, %v4003
    %v4022 = vld [vmem:[#allocation2 + $0x18] sm:$0xff]
    %v4023 = vld [vmem:[#allocation2 + $0x20] sm:$0xff]
    %v4024 = vld [vmem:[#allocation2 + $0x28] sm:$0xff]
    %v4025 = vld [vmem:[#allocation2 + $0x30] sm:$0xff]
    %v4026 = vld [vmem:[#allocation2 + $0x38] sm:$0xff]
    %v4027 = vld [vmem:[#allocation2 + $0x40] sm:$0xff]
    %v4028 = vld [vmem:[#allocation2 + $0x48] sm:$0xff]
    %v4029 = vld [vmem:[#allocation2 + $0x50] sm:$0xff]
    %v4030 = vld [vmem:[#allocation2 + $0x58] sm:$0xff]
    %v4031 = vld [vmem:[#allocation2 + $0x60] sm:$0xff]
    %v4032 = vld [vmem:[#allocation2 + $0x68] sm:$0xff]
    %v4033 = vld [vmem:[#allocation2 + $0x70] sm:$0xff]
    %v4034 = vld [vmem:[#allocation2 + $0x78] sm:$0xff]
    %v4035 = vld [vmem:[#allocation2 + $0x80] sm:$0xff]
    %v4036 = vld [vmem:[#allocation2 + $0x88] sm:$0xff]
    %v4037 = vld [vmem:[#allocation2 + $0x90] sm:$0xff]
    %v4038 = vld [vmem:[%s1775] sm:$0xff]
    %v4039 = vld [vmem:[%s1775 + $0x8] sm:$0xff]
    %v4040 = vld [vmem:[%s1775 + $0x10] sm:$0xff]
    %v4041 = vld [vmem:[%s1775 + $0x18] sm:$0xff]
    %v4042 = vld [vmem:[%s1775 + $0x20] sm:$0xff]
    %v4043 = vld [vmem:[%s1775 + $0x28] sm:$0xff]
    %v4044 = vld [vmem:[%s1775 + $0x30] sm:$0xff]
    %v4045 = vld [vmem:[%s1775 + $0x38] sm:$0xff]
    %v4046 = vld [vmem:[%s1775 + $0x40] sm:$0xff]
    %v4047 = vld [vmem:[%s1775 + $0x48] sm:$0xff]
    %v4048 = vld [vmem:[%s1775 + $0x50] sm:$0xff]
    %v4049 = vld [vmem:[%s1775 + $0x58] sm:$0xff]
    %v4050 = vld [vmem:[%s1775 + $0x60] sm:$0xff]
    %v4051 = vld [vmem:[%s1775 + $0x68] sm:$0xff]
    %v4052 = vld [vmem:[%s1775 + $0x70] sm:$0xff]
    %v4053 = vld [vmem:[%s1775 + $0x78] sm:$0xff]
    %v4054 = vmul.f32 %v4022, %v4038
    %v4055 = vmul.f32 %v4023, %v4039
    %v4056 = vmul.f32 %v4024, %v4040
    %v4057 = vmul.f32 %v4025, %v4041
    %v4058 = vmul.f32 %v4026, %v4042
    %v4059 = vmul.f32 %v4027, %v4043
    %v4060 = vmul.f32 %v4028, %v4044
    %v4061 = vmul.f32 %v4029, %v4045
    %v4062 = vmul.f32 %v4030, %v4046
    %v4063 = vmul.f32 %v4031, %v4047
    %v4064 = vmul.f32 %v4032, %v4048
    %v4065 = vmul.f32 %v4033, %v4049
    %v4066 = vmul.f32 %v4034, %v4050
    %v4067 = vmul.f32 %v4035, %v4051
    %v4068 = vmul.f32 %v4036, %v4052
    %v4069 = vmul.f32 %v4037, %v4053
    %v4070 = vpack.c.bf16 %v4055, %v4054
    %v4071 = vpack.c.bf16 %v4057, %v4056
    %v4072 = vpack.c.bf16 %v4059, %v4058
    %v4073 = vpack.c.bf16 %v4061, %v4060
    %v4074 = vpack.c.bf16 %v4063, %v4062
    %v4075 = vpack.c.bf16 %v4065, %v4064
    %v4076 = vpack.c.bf16 %v4067, %v4066
    %v4077 = vpack.c.bf16 %v4069, %v4068
    %s4078 = scalar_lea.vmem %s3, 112
    %v4079 = vld [vmem:[%s4078] sm:$0xf]
    %v4080 = vld [vmem:[%s4078 + $0x4] sm:$0xf]
    %v4081 = vld [vmem:[%s4078 + $0x8] sm:$0xf]
    %v4082 = vld [vmem:[%s4078 + $0xc] sm:$0xf]
    %v4087 = vunpack.c.l.b16 %v4079
    %v4088 = vunpack.c.l.b16 %v4080
    %v4089 = vunpack.c.l.b16 %v4081
    %v4090 = vunpack.c.l.b16 %v4082
    %v4091 = vpack.c.b16 %v4088, %v4087
    %v4092 = vpack.c.b16 %v4090, %v4089
    %v4096 = vsel %vm27, %v4070, 0
    %v4099 = vsel %vm27, %v4071, 0
    %v4102 = vsel %vm27, %v4072, 0
    %v4105 = vsel %vm27, %v4073, 0
    %v4108 = vsel %vm27, %v4074, 0
    %v4111 = vsel %vm27, %v4075, 0
    %v4114 = vsel %vm27, %v4076, 0
    %v4117 = vsel %vm27, %v4077, 0
    %4119 = vmatprep.subr.bf16.mxu0 0
    %4120 = vmatpush1.bf16.msra.mxu0 0
    %4121 = vmatprep.subr.bf16.mxu0 0
    %4122 = vmatpush1.bf16.msra.mxu0 0
    %4123 = vmatprep.subr.bf16.mxu0 0
    %4124 = vmatpush1.bf16.msra.mxu0 0
    %4125 = vmatprep.subr.bf16.mxu0 0
    %4126 = vmatpush1.bf16.msra.mxu0 0
    %4127 = vmatprep.subr.bf16.mxu0 0
    %4128 = vmatpush1.bf16.msra.mxu0 0
    %4129 = vmatprep.subr.bf16.mxu0 0
    %4130 = vmatpush1.bf16.msra.mxu0 0
    %4131 = vmatprep.subr.bf16.mxu0 0
    %4132 = vmatpush1.bf16.msra.mxu0 %v4092
    %4133 = vmatprep.subr.bf16.mxu0 0
    %4134 = vmatpush1.bf16.msra.mxu0 %v4091
    %4135 = vmatprep.subr.bf16.mxu0 0
    %4136 = vmatpush2.bf16.msra.mxu0 0
    %4137 = vmatprep.subr.bf16.mxu0 0
    %4138 = vmatpush2.bf16.msra.mxu0 0
    %4139 = vmatprep.subr.bf16.mxu0 0
    %4140 = vmatpush2.bf16.msra.mxu0 0
    %4141 = vmatprep.subr.bf16.mxu0 0
    %4142 = vmatpush2.bf16.msra.mxu0 0
    %4143 = vmatprep.subr.bf16.mxu0 0
    %4144 = vmatpush2.bf16.msra.mxu0 0
    %4145 = vmatprep.subr.bf16.mxu0 0
    %4146 = vmatpush2.bf16.msra.mxu0 0
    %4147 = vmatprep.subr.bf16.mxu0 0
    %4148 = vmatpush2.bf16.msra.mxu0 0
    %4149 = vmatprep.subr.bf16.mxu0 0
    %4150 = vmatpush2.bf16.msra.mxu0 0
    %4151 = vmatprep.mubr.bf16.mxu0 0
    %4152 = vmatmul.mubr.bf16.gmra.mxu0 %v4096
    %v4153 = vpop.f32.mrf.mxu0
    %v4154 = vadd.f32 0.0, %v4153
    %v4155 = vpop.f32.mrf.mxu0
    %v4156 = vpop.f32.mrf.mxu0
    %v4157 = vadd.f32 0.0, %v4156
    %v4158 = vpop.f32.mrf.mxu0
    %4159 = vmatprep.mubr.bf16.mxu0 0
    %4160 = vmatmul.mubr.bf16.gmra.mxu0 %v4099
    %v4161 = vpop.f32.mrf.mxu0
    %v4162 = vadd.f32 0.0, %v4161
    %v4163 = vpop.f32.mrf.mxu0
    %v4164 = vpop.f32.mrf.mxu0
    %v4165 = vadd.f32 0.0, %v4164
    %v4166 = vpop.f32.mrf.mxu0
    %4167 = vmatprep.mubr.bf16.mxu0 0
    %4168 = vmatmul.mubr.bf16.gmra.mxu0 %v4102
    %v4169 = vpop.f32.mrf.mxu0
    %v4170 = vadd.f32 0.0, %v4169
    %v4171 = vpop.f32.mrf.mxu0
    %v4172 = vpop.f32.mrf.mxu0
    %v4173 = vadd.f32 0.0, %v4172
    %v4174 = vpop.f32.mrf.mxu0
    %4175 = vmatprep.mubr.bf16.mxu0 0
    %4176 = vmatmul.mubr.bf16.gmra.mxu0 %v4105
    %v4177 = vpop.f32.mrf.mxu0
    %v4178 = vadd.f32 0.0, %v4177
    %v4179 = vpop.f32.mrf.mxu0
    %v4180 = vpop.f32.mrf.mxu0
    %v4181 = vadd.f32 0.0, %v4180
    %v4182 = vpop.f32.mrf.mxu0
    %4183 = vmatprep.mubr.bf16.mxu0 0
    %4184 = vmatmul.mubr.bf16.gmra.mxu0 %v4108
    %v4185 = vpop.f32.mrf.mxu0
    %v4186 = vadd.f32 0.0, %v4185
    %v4187 = vpop.f32.mrf.mxu0
    %v4188 = vpop.f32.mrf.mxu0
    %v4189 = vadd.f32 0.0, %v4188
    %v4190 = vpop.f32.mrf.mxu0
    %4191 = vmatprep.mubr.bf16.mxu0 0
    %4192 = vmatmul.mubr.bf16.gmra.mxu0 %v4111
    %v4193 = vpop.f32.mrf.mxu0
    %v4194 = vadd.f32 0.0, %v4193
    %v4195 = vpop.f32.mrf.mxu0
    %v4196 = vpop.f32.mrf.mxu0
    %v4197 = vadd.f32 0.0, %v4196
    %v4198 = vpop.f32.mrf.mxu0
    %4199 = vmatprep.mubr.bf16.mxu0 0
    %4200 = vmatmul.mubr.bf16.gmra.mxu0 %v4114
    %v4201 = vpop.f32.mrf.mxu0
    %v4202 = vadd.f32 0.0, %v4201
    %v4203 = vpop.f32.mrf.mxu0
    %v4204 = vpop.f32.mrf.mxu0
    %v4205 = vadd.f32 0.0, %v4204
    %v4206 = vpop.f32.mrf.mxu0
    %4207 = vmatprep.mubr.bf16.mxu0 0
    %4208 = vmatmul.mubr.bf16.gmra.mxu0 %v4117
    %v4209 = vpop.f32.mrf.mxu0
    %v4210 = vadd.f32 0.0, %v4209
    %v4211 = vpop.f32.mrf.mxu0
    %v4212 = vpop.f32.mrf.mxu0
    %v4213 = vadd.f32 0.0, %v4212
    %v4214 = vpop.f32.mrf.mxu0
    %4215 = vdwg.mxu0
    %v4216 = vadd.f32 %v4006, %v4154
    %v4217 = vadd.f32 %v4007, %v4157
    %v4218 = vadd.f32 %v4008, %v4162
    %v4219 = vadd.f32 %v4009, %v4165
    %v4220 = vadd.f32 %v4010, %v4170
    %v4221 = vadd.f32 %v4011, %v4173
    %v4222 = vadd.f32 %v4012, %v4178
    %v4223 = vadd.f32 %v4013, %v4181
    %v4224 = vadd.f32 %v4014, %v4186
    %v4225 = vadd.f32 %v4015, %v4189
    %v4226 = vadd.f32 %v4016, %v4194
    %v4227 = vadd.f32 %v4017, %v4197
    %v4228 = vadd.f32 %v4018, %v4202
    %v4229 = vadd.f32 %v4019, %v4205
    %v4230 = vadd.f32 %v4020, %v4210
    %v4231 = vadd.f32 %v4021, %v4213
    %v4232 = vld [vmem:[#allocation2 + $0x19] sm:$0xff]
    %v4233 = vld [vmem:[#allocation2 + $0x21] sm:$0xff]
    %v4234 = vld [vmem:[#allocation2 + $0x29] sm:$0xff]
    %v4235 = vld [vmem:[#allocation2 + $0x31] sm:$0xff]
    %v4236 = vld [vmem:[#allocation2 + $0x39] sm:$0xff]
    %v4237 = vld [vmem:[#allocation2 + $0x41] sm:$0xff]
    %v4238 = vld [vmem:[#allocation2 + $0x49] sm:$0xff]
    %v4239 = vld [vmem:[#allocation2 + $0x51] sm:$0xff]
    %v4240 = vld [vmem:[#allocation2 + $0x59] sm:$0xff]
    %v4241 = vld [vmem:[#allocation2 + $0x61] sm:$0xff]
    %v4242 = vld [vmem:[#allocation2 + $0x69] sm:$0xff]
    %v4243 = vld [vmem:[#allocation2 + $0x71] sm:$0xff]
    %v4244 = vld [vmem:[#allocation2 + $0x79] sm:$0xff]
    %v4245 = vld [vmem:[#allocation2 + $0x81] sm:$0xff]
    %v4246 = vld [vmem:[#allocation2 + $0x89] sm:$0xff]
    %v4247 = vld [vmem:[#allocation2 + $0x91] sm:$0xff]
    %v4248 = vld [vmem:[%s2022] sm:$0xff]
    %v4249 = vld [vmem:[%s2022 + $0x8] sm:$0xff]
    %v4250 = vld [vmem:[%s2022 + $0x10] sm:$0xff]
    %v4251 = vld [vmem:[%s2022 + $0x18] sm:$0xff]
    %v4252 = vld [vmem:[%s2022 + $0x20] sm:$0xff]
    %v4253 = vld [vmem:[%s2022 + $0x28] sm:$0xff]
    %v4254 = vld [vmem:[%s2022 + $0x30] sm:$0xff]
    %v4255 = vld [vmem:[%s2022 + $0x38] sm:$0xff]
    %v4256 = vld [vmem:[%s2022 + $0x40] sm:$0xff]
    %v4257 = vld [vmem:[%s2022 + $0x48] sm:$0xff]
    %v4258 = vld [vmem:[%s2022 + $0x50] sm:$0xff]
    %v4259 = vld [vmem:[%s2022 + $0x58] sm:$0xff]
    %v4260 = vld [vmem:[%s2022 + $0x60] sm:$0xff]
    %v4261 = vld [vmem:[%s2022 + $0x68] sm:$0xff]
    %v4262 = vld [vmem:[%s2022 + $0x70] sm:$0xff]
    %v4263 = vld [vmem:[%s2022 + $0x78] sm:$0xff]
    %v4264 = vmul.f32 %v4232, %v4248
    %v4265 = vmul.f32 %v4233, %v4249
    %v4266 = vmul.f32 %v4234, %v4250
    %v4267 = vmul.f32 %v4235, %v4251
    %v4268 = vmul.f32 %v4236, %v4252
    %v4269 = vmul.f32 %v4237, %v4253
    %v4270 = vmul.f32 %v4238, %v4254
    %v4271 = vmul.f32 %v4239, %v4255
    %v4272 = vmul.f32 %v4240, %v4256
    %v4273 = vmul.f32 %v4241, %v4257
    %v4274 = vmul.f32 %v4242, %v4258
    %v4275 = vmul.f32 %v4243, %v4259
    %v4276 = vmul.f32 %v4244, %v4260
    %v4277 = vmul.f32 %v4245, %v4261
    %v4278 = vmul.f32 %v4246, %v4262
    %v4279 = vmul.f32 %v4247, %v4263
    %v4280 = vpack.c.bf16 %v4265, %v4264
    %v4281 = vpack.c.bf16 %v4267, %v4266
    %v4282 = vpack.c.bf16 %v4269, %v4268
    %v4283 = vpack.c.bf16 %v4271, %v4270
    %v4284 = vpack.c.bf16 %v4273, %v4272
    %v4285 = vpack.c.bf16 %v4275, %v4274
    %v4286 = vpack.c.bf16 %v4277, %v4276
    %v4287 = vpack.c.bf16 %v4279, %v4278
    %s4288 = scalar_lea.vmem %s3, 128
    %v4289 = vld [vmem:[%s4288] sm:$0xf]
    %v4290 = vld [vmem:[%s4288 + $0x4] sm:$0xf]
    %v4291 = vld [vmem:[%s4288 + $0x8] sm:$0xf]
    %v4292 = vld [vmem:[%s4288 + $0xc] sm:$0xf]
    %v4297 = vunpack.c.l.b16 %v4289
    %v4298 = vunpack.c.l.b16 %v4290
    %v4299 = vunpack.c.l.b16 %v4291
    %v4300 = vunpack.c.l.b16 %v4292
    %v4301 = vpack.c.b16 %v4298, %v4297
    %v4302 = vpack.c.b16 %v4300, %v4299
    %v4306 = vsel %vm27, %v4280, 0
    %v4309 = vsel %vm27, %v4281, 0
    %v4312 = vsel %vm27, %v4282, 0
    %v4315 = vsel %vm27, %v4283, 0
    %v4318 = vsel %vm27, %v4284, 0
    %v4321 = vsel %vm27, %v4285, 0
    %v4324 = vsel %vm27, %v4286, 0
    %v4327 = vsel %vm27, %v4287, 0
    %4329 = vmatprep.subr.bf16.mxu0 0
    %4330 = vmatpush1.bf16.msra.mxu0 0
    %4331 = vmatprep.subr.bf16.mxu0 0
    %4332 = vmatpush1.bf16.msra.mxu0 0
    %4333 = vmatprep.subr.bf16.mxu0 0
    %4334 = vmatpush1.bf16.msra.mxu0 0
    %4335 = vmatprep.subr.bf16.mxu0 0
    %4336 = vmatpush1.bf16.msra.mxu0 0
    %4337 = vmatprep.subr.bf16.mxu0 0
    %4338 = vmatpush1.bf16.msra.mxu0 0
    %4339 = vmatprep.subr.bf16.mxu0 0
    %4340 = vmatpush1.bf16.msra.mxu0 0
    %4341 = vmatprep.subr.bf16.mxu0 0
    %4342 = vmatpush1.bf16.msra.mxu0 %v4302
    %4343 = vmatprep.subr.bf16.mxu0 0
    %4344 = vmatpush1.bf16.msra.mxu0 %v4301
    %4345 = vmatprep.subr.bf16.mxu0 0
    %4346 = vmatpush2.bf16.msra.mxu0 0
    %4347 = vmatprep.subr.bf16.mxu0 0
    %4348 = vmatpush2.bf16.msra.mxu0 0
    %4349 = vmatprep.subr.bf16.mxu0 0
    %4350 = vmatpush2.bf16.msra.mxu0 0
    %4351 = vmatprep.subr.bf16.mxu0 0
    %4352 = vmatpush2.bf16.msra.mxu0 0
    %4353 = vmatprep.subr.bf16.mxu0 0
    %4354 = vmatpush2.bf16.msra.mxu0 0
    %4355 = vmatprep.subr.bf16.mxu0 0
    %4356 = vmatpush2.bf16.msra.mxu0 0
    %4357 = vmatprep.subr.bf16.mxu0 0
    %4358 = vmatpush2.bf16.msra.mxu0 0
    %4359 = vmatprep.subr.bf16.mxu0 0
    %4360 = vmatpush2.bf16.msra.mxu0 0
    %4361 = vmatprep.mubr.bf16.mxu0 0
    %4362 = vmatmul.mubr.bf16.gmra.mxu0 %v4306
    %v4363 = vpop.f32.mrf.mxu0
    %v4364 = vadd.f32 0.0, %v4363
    %v4365 = vpop.f32.mrf.mxu0
    %v4366 = vpop.f32.mrf.mxu0
    %v4367 = vadd.f32 0.0, %v4366
    %v4368 = vpop.f32.mrf.mxu0
    %4369 = vmatprep.mubr.bf16.mxu0 0
    %4370 = vmatmul.mubr.bf16.gmra.mxu0 %v4309
    %v4371 = vpop.f32.mrf.mxu0
    %v4372 = vadd.f32 0.0, %v4371
    %v4373 = vpop.f32.mrf.mxu0
    %v4374 = vpop.f32.mrf.mxu0
    %v4375 = vadd.f32 0.0, %v4374
    %v4376 = vpop.f32.mrf.mxu0
    %4377 = vmatprep.mubr.bf16.mxu0 0
    %4378 = vmatmul.mubr.bf16.gmra.mxu0 %v4312
    %v4379 = vpop.f32.mrf.mxu0
    %v4380 = vadd.f32 0.0, %v4379
    %v4381 = vpop.f32.mrf.mxu0
    %v4382 = vpop.f32.mrf.mxu0
    %v4383 = vadd.f32 0.0, %v4382
    %v4384 = vpop.f32.mrf.mxu0
    %4385 = vmatprep.mubr.bf16.mxu0 0
    %4386 = vmatmul.mubr.bf16.gmra.mxu0 %v4315
    %v4387 = vpop.f32.mrf.mxu0
    %v4388 = vadd.f32 0.0, %v4387
    %v4389 = vpop.f32.mrf.mxu0
    %v4390 = vpop.f32.mrf.mxu0
    %v4391 = vadd.f32 0.0, %v4390
    %v4392 = vpop.f32.mrf.mxu0
    %4393 = vmatprep.mubr.bf16.mxu0 0
    %4394 = vmatmul.mubr.bf16.gmra.mxu0 %v4318
    %v4395 = vpop.f32.mrf.mxu0
    %v4396 = vadd.f32 0.0, %v4395
    %v4397 = vpop.f32.mrf.mxu0
    %v4398 = vpop.f32.mrf.mxu0
    %v4399 = vadd.f32 0.0, %v4398
    %v4400 = vpop.f32.mrf.mxu0
    %4401 = vmatprep.mubr.bf16.mxu0 0
    %4402 = vmatmul.mubr.bf16.gmra.mxu0 %v4321
    %v4403 = vpop.f32.mrf.mxu0
    %v4404 = vadd.f32 0.0, %v4403
    %v4405 = vpop.f32.mrf.mxu0
    %v4406 = vpop.f32.mrf.mxu0
    %v4407 = vadd.f32 0.0, %v4406
    %v4408 = vpop.f32.mrf.mxu0
    %4409 = vmatprep.mubr.bf16.mxu0 0
    %4410 = vmatmul.mubr.bf16.gmra.mxu0 %v4324
    %v4411 = vpop.f32.mrf.mxu0
    %v4412 = vadd.f32 0.0, %v4411
    %v4413 = vpop.f32.mrf.mxu0
    %v4414 = vpop.f32.mrf.mxu0
    %v4415 = vadd.f32 0.0, %v4414
    %v4416 = vpop.f32.mrf.mxu0
    %4417 = vmatprep.mubr.bf16.mxu0 0
    %4418 = vmatmul.mubr.bf16.gmra.mxu0 %v4327
    %v4419 = vpop.f32.mrf.mxu0
    %v4420 = vadd.f32 0.0, %v4419
    %v4421 = vpop.f32.mrf.mxu0
    %v4422 = vpop.f32.mrf.mxu0
    %v4423 = vadd.f32 0.0, %v4422
    %v4424 = vpop.f32.mrf.mxu0
    %4425 = vdwg.mxu0
    %v4426 = vadd.f32 %v4216, %v4364
    %v4427 = vadd.f32 %v4217, %v4367
    %v4428 = vadd.f32 %v4218, %v4372
    %v4429 = vadd.f32 %v4219, %v4375
    %v4430 = vadd.f32 %v4220, %v4380
    %v4431 = vadd.f32 %v4221, %v4383
    %v4432 = vadd.f32 %v4222, %v4388
    %v4433 = vadd.f32 %v4223, %v4391
    %v4434 = vadd.f32 %v4224, %v4396
    %v4435 = vadd.f32 %v4225, %v4399
    %v4436 = vadd.f32 %v4226, %v4404
    %v4437 = vadd.f32 %v4227, %v4407
    %v4438 = vadd.f32 %v4228, %v4412
    %v4439 = vadd.f32 %v4229, %v4415
    %v4440 = vadd.f32 %v4230, %v4420
    %v4441 = vadd.f32 %v4231, %v4423
    %v4442 = vlaneseq
    %v4443 = vshrl.u32 %v4442, 7
    %v4444 = vsub.s32 4, %v4443
    %v4445 = vrot.slane %v25, %v4444
    %v4446 = vadd.f32 %v4426, %v4445
    %v4447 = vadd.f32 %v4427, %v4445
    %v4448 = vadd.f32 %v4428, %v4445
    %v4449 = vadd.f32 %v4429, %v4445
    %v4450 = vadd.f32 %v4430, %v4445
    %v4451 = vadd.f32 %v4431, %v4445
    %v4452 = vadd.f32 %v4432, %v4445
    %v4453 = vadd.f32 %v4433, %v4445
    %v4454 = vadd.f32 %v4434, %v4445
    %v4455 = vadd.f32 %v4435, %v4445
    %v4456 = vadd.f32 %v4436, %v4445
    %v4457 = vadd.f32 %v4437, %v4445
    %v4458 = vadd.f32 %v4438, %v4445
    %v4459 = vadd.f32 %v4439, %v4445
    %v4460 = vadd.f32 %v4440, %v4445
    %v4461 = vadd.f32 %v4441, %v4445
    %v4462 = vpack.c.bf16 %v4447, %v4446
    %v4463 = vpack.c.bf16 %v4449, %v4448
    %v4464 = vpack.c.bf16 %v4451, %v4450
    %v4465 = vpack.c.bf16 %v4453, %v4452
    %v4466 = vpack.c.bf16 %v4455, %v4454
    %v4467 = vpack.c.bf16 %v4457, %v4456
    %v4468 = vpack.c.bf16 %v4459, %v4458
    %v4469 = vpack.c.bf16 %v4461, %v4460
    %v4470 = vld [vmem:[%s4] sm:$0xf]
    %v4471 = vld [vmem:[%s4 + $0x4] sm:$0xf]
    %v4472 = vld [vmem:[%s4 + $0x8] sm:$0xf]
    %v4473 = vld [vmem:[%s4 + $0xc] sm:$0xf]
    %v4474 = vld [vmem:[%s4 + $0x10] sm:$0xf]
    %v4475 = vld [vmem:[%s4 + $0x14] sm:$0xf]
    %v4476 = vld [vmem:[%s4 + $0x18] sm:$0xf]
    %v4477 = vld [vmem:[%s4 + $0x1c] sm:$0xf]
    %v4478 = vpack.c.bf16 %v2554, %v2553
    %v4479 = vpack.c.bf16 %v2556, %v2555
    %v4480 = vpack.c.bf16 %v2558, %v2557
    %v4481 = vpack.c.bf16 %v2560, %v2559
    %v4482 = vpack.c.bf16 %v2562, %v2561
    %v4483 = vpack.c.bf16 %v2564, %v2563
    %v4484 = vpack.c.bf16 %v2566, %v2565
    %v4485 = vpack.c.bf16 %v2568, %v2567
    %v4486 = vld [vmem:[%s4 + $0x20] sm:$0xf]
    %v4487 = vld [vmem:[%s4 + $0x24] sm:$0xf]
    %v4488 = vld [vmem:[%s4 + $0x28] sm:$0xf]
    %v4489 = vld [vmem:[%s4 + $0x2c] sm:$0xf]
    %v4494 = vunpack.c.l.b16 %v4486
    %v4495 = vunpack.c.l.b16 %v4487
    %v4496 = vunpack.c.l.b16 %v4488
    %v4497 = vunpack.c.l.b16 %v4489
    %v4498 = vpack.c.b16 %v4495, %v4494
    %v4499 = vpack.c.b16 %v4497, %v4496
    %v4503 = vsel %vm27, %v4478, 0
    %v4506 = vsel %vm27, %v4479, 0
    %v4509 = vsel %vm27, %v4480, 0
    %v4512 = vsel %vm27, %v4481, 0
    %v4515 = vsel %vm27, %v4482, 0
    %v4518 = vsel %vm27, %v4483, 0
    %v4521 = vsel %vm27, %v4484, 0
    %v4524 = vsel %vm27, %v4485, 0
    %4526 = vmatprep.subr.bf16.mxu0 0
    %4527 = vmatpush1.bf16.msra.mxu0 0
    %4528 = vmatprep.subr.bf16.mxu0 0
    %4529 = vmatpush1.bf16.msra.mxu0 0
    %4530 = vmatprep.subr.bf16.mxu0 0
    %4531 = vmatpush1.bf16.msra.mxu0 0
    %4532 = vmatprep.subr.bf16.mxu0 0
    %4533 = vmatpush1.bf16.msra.mxu0 0
    %4534 = vmatprep.subr.bf16.mxu0 0
    %4535 = vmatpush1.bf16.msra.mxu0 0
    %4536 = vmatprep.subr.bf16.mxu0 0
    %4537 = vmatpush1.bf16.msra.mxu0 0
    %4538 = vmatprep.subr.bf16.mxu0 0
    %4539 = vmatpush1.bf16.msra.mxu0 %v4499
    %4540 = vmatprep.subr.bf16.mxu0 0
    %4541 = vmatpush1.bf16.msra.mxu0 %v4498
    %4542 = vmatprep.subr.bf16.mxu0 0
    %4543 = vmatpush2.bf16.msra.mxu0 0
    %4544 = vmatprep.subr.bf16.mxu0 0
    %4545 = vmatpush2.bf16.msra.mxu0 0
    %4546 = vmatprep.subr.bf16.mxu0 0
    %4547 = vmatpush2.bf16.msra.mxu0 0
    %4548 = vmatprep.subr.bf16.mxu0 0
    %4549 = vmatpush2.bf16.msra.mxu0 0
    %4550 = vmatprep.subr.bf16.mxu0 0
    %4551 = vmatpush2.bf16.msra.mxu0 0
    %4552 = vmatprep.subr.bf16.mxu0 0
    %4553 = vmatpush2.bf16.msra.mxu0 0
    %4554 = vmatprep.subr.bf16.mxu0 0
    %4555 = vmatpush2.bf16.msra.mxu0 0
    %4556 = vmatprep.subr.bf16.mxu0 0
    %4557 = vmatpush2.bf16.msra.mxu0 0
    %4558 = vmatprep.mubr.bf16.mxu0 0
    %4559 = vmatmul.mubr.bf16.gmra.mxu0 %v4503
    %v4560 = vpop.f32.mrf.mxu0
    %v4561 = vadd.f32 0.0, %v4560
    %v4562 = vpop.f32.mrf.mxu0
    %v4563 = vpop.f32.mrf.mxu0
    %v4564 = vadd.f32 0.0, %v4563
    %v4565 = vpop.f32.mrf.mxu0
    %4566 = vmatprep.mubr.bf16.mxu0 0
    %4567 = vmatmul.mubr.bf16.gmra.mxu0 %v4506
    %v4568 = vpop.f32.mrf.mxu0
    %v4569 = vadd.f32 0.0, %v4568
    %v4570 = vpop.f32.mrf.mxu0
    %v4571 = vpop.f32.mrf.mxu0
    %v4572 = vadd.f32 0.0, %v4571
    %v4573 = vpop.f32.mrf.mxu0
    %4574 = vmatprep.mubr.bf16.mxu0 0
    %4575 = vmatmul.mubr.bf16.gmra.mxu0 %v4509
    %v4576 = vpop.f32.mrf.mxu0
    %v4577 = vadd.f32 0.0, %v4576
    %v4578 = vpop.f32.mrf.mxu0
    %v4579 = vpop.f32.mrf.mxu0
    %v4580 = vadd.f32 0.0, %v4579
    %v4581 = vpop.f32.mrf.mxu0
    %4582 = vmatprep.mubr.bf16.mxu0 0
    %4583 = vmatmul.mubr.bf16.gmra.mxu0 %v4512
    %v4584 = vpop.f32.mrf.mxu0
    %v4585 = vadd.f32 0.0, %v4584
    %v4586 = vpop.f32.mrf.mxu0
    %v4587 = vpop.f32.mrf.mxu0
    %v4588 = vadd.f32 0.0, %v4587
    %v4589 = vpop.f32.mrf.mxu0
    %4590 = vmatprep.mubr.bf16.mxu0 0
    %4591 = vmatmul.mubr.bf16.gmra.mxu0 %v4515
    %v4592 = vpop.f32.mrf.mxu0
    %v4593 = vadd.f32 0.0, %v4592
    %v4594 = vpop.f32.mrf.mxu0
    %v4595 = vpop.f32.mrf.mxu0
    %v4596 = vadd.f32 0.0, %v4595
    %v4597 = vpop.f32.mrf.mxu0
    %4598 = vmatprep.mubr.bf16.mxu0 0
    %4599 = vmatmul.mubr.bf16.gmra.mxu0 %v4518
    %v4600 = vpop.f32.mrf.mxu0
    %v4601 = vadd.f32 0.0, %v4600
    %v4602 = vpop.f32.mrf.mxu0
    %v4603 = vpop.f32.mrf.mxu0
    %v4604 = vadd.f32 0.0, %v4603
    %v4605 = vpop.f32.mrf.mxu0
    %4606 = vmatprep.mubr.bf16.mxu0 0
    %4607 = vmatmul.mubr.bf16.gmra.mxu0 %v4521
    %v4608 = vpop.f32.mrf.mxu0
    %v4609 = vadd.f32 0.0, %v4608
    %v4610 = vpop.f32.mrf.mxu0
    %v4611 = vpop.f32.mrf.mxu0
    %v4612 = vadd.f32 0.0, %v4611
    %v4613 = vpop.f32.mrf.mxu0
    %4614 = vmatprep.mubr.bf16.mxu0 0
    %4615 = vmatmul.mubr.bf16.gmra.mxu0 %v4524
    %v4616 = vpop.f32.mrf.mxu0
    %v4617 = vadd.f32 0.0, %v4616
    %v4618 = vpop.f32.mrf.mxu0
    %v4619 = vpop.f32.mrf.mxu0
    %v4620 = vadd.f32 0.0, %v4619
    %v4621 = vpop.f32.mrf.mxu0
    %4622 = vdwg.mxu0
    %v4631 = vunpack.c.l.b16 %v4470
    %v4632 = vunpack.c.l.b16 %v4471
    %v4633 = vunpack.c.l.b16 %v4472
    %v4634 = vunpack.c.l.b16 %v4473
    %v4635 = vunpack.c.l.b16 %v4474
    %v4636 = vunpack.c.l.b16 %v4475
    %v4637 = vunpack.c.l.b16 %v4476
    %v4638 = vunpack.c.l.b16 %v4477
    %v4639 = vpack.c.b16 %v4632, %v4631
    %v4640 = vpack.c.b16 %v4634, %v4633
    %v4641 = vpack.c.b16 %v4636, %v4635
    %v4642 = vpack.c.b16 %v4638, %v4637
    %vm4647 = vcmask 523264
    %v4649 = vsel %vm4647, %v4462, 0
    %v4652 = vsel %vm4647, %v4463, 0
    %v4655 = vsel %vm4647, %v4464, 0
    %v4658 = vsel %vm4647, %v4465, 0
    %v4661 = vsel %vm4647, %v4466, 0
    %v4664 = vsel %vm4647, %v4467, 0
    %v4667 = vsel %vm4647, %v4468, 0
    %v4670 = vsel %vm4647, %v4469, 0
    %4672 = vmatprep.subr.bf16.mxu0 0
    %4673 = vmatpush1.bf16.msra.mxu0 0
    %4674 = vmatprep.subr.bf16.mxu0 0
    %4675 = vmatpush1.bf16.msra.mxu0 0
    %4676 = vmatprep.subr.bf16.mxu0 0
    %4677 = vmatpush1.bf16.msra.mxu0 0
    %4678 = vmatprep.subr.bf16.mxu0 0
    %4679 = vmatpush1.bf16.msra.mxu0 0
    %4680 = vmatprep.subr.bf16.mxu0 0
    %4681 = vmatpush1.bf16.msra.mxu0 %v4642
    %4682 = vmatprep.subr.bf16.mxu0 0
    %4683 = vmatpush1.bf16.msra.mxu0 %v4641
    %4684 = vmatprep.subr.bf16.mxu0 0
    %4685 = vmatpush1.bf16.msra.mxu0 %v4640
    %4686 = vmatprep.subr.bf16.mxu0 0
    %4687 = vmatpush1.bf16.msra.mxu0 %v4639
    %4688 = vmatprep.subr.bf16.mxu0 0
    %4689 = vmatpush2.bf16.msra.mxu0 0
    %4690 = vmatprep.subr.bf16.mxu0 0
    %4691 = vmatpush2.bf16.msra.mxu0 0
    %4692 = vmatprep.subr.bf16.mxu0 0
    %4693 = vmatpush2.bf16.msra.mxu0 0
    %4694 = vmatprep.subr.bf16.mxu0 0
    %4695 = vmatpush2.bf16.msra.mxu0 0
    %4696 = vmatprep.subr.bf16.mxu0 0
    %4697 = vmatpush2.bf16.msra.mxu0 0
    %4698 = vmatprep.subr.bf16.mxu0 0
    %4699 = vmatpush2.bf16.msra.mxu0 0
    %4700 = vmatprep.subr.bf16.mxu0 0
    %4701 = vmatpush2.bf16.msra.mxu0 0
    %4702 = vmatprep.subr.bf16.mxu0 0
    %4703 = vmatpush2.bf16.msra.mxu0 0
    %4704 = vmatprep.mubr.bf16.mxu0 0
    %4705 = vmatmul.mubr.bf16.gmra.mxu0 %v4649
    %v4706 = vpop.f32.mrf.mxu0
    %v4707 = vadd.f32 %v4561, %v4706
    %v4708 = vpop.f32.mrf.mxu0
    %v4709 = vpop.f32.mrf.mxu0
    %v4710 = vadd.f32 %v4564, %v4709
    %v4711 = vpop.f32.mrf.mxu0
    %4712 = vmatprep.mubr.bf16.mxu0 0
    %4713 = vmatmul.mubr.bf16.gmra.mxu0 %v4652
    %v4714 = vpop.f32.mrf.mxu0
    %v4715 = vadd.f32 %v4569, %v4714
    %v4716 = vpop.f32.mrf.mxu0
    %v4717 = vpop.f32.mrf.mxu0
    %v4718 = vadd.f32 %v4572, %v4717
    %v4719 = vpop.f32.mrf.mxu0
    %4720 = vmatprep.mubr.bf16.mxu0 0
    %4721 = vmatmul.mubr.bf16.gmra.mxu0 %v4655
    %v4722 = vpop.f32.mrf.mxu0
    %v4723 = vadd.f32 %v4577, %v4722
    %v4724 = vpop.f32.mrf.mxu0
    %v4725 = vpop.f32.mrf.mxu0
    %v4726 = vadd.f32 %v4580, %v4725
    %v4727 = vpop.f32.mrf.mxu0
    %4728 = vmatprep.mubr.bf16.mxu0 0
    %4729 = vmatmul.mubr.bf16.gmra.mxu0 %v4658
    %v4730 = vpop.f32.mrf.mxu0
    %v4731 = vadd.f32 %v4585, %v4730
    %v4732 = vpop.f32.mrf.mxu0
    %v4733 = vpop.f32.mrf.mxu0
    %v4734 = vadd.f32 %v4588, %v4733
    %v4735 = vpop.f32.mrf.mxu0
    %4736 = vmatprep.mubr.bf16.mxu0 0
    %4737 = vmatmul.mubr.bf16.gmra.mxu0 %v4661
    %v4738 = vpop.f32.mrf.mxu0
    %v4739 = vadd.f32 %v4593, %v4738
    %v4740 = vpop.f32.mrf.mxu0
    %v4741 = vpop.f32.mrf.mxu0
    %v4742 = vadd.f32 %v4596, %v4741
    %v4743 = vpop.f32.mrf.mxu0
    %4744 = vmatprep.mubr.bf16.mxu0 0
    %4745 = vmatmul.mubr.bf16.gmra.mxu0 %v4664
    %v4746 = vpop.f32.mrf.mxu0
    %v4747 = vadd.f32 %v4601, %v4746
    %v4748 = vpop.f32.mrf.mxu0
    %v4749 = vpop.f32.mrf.mxu0
    %v4750 = vadd.f32 %v4604, %v4749
    %v4751 = vpop.f32.mrf.mxu0
    %4752 = vmatprep.mubr.bf16.mxu0 0
    %4753 = vmatmul.mubr.bf16.gmra.mxu0 %v4667
    %v4754 = vpop.f32.mrf.mxu0
    %v4755 = vadd.f32 %v4609, %v4754
    %v4756 = vpop.f32.mrf.mxu0
    %v4757 = vpop.f32.mrf.mxu0
    %v4758 = vadd.f32 %v4612, %v4757
    %v4759 = vpop.f32.mrf.mxu0
    %4760 = vmatprep.mubr.bf16.mxu0 0
    %4761 = vmatmul.mubr.bf16.gmra.mxu0 %v4670
    %v4762 = vpop.f32.mrf.mxu0
    %v4763 = vadd.f32 %v4617, %v4762
    %v4764 = vpop.f32.mrf.mxu0
    %v4765 = vpop.f32.mrf.mxu0
    %v4766 = vadd.f32 %v4620, %v4765
    %v4767 = vpop.f32.mrf.mxu0
    %4768 = vdwg.mxu0
    %v4769 = vlaneseq
    %v4770 = vshrl.u32 %v4769, 7
    %v4771 = vsub.s32 5, %v4770
    %v4772 = vrot.slane %v25, %v4771
    %v4773 = vadd.f32 %v4707, %v4772
    %v4774 = vadd.f32 %v4710, %v4772
    %v4775 = vadd.f32 %v4715, %v4772
    %v4776 = vadd.f32 %v4718, %v4772
    %v4777 = vadd.f32 %v4723, %v4772
    %v4778 = vadd.f32 %v4726, %v4772
    %v4779 = vadd.f32 %v4731, %v4772
    %v4780 = vadd.f32 %v4734, %v4772
    %v4781 = vadd.f32 %v4739, %v4772
    %v4782 = vadd.f32 %v4742, %v4772
    %v4783 = vadd.f32 %v4747, %v4772
    %v4784 = vadd.f32 %v4750, %v4772
    %v4785 = vadd.f32 %v4755, %v4772
    %v4786 = vadd.f32 %v4758, %v4772
    %v4787 = vadd.f32 %v4763, %v4772
    %v4788 = vadd.f32 %v4766, %v4772
    %4789 = vst [vmem:[#allocation3] sm:$0xff] %v4773
    %4790 = vst [vmem:[#allocation3 + $0x8] sm:$0xff] %v4774
    %4791 = vst [vmem:[#allocation3 + $0x10] sm:$0xff] %v4775
    %4792 = vst [vmem:[#allocation3 + $0x18] sm:$0xff] %v4776
    %4793 = vst [vmem:[#allocation3 + $0x20] sm:$0xff] %v4777
    %4794 = vst [vmem:[#allocation3 + $0x28] sm:$0xff] %v4778
    %4795 = vst [vmem:[#allocation3 + $0x30] sm:$0xff] %v4779
    %4796 = vst [vmem:[#allocation3 + $0x38] sm:$0xff] %v4780
    %4797 = vst [vmem:[#allocation3 + $0x40] sm:$0xff] %v4781
    %4798 = vst [vmem:[#allocation3 + $0x48] sm:$0xff] %v4782
    %4799 = vst [vmem:[#allocation3 + $0x50] sm:$0xff] %v4783
    %4800 = vst [vmem:[#allocation3 + $0x58] sm:$0xff] %v4784
    %4801 = vst [vmem:[#allocation3 + $0x60] sm:$0xff] %v4785
    %4802 = vst [vmem:[#allocation3 + $0x68] sm:$0xff] %v4786
    %4803 = vst [vmem:[#allocation3 + $0x70] sm:$0xff] %v4787
    %4804 = vst [vmem:[#allocation3 + $0x78] sm:$0xff] %v4788
    // Predicated region
    $region26: #{tiny_phase_correlation_tensor_computation.1} parent=1 // pred_check
      _
    $region27: #{tiny_phase_correlation_tensor_computation.1} parent=1 // pred_check_branch
      %4806 = sbr.rel (0) target = $region29
    $region28: #{tiny_phase_correlation_tensor_computation.1} parent=1 // pred_region
      %s4808 = ssub.s32 2048, 2048
      %4809 = vsyncadd [#allocation4], %s4808
      %s4810 = sshll.u32 [#allocation3], 4
      %s4811 = int_to_ptr.vmem [resolvable:$true] %s4810
      %4816 = dma.vmem_to_hbm [thread:$0]  %s4811, 2048, %s6, [#allocation4], 128, 128, 8
    $region29: #{tiny_phase_correlation_tensor_computation.1} parent=1 // pred_fallthru
      _
    // Predicated region
    $region30: #{tiny_phase_correlation_tensor_computation.1} parent=1 // pred_check
      _
    $region31: #{tiny_phase_correlation_tensor_computation.1} parent=1 // pred_check_branch
      %4818 = sbr.rel (0) target = $region33
    $region32: #{tiny_phase_correlation_tensor_computation.1} parent=1 // pred_region
      %4819 = dma.done [#allocation4], 2048
    $region33: #{tiny_phase_correlation_tensor_computation.1} parent=1 // pred_fallthru
      _
    %4820 = vsyncpa [#allocation4], 1

</llo_original>
